<compile_context>
chip_gen: v7x
topology: tpu7x:2x2x1
jax: 0.10.0
libtpu: 0.0.40
codegen_flags: <defaults>
</compile_context>

<pallas_src>
import functools

import numpy as np
import jax
import jax.numpy as jnp
from jax.experimental import pallas as pl
from jax.experimental.pallas import tpu as pltpu


def _round_up(v, m):
    return ((v + m - 1) // m) * m


# ----------------------------- Pallas kernel ------------------------------ #
def project_kernel(H, W, P, B, x_ref, w1_ref, w2_ref, w3_ref, b1_ref, b2_ref,
                   t1_ref, t2_ref, msk_ref, o_ref, pad_ref):
    """One grid step = B batch elements (M = B*H*W rows, channels on lanes).

    x_ref  : (M, C) bf16.
    t*_ref : (9, 2) f32 SpatialAttention taps; column 0 (channel-mean path)
             already has the 1/C factor folded in.
    msk_ref: (M, 9) f32 {0,1} per-pixel/per-tap validity (handles image edges
             and the boundaries between the B images stacked in this block).
    pad_ref: (M + 2P, 2) f32 halo buffer (lane0 = channel-sum, lane1 = max).
    """
    HW = H * W
    M = B * HW

    # Zero only the 2*P halo rows (tiny, megacore-safe every step).  The centre
    # [P, P+M) is fully overwritten before every read; halo reads are also
    # masked, the zeroing just guards against NaN*0 from uninitialized VMEM.
    pad_ref[0:P, :] = jnp.zeros((P, 2), jnp.float32)
    pad_ref[P + M:M + 2 * P, :] = jnp.zeros((P, 2), jnp.float32)

    # Hoisted per-tap validity multipliers, shared by both SA applications.
    mults = [msk_ref[:, t:t + 1] for t in range(9)]          # (M, 1) each

    def spatial_attention(y, t_ref):
        # y: (M, C) f32
        stats = jnp.concatenate(
            [jnp.sum(y, axis=-1, keepdims=True),             # 1/C in taps
             jnp.max(y, axis=-1, keepdims=True)], axis=-1)   # (M, 2)
        pad_ref[P:P + M, :] = stats
        att2 = jnp.zeros((M, 2), jnp.float32)
        for kh in range(3):
            for kw in range(3):
                t = kh * 3 + kw
                dh, dw = kh - 1, kw - 1
                start = P + dh * W + dw                      # static shift
                c = pad_ref[start:start + M, :] * t_ref[t:t + 1, :]
                if t != 4:                                   # centre always ok
                    c = c * mults[t]
                att2 = att2 + c
        att = jnp.sum(att2, axis=-1, keepdims=True)          # (M, 1)
        return jax.nn.sigmoid(att)

    x = x_ref[...]                                           # (M, C) bf16

    # ---- stage 1: conv1 (1x1, BN scale folded) + bias + relu + SA ----
    y = jnp.dot(x, w1_ref[...], preferred_element_type=jnp.float32)
    y = jnp.maximum(y + b1_ref[...], 0.0)
    y = y * spatial_attention(y, t1_ref)

    # ---- stage 2: conv2 (1x1, BN scale folded) + bias + relu + SA ----
    y = jnp.dot(y.astype(jnp.bfloat16), w2_ref[...],
                preferred_element_type=jnp.float32)
    y = jnp.maximum(y + b2_ref[...], 0.0)
    y = y * spatial_attention(y, t2_ref)

    # ---- stage 3: conv3 (1x1) ----
    # TODO(synk): emit bf16 here (+ bf16 out_shape) if the consumer tolerates
    #             it -- halves output HBM writeback (largest relative win on v5e).
    o_ref[...] = jnp.dot(y.astype(jnp.bfloat16), w3_ref[...],
                         preferred_element_type=jnp.float32)


# ------------------------------- wrappers ---------------------------------- #
def choose_b_tile(n, hw, min_rows=256, max_rows=2048):
    """Largest useful batch tile: M = b*hw >= min_rows if possible, VMEM-sane,
    and keep the grid >= 2 steps so v7x's two TensorCores both get work."""
    divs = [d for d in range(1, n + 1) if n % d == 0]
    cands = [d for d in divs if d * hw <= max_rows] or [1]
    pref = [d for d in cands if n // d >= 2] or cands
    good = [d for d in pref if d * hw >= min_rows]
    return min(good) if good else max(pref)


def build_tapmask(h, w, b_tile):
    """(b_tile*h*w, 9) f32 {0,1}: tap (kh,kw) valid iff the 3x3 neighbour lies
    inside the same image.  Exact integer construction (no float floor/mod)."""
    hh = np.repeat(np.arange(h), w)
    ww = np.tile(np.arange(w), h)
    cols = []
    for kh in range(3):
        for kw in range(3):
            dh, dw = kh - 1, kw - 1
            ok = ((hh + dh >= 0) & (hh + dh < h) &
                  (ww + dw >= 0) & (ww + dw < w))
            cols.append(ok.astype(np.float32))
    m = np.stack(cols, axis=-1)                          # (HW, 9)
    return jnp.asarray(np.tile(m, (b_tile, 1)))          # (M, 9)


def project_pallas(x_flat, w1, w2, w3, b1, b2, taps1, taps2, tapmask,
                   *, n, h, w, b_tile):
    """x_flat: (n*h*w, C) bf16; w*: (C, C) bf16 (BN-folded); b*: (1, C) f32;
    taps*: (9, 2) f32; tapmask: (b_tile*h*w, 9) f32.  Returns (n*h*w, C) f32."""
    HW = h * w
    M = b_tile * HW
    C = x_flat.shape[-1]
    assert HW % 8 == 0, "h*w must be a multiple of 8 for the (8,128) tiling"
    assert n % b_tile == 0
    P = _round_up(w + 1, 8)                  # halo pad: 8-aligned, >= w+1
    rows = M + 2 * P

    kernel = functools.partial(project_kernel, h, w, P, b_tile)
    wspec = pl.BlockSpec((C, C), lambda i: (0, 0))   # VMEM-resident weights
    bspec = pl.BlockSpec((1, C), lambda i: (0, 0))
    tspec = pl.BlockSpec((9, 2), lambda i: (0, 0))
    mspec = pl.BlockSpec((M, 9), lambda i: (0, 0))

    return pl.pallas_call(
        kernel,
        out_shape=jax.ShapeDtypeStruct((n * HW, C), jnp.float32),
        grid=(n // b_tile,),
        in_specs=[
            pl.BlockSpec((M, C), lambda i: (i, 0)),  # x: B_TILE images / step
            wspec, wspec, wspec,                     # w1, w2, w3
            bspec, bspec,                            # b1, b2
            tspec, tspec,                            # SA tap tables
            mspec,                                   # per-tap validity mask
        ],
        out_specs=pl.BlockSpec((M, C), lambda i: (i, 0)),
        scratch_shapes=[pltpu.VMEM((rows, 2), jnp.float32)],
        compiler_params=pltpu.CompilerParams(
            dimension_semantics=("parallel",)),
    )(x_flat, w1, w2, w3, b1, b2, taps1, taps2, tapmask)


# --------------------------- parameter folding ----------------------------- #
def fold_bn(gamma, beta, mean, var, eps=1e-5):
    scale = gamma / jnp.sqrt(var + eps)
    bias = beta - mean * scale
    return scale.reshape(1, -1), bias.reshape(1, -1)


def fold_params(w1, w2, w3, bn1, bn2, wsa1, wsa2):
    """Fold eval-mode BN into the 1x1 conv weights (cast bf16) and build the
    (9, 2) SpatialAttention tap tables (1/C folded into the channel-mean taps)."""
    C = w1.shape[0]
    s1, b1 = fold_bn(*bn1)
    s2, b2 = fold_bn(*bn2)
    w1f = (w1 * s1).astype(jnp.bfloat16)
    w2f = (w2 * s2).astype(jnp.bfloat16)
    w3f = w3.astype(jnp.bfloat16)
    t1 = jnp.stack([wsa1[0, 0].reshape(-1) / C, wsa1[0, 1].reshape(-1)],
                   axis=-1).astype(jnp.float32)              # (9, 2)
    t2 = jnp.stack([wsa2[0, 0].reshape(-1) / C, wsa2[0, 1].reshape(-1)],
                   axis=-1).astype(jnp.float32)
    return w1f, w2f, w3f, b1, b2, t1, t2


def project_forward_nhwc(x_nhwc, w1f, w2f, w3f, b1, b2, t1, t2):
    """Kernel path stays in NHWC: only a reshape, no NCHW<->NHWC transpose."""
    n, h, w, c = x_nhwc.shape
    b_tile = choose_b_tile(n, h * w)
    tapmask = build_tapmask(h, w, b_tile)
    x_flat = x_nhwc.reshape(n * h * w, c).astype(jnp.bfloat16)
    out_flat = project_pallas(x_flat, w1f, w2f, w3f, b1, b2, t1, t2, tapmask,
                              n=n, h=h, w=w, b_tile=b_tile)
    return out_flat.reshape(n, h, w, c)


# ------------------------- pure-JAX reference (NCHW) ----------------------- #
def reference_forward(x_nchw, p):
    """conv1x1 (+ folded eval-BN bias) -> ReLU -> SA -> ... -> conv1x1."""
    def conv1x1(x, w):   # w: (Cin, Cout)
        return jnp.einsum('nchw,cd->ndhw', x, w,
                          precision=jax.lax.Precision.HIGHEST)

    def sa(x, wsa):
        avg = jnp.mean(x, axis=1, keepdims=True)
        mx = jnp.max(x, axis=1, keepdims=True)
        m = jnp.concatenate([avg, mx], axis=1)
        y = jax.lax.conv_general_dilated(
            m, wsa, window_strides=(1, 1), padding='SAME',
            dimension_numbers=('NCHW', 'OIHW', 'NCHW'),
            precision=jax.lax.Precision.HIGHEST)
        return jax.nn.sigmoid(y)

    def bias(x, b):
        return x + b.reshape(1, -1, 1, 1)

    y = jnp.maximum(bias(conv1x1(x_nchw, p['w1']), p['b1']), 0.0)
    y = sa(y, p['wsa1']) * y
    y = jnp.maximum(bias(conv1x1(y, p['w2']), p['b2']), 0.0)
    y = sa(y, p['wsa2']) * y
    return conv1x1(y, p['w3'])


# --------------------------------- main ------------------------------------ #
if __name__ == "__main__":
    # Small test shapes (module default planes=384 also works: C must just keep
    # the lane dim dense; B_TILE is chosen so M = B_TILE*H*W >= 256).
    N, C, H, W = 8, 128, 8, 8

    key = jax.random.PRNGKey(0)
    keys = jax.random.split(key, 14)

    x_nhwc = jax.random.normal(keys[0], (N, H, W, C), jnp.float32)

    # 1x1 conv weights stored as (Cin, Cout)  (== torch weight[:, :, 0, 0].T)
    w1 = jax.random.normal(keys[1], (C, C), jnp.float32) * 0.05
    w2 = jax.random.normal(keys[2], (C, C), jnp.float32) * 0.05
    w3 = jax.random.normal(keys[3], (C, C), jnp.float32) * 0.05

    # BatchNorm (eval-mode) parameters: (gamma, beta, running_mean, running_var)
    bn1 = (1.0 + 0.1 * jax.random.normal(keys[4], (C,), jnp.float32),
           0.1 * jax.random.normal(keys[5], (C,), jnp.float32),
           0.1 * jax.random.normal(keys[6], (C,), jnp.float32),
           jnp.abs(jax.random.normal(keys[7], (C,), jnp.float32)) + 0.5)
    bn2 = (1.0 + 0.1 * jax.random.normal(keys[8], (C,), jnp.float32),
           0.1 * jax.random.normal(keys[9], (C,), jnp.float32),
           0.1 * jax.random.normal(keys[10], (C,), jnp.float32),
           jnp.abs(jax.random.normal(keys[11], (C,), jnp.float32)) + 0.5)

    # SpatialAttention conv weights (out=1, in=2, 3, 3)
    wsa1 = jax.random.normal(keys[12], (1, 2, 3, 3), jnp.float32) * 0.3
    wsa2 = jax.random.normal(keys[13], (1, 2, 3, 3), jnp.float32) * 0.3

    w1f, w2f, w3f, b1, b2, t1, t2 = fold_params(w1, w2, w3, bn1, bn2, wsa1, wsa2)

    out_nhwc = project_forward_nhwc(x_nhwc, w1f, w2f, w3f, b1, b2, t1, t2)
    out_nhwc = jax.block_until_ready(out_nhwc)

    # Reference in f32 using the same bf16-rounded input / folded weights, so
    # the only remaining difference is the kernel's in-flight bf16 activation
    # rounding and accumulation order.  (Transposes here are test-only.)
    x_q = x_nhwc.astype(jnp.bfloat16).astype(jnp.float32)
    ref_nchw = reference_forward(jnp.transpose(x_q, (0, 3, 1, 2)), dict(
        w1=w1f.astype(jnp.float32), b1=b1,
        w2=w2f.astype(jnp.float32), b2=b2,
        w3=w3f.astype(jnp.float32),
        wsa1=wsa1, wsa2=wsa2))
    ref_nhwc = jnp.transpose(ref_nchw, (0, 2, 3, 1))
    np.testing.assert_allclose(np.asarray(out_nhwc), np.asarray(ref_nhwc),
                               rtol=2e-2, atol=1e-2)
    print("KERNEL_OK")
</pallas_src>

<mosaic_0001>
module attributes {stable_mosaic.version = 11 : i64} {
  func.func @project_kernel(%arg0: i32, %arg1: memref<256x128xbf16, #tpu.memory_space<vmem>>, %arg2: memref<128x128xbf16, #tpu.memory_space<vmem>>, %arg3: memref<128x128xbf16, #tpu.memory_space<vmem>>, %arg4: memref<128x128xbf16, #tpu.memory_space<vmem>>, %arg5: memref<1x128xf32, #tpu.memory_space<vmem>>, %arg6: memref<1x128xf32, #tpu.memory_space<vmem>>, %arg7: memref<9x2xf32, #tpu.memory_space<vmem>>, %arg8: memref<9x2xf32, #tpu.memory_space<vmem>>, %arg9: memref<256x9xf32, #tpu.memory_space<vmem>>, %arg10: memref<256x128xf32, #tpu.memory_space<vmem>>, %arg11: memref<288x2xf32, #tpu.memory_space<vmem>>) attributes {dimension_semantics = [#tpu.dimension_semantics<parallel>], iteration_bounds = array<i64: 2>, scalar_prefetch = 0 : i64, scratch_operands = 1 : i64, tpu.core_type = #tpu.core_type<tc>, window_params = [{transform_indices = @transform_0, window_bounds = array<i64: 256, 128>}, {pipeline_mode = #tpu.pipeline_mode<synchronous>, transform_indices = @transform_1, window_bounds = array<i64: 128, 128>}, {pipeline_mode = #tpu.pipeline_mode<synchronous>, transform_indices = @transform_2, window_bounds = array<i64: 128, 128>}, {pipeline_mode = #tpu.pipeline_mode<synchronous>, transform_indices = @transform_3, window_bounds = array<i64: 128, 128>}, {pipeline_mode = #tpu.pipeline_mode<synchronous>, transform_indices = @transform_4, window_bounds = array<i64: 1, 128>}, {pipeline_mode = #tpu.pipeline_mode<synchronous>, transform_indices = @transform_5, window_bounds = array<i64: 1, 128>}, {pipeline_mode = #tpu.pipeline_mode<synchronous>, transform_indices = @transform_6, window_bounds = array<i64: 9, 2>}, {pipeline_mode = #tpu.pipeline_mode<synchronous>, transform_indices = @transform_7, window_bounds = array<i64: 9, 2>}, {pipeline_mode = #tpu.pipeline_mode<synchronous>, transform_indices = @transform_8, window_bounds = array<i64: 256, 9>}, {transform_indices = @transform_9, window_bounds = array<i64: 256, 128>}]} {
    %cst = arith.constant 0.000000e+00 : f32
    %0 = vector.broadcast %cst : f32 to vector<16x2xf32>
    %c0 = arith.constant 0 : index
    %c0_0 = arith.constant 0 : index
    %1 = vector.load %arg11[%c0, %c0_0] : memref<288x2xf32, #tpu.memory_space<vmem>>, vector<16x2xf32>
    tpu.vector_store %arg11[%c0, %c0_0], %0 {strides = array<i32>} : memref<288x2xf32, #tpu.memory_space<vmem>>, vector<16x2xf32>,
    %cst_1 = arith.constant 0.000000e+00 : f32
    %2 = vector.broadcast %cst_1 : f32 to vector<16x2xf32>
    %c272 = arith.constant 272 : index
    %c0_2 = arith.constant 0 : index
    %3 = vector.load %arg11[%c272, %c0_2] : memref<288x2xf32, #tpu.memory_space<vmem>>, vector<16x2xf32>
    tpu.vector_store %arg11[%c272, %c0_2], %2 {strides = array<i32>} : memref<288x2xf32, #tpu.memory_space<vmem>>, vector<16x2xf32>,
    %c0_3 = arith.constant 0 : index
    %c0_4 = arith.constant 0 : index
    %4 = vector.load %arg9[%c0_3, %c0_4] : memref<256x9xf32, #tpu.memory_space<vmem>>, vector<256x1xf32>
    %c0_5 = arith.constant 0 : index
    %c1 = arith.constant 1 : index
    %5 = vector.load %arg9[%c0_5, %c1] : memref<256x9xf32, #tpu.memory_space<vmem>>, vector<256x1xf32>
    %c0_6 = arith.constant 0 : index
    %c2 = arith.constant 2 : index
    %6 = vector.load %arg9[%c0_6, %c2] : memref<256x9xf32, #tpu.memory_space<vmem>>, vector<256x1xf32>
    %c0_7 = arith.constant 0 : index
    %c3 = arith.constant 3 : index
    %7 = vector.load %arg9[%c0_7, %c3] : memref<256x9xf32, #tpu.memory_space<vmem>>, vector<256x1xf32>
    %c0_8 = arith.constant 0 : index
    %c5 = arith.constant 5 : index
    %8 = vector.load %arg9[%c0_8, %c5] : memref<256x9xf32, #tpu.memory_space<vmem>>, vector<256x1xf32>
    %c0_9 = arith.constant 0 : index
    %c6 = arith.constant 6 : index
    %9 = vector.load %arg9[%c0_9, %c6] : memref<256x9xf32, #tpu.memory_space<vmem>>, vector<256x1xf32>
    %c0_10 = arith.constant 0 : index
    %c7 = arith.constant 7 : index
    %10 = vector.load %arg9[%c0_10, %c7] : memref<256x9xf32, #tpu.memory_space<vmem>>, vector<256x1xf32>
    %c0_11 = arith.constant 0 : index
    %c8 = arith.constant 8 : index
    %11 = vector.load %arg9[%c0_11, %c8] : memref<256x9xf32, #tpu.memory_space<vmem>>, vector<256x1xf32>
    %c0_12 = arith.constant 0 : index
    %c0_13 = arith.constant 0 : index
    %12 = vector.load %arg1[%c0_12, %c0_13] : memref<256x128xbf16, #tpu.memory_space<vmem>>, vector<256x128xbf16>
    %c0_14 = arith.constant 0 : index
    %c0_15 = arith.constant 0 : index
    %13 = vector.load %arg2[%c0_14, %c0_15] : memref<128x128xbf16, #tpu.memory_space<vmem>>, vector<128x128xbf16>
    %cst_16 = arith.constant dense<0.000000e+00> : vector<256x128xf32>
    %14 = tpu.matmul %12, %13, %cst_16 {dimension_numbers = #tpu.dot_dimension_numbers<[1], [0], [0], [1], [0, 0, 1, 1], [], []>} : vector<256x128xbf16>, vector<128x128xbf16>, vector<256x128xf32> -> vector<256x128xf32>
    %c0_17 = arith.constant 0 : index
    %c0_18 = arith.constant 0 : index
    %15 = vector.load %arg5[%c0_17, %c0_18] : memref<1x128xf32, #tpu.memory_space<vmem>>, vector<1x128xf32>
    %16 = vector.broadcast %15 : vector<1x128xf32> to vector<256x128xf32>
    %17 = arith.addf %14, %16 : vector<256x128xf32>
    %cst_19 = arith.constant 0.000000e+00 : f32
    %18 = vector.broadcast %cst_19 : f32 to vector<256x128xf32>
    %19 = arith.maximumf %17, %18 : vector<256x128xf32>
    %cst_20 = arith.constant dense<0.000000e+00> : vector<256xf32>
    %20 = vector.multi_reduction <add>, %19, %cst_20 [1] : vector<256x128xf32> to vector<256xf32>
    %21 = vector.shape_cast %20 : vector<256xf32> to vector<256x1xf32>
    %cst_21 = arith.constant dense<0xFF800000> : vector<256xf32>
    %22 = vector.multi_reduction <maximumf>, %19, %cst_21 [1] : vector<256x128xf32> to vector<256xf32>
    %23 = vector.shape_cast %22 : vector<256xf32> to vector<256x1xf32>
    %24 = tpu.concatenate %21, %23 in 1 : vector<256x1xf32>, vector<256x1xf32> -> vector<256x2xf32>
    %c16 = arith.constant 16 : index
    %c0_22 = arith.constant 0 : index
    %25 = vector.load %arg11[%c16, %c0_22] : memref<288x2xf32, #tpu.memory_space<vmem>>, vector<256x2xf32>
    tpu.vector_store %arg11[%c16, %c0_22], %24 {strides = array<i32>} : memref<288x2xf32, #tpu.memory_space<vmem>>, vector<256x2xf32>,
    %cst_23 = arith.constant 0.000000e+00 : f32
    %26 = vector.broadcast %cst_23 : f32 to vector<256x2xf32>
    %c7_24 = arith.constant 7 : index
    %c0_25 = arith.constant 0 : index
    %27 = vector.load %arg11[%c7_24, %c0_25] : memref<288x2xf32, #tpu.memory_space<vmem>>, vector<256x2xf32>
    %c0_26 = arith.constant 0 : index
    %c0_27 = arith.constant 0 : index
    %28 = vector.load %arg7[%c0_26, %c0_27] : memref<9x2xf32, #tpu.memory_space<vmem>>, vector<1x2xf32>
    %29 = vector.broadcast %28 : vector<1x2xf32> to vector<256x2xf32>
    %30 = arith.mulf %27, %29 : vector<256x2xf32>
    %31 = vector.broadcast %4 : vector<256x1xf32> to vector<256x2xf32>
    %32 = arith.mulf %30, %31 : vector<256x2xf32>
    %33 = arith.addf %26, %32 : vector<256x2xf32>
    %c8_28 = arith.constant 8 : index
    %c0_29 = arith.constant 0 : index
    %34 = vector.load %arg11[%c8_28, %c0_29] : memref<288x2xf32, #tpu.memory_space<vmem>>, vector<256x2xf32>
    %c1_30 = arith.constant 1 : index
    %c0_31 = arith.constant 0 : index
    %35 = vector.load %arg7[%c1_30, %c0_31] : memref<9x2xf32, #tpu.memory_space<vmem>>, vector<1x2xf32>
    %36 = vector.broadcast %35 : vector<1x2xf32> to vector<256x2xf32>
    %37 = arith.mulf %34, %36 : vector<256x2xf32>
    %38 = vector.broadcast %5 : vector<256x1xf32> to vector<256x2xf32>
    %39 = arith.mulf %37, %38 : vector<256x2xf32>
    %40 = arith.addf %33, %39 : vector<256x2xf32>
    %c9 = arith.constant 9 : index
    %c0_32 = arith.constant 0 : index
    %41 = vector.load %arg11[%c9, %c0_32] : memref<288x2xf32, #tpu.memory_space<vmem>>, vector<256x2xf32>
    %c2_33 = arith.constant 2 : index
    %c0_34 = arith.constant 0 : index
    %42 = vector.load %arg7[%c2_33, %c0_34] : memref<9x2xf32, #tpu.memory_space<vmem>>, vector<1x2xf32>
    %43 = vector.broadcast %42 : vector<1x2xf32> to vector<256x2xf32>
    %44 = arith.mulf %41, %43 : vector<256x2xf32>
    %45 = vector.broadcast %6 : vector<256x1xf32> to vector<256x2xf32>
    %46 = arith.mulf %44, %45 : vector<256x2xf32>
    %47 = arith.addf %40, %46 : vector<256x2xf32>
    %c15 = arith.constant 15 : index
    %c0_35 = arith.constant 0 : index
    %48 = vector.load %arg11[%c15, %c0_35] : memref<288x2xf32, #tpu.memory_space<vmem>>, vector<256x2xf32>
    %c3_36 = arith.constant 3 : index
    %c0_37 = arith.constant 0 : index
    %49 = vector.load %arg7[%c3_36, %c0_37] : memref<9x2xf32, #tpu.memory_space<vmem>>, vector<1x2xf32>
    %50 = vector.broadcast %49 : vector<1x2xf32> to vector<256x2xf32>
    %51 = arith.mulf %48, %50 : vector<256x2xf32>
    %52 = vector.broadcast %7 : vector<256x1xf32> to vector<256x2xf32>
    %53 = arith.mulf %51, %52 : vector<256x2xf32>
    %54 = arith.addf %47, %53 : vector<256x2xf32>
    %c16_38 = arith.constant 16 : index
    %c0_39 = arith.constant 0 : index
    %55 = vector.load %arg11[%c16_38, %c0_39] : memref<288x2xf32, #tpu.memory_space<vmem>>, vector<256x2xf32>
    %c4 = arith.constant 4 : index
    %c0_40 = arith.constant 0 : index
    %56 = vector.load %arg7[%c4, %c0_40] : memref<9x2xf32, #tpu.memory_space<vmem>>, vector<1x2xf32>
    %57 = vector.broadcast %56 : vector<1x2xf32> to vector<256x2xf32>
    %58 = arith.mulf %55, %57 : vector<256x2xf32>
    %59 = arith.addf %54, %58 : vector<256x2xf32>
    %c17 = arith.constant 17 : index
    %c0_41 = arith.constant 0 : index
    %60 = vector.load %arg11[%c17, %c0_41] : memref<288x2xf32, #tpu.memory_space<vmem>>, vector<256x2xf32>
    %c5_42 = arith.constant 5 : index
    %c0_43 = arith.constant 0 : index
    %61 = vector.load %arg7[%c5_42, %c0_43] : memref<9x2xf32, #tpu.memory_space<vmem>>, vector<1x2xf32>
    %62 = vector.broadcast %61 : vector<1x2xf32> to vector<256x2xf32>
    %63 = arith.mulf %60, %62 : vector<256x2xf32>
    %64 = vector.broadcast %8 : vector<256x1xf32> to vector<256x2xf32>
    %65 = arith.mulf %63, %64 : vector<256x2xf32>
    %66 = arith.addf %59, %65 : vector<256x2xf32>
    %c23 = arith.constant 23 : index
    %c0_44 = arith.constant 0 : index
    %67 = vector.load %arg11[%c23, %c0_44] : memref<288x2xf32, #tpu.memory_space<vmem>>, vector<256x2xf32>
    %c6_45 = arith.constant 6 : index
    %c0_46 = arith.constant 0 : index
    %68 = vector.load %arg7[%c6_45, %c0_46] : memref<9x2xf32, #tpu.memory_space<vmem>>, vector<1x2xf32>
    %69 = vector.broadcast %68 : vector<1x2xf32> to vector<256x2xf32>
    %70 = arith.mulf %67, %69 : vector<256x2xf32>
    %71 = vector.broadcast %9 : vector<256x1xf32> to vector<256x2xf32>
    %72 = arith.mulf %70, %71 : vector<256x2xf32>
    %73 = arith.addf %66, %72 : vector<256x2xf32>
    %c24 = arith.constant 24 : index
    %c0_47 = arith.constant 0 : index
    %74 = vector.load %arg11[%c24, %c0_47] : memref<288x2xf32, #tpu.memory_space<vmem>>, vector<256x2xf32>
    %c7_48 = arith.constant 7 : index
    %c0_49 = arith.constant 0 : index
    %75 = vector.load %arg7[%c7_48, %c0_49] : memref<9x2xf32, #tpu.memory_space<vmem>>, vector<1x2xf32>
    %76 = vector.broadcast %75 : vector<1x2xf32> to vector<256x2xf32>
    %77 = arith.mulf %74, %76 : vector<256x2xf32>
    %78 = vector.broadcast %10 : vector<256x1xf32> to vector<256x2xf32>
    %79 = arith.mulf %77, %78 : vector<256x2xf32>
    %80 = arith.addf %73, %79 : vector<256x2xf32>
    %c25 = arith.constant 25 : index
    %c0_50 = arith.constant 0 : index
    %81 = vector.load %arg11[%c25, %c0_50] : memref<288x2xf32, #tpu.memory_space<vmem>>, vector<256x2xf32>
    %c8_51 = arith.constant 8 : index
    %c0_52 = arith.constant 0 : index
    %82 = vector.load %arg7[%c8_51, %c0_52] : memref<9x2xf32, #tpu.memory_space<vmem>>, vector<1x2xf32>
    %83 = vector.broadcast %82 : vector<1x2xf32> to vector<256x2xf32>
    %84 = arith.mulf %81, %83 : vector<256x2xf32>
    %85 = vector.broadcast %11 : vector<256x1xf32> to vector<256x2xf32>
    %86 = arith.mulf %84, %85 : vector<256x2xf32>
    %87 = arith.addf %80, %86 : vector<256x2xf32>
    %cst_53 = arith.constant dense<0.000000e+00> : vector<256xf32>
    %88 = vector.multi_reduction <add>, %87, %cst_53 [1] : vector<256x2xf32> to vector<256xf32>
    %89 = vector.shape_cast %88 : vector<256xf32> to vector<256x1xf32>
    %90 = arith.negf %89 : vector<256x1xf32>
    %91 = math.exp %90 : vector<256x1xf32>
    %cst_54 = arith.constant 1.000000e+00 : f32
    %92 = vector.broadcast %cst_54 : f32 to vector<256x1xf32>
    %93 = arith.addf %92, %91 : vector<256x1xf32>
    %94 = arith.divf %92, %93 : vector<256x1xf32>
    %95 = vector.broadcast %94 : vector<256x1xf32> to vector<256x128xf32>
    %96 = arith.mulf %19, %95 : vector<256x128xf32>
    %97 = arith.truncf %96 : vector<256x128xf32> to vector<256x128xbf16>
    %c0_55 = arith.constant 0 : index
    %c0_56 = arith.constant 0 : index
    %98 = vector.load %arg3[%c0_55, %c0_56] : memref<128x128xbf16, #tpu.memory_space<vmem>>, vector<128x128xbf16>
    %cst_57 = arith.constant dense<0.000000e+00> : vector<256x128xf32>
    %99 = tpu.matmul %97, %98, %cst_57 {dimension_numbers = #tpu.dot_dimension_numbers<[1], [0], [0], [1], [0, 0, 1, 1], [], []>} : vector<256x128xbf16>, vector<128x128xbf16>, vector<256x128xf32> -> vector<256x128xf32>
    %c0_58 = arith.constant 0 : index
    %c0_59 = arith.constant 0 : index
    %100 = vector.load %arg6[%c0_58, %c0_59] : memref<1x128xf32, #tpu.memory_space<vmem>>, vector<1x128xf32>
    %101 = vector.broadcast %100 : vector<1x128xf32> to vector<256x128xf32>
    %102 = arith.addf %99, %101 : vector<256x128xf32>
    %cst_60 = arith.constant 0.000000e+00 : f32
    %103 = vector.broadcast %cst_60 : f32 to vector<256x128xf32>
    %104 = arith.maximumf %102, %103 : vector<256x128xf32>
    %cst_61 = arith.constant dense<0.000000e+00> : vector<256xf32>
    %105 = vector.multi_reduction <add>, %104, %cst_61 [1] : vector<256x128xf32> to vector<256xf32>
    %106 = vector.shape_cast %105 : vector<256xf32> to vector<256x1xf32>
    %cst_62 = arith.constant dense<0xFF800000> : vector<256xf32>
    %107 = vector.multi_reduction <maximumf>, %104, %cst_62 [1] : vector<256x128xf32> to vector<256xf32>
    %108 = vector.shape_cast %107 : vector<256xf32> to vector<256x1xf32>
    %109 = tpu.concatenate %106, %108 in 1 : vector<256x1xf32>, vector<256x1xf32> -> vector<256x2xf32>
    %c16_63 = arith.constant 16 : index
    %c0_64 = arith.constant 0 : index
    %110 = vector.load %arg11[%c16_63, %c0_64] : memref<288x2xf32, #tpu.memory_space<vmem>>, vector<256x2xf32>
    tpu.vector_store %arg11[%c16_63, %c0_64], %109 {strides = array<i32>} : memref<288x2xf32, #tpu.memory_space<vmem>>, vector<256x2xf32>,
    %cst_65 = arith.constant 0.000000e+00 : f32
    %111 = vector.broadcast %cst_65 : f32 to vector<256x2xf32>
    %c7_66 = arith.constant 7 : index
    %c0_67 = arith.constant 0 : index
    %112 = vector.load %arg11[%c7_66, %c0_67] : memref<288x2xf32, #tpu.memory_space<vmem>>, vector<256x2xf32>
    %c0_68 = arith.constant 0 : index
    %c0_69 = arith.constant 0 : index
    %113 = vector.load %arg8[%c0_68, %c0_69] : memref<9x2xf32, #tpu.memory_space<vmem>>, vector<1x2xf32>
    %114 = vector.broadcast %113 : vector<1x2xf32> to vector<256x2xf32>
    %115 = arith.mulf %112, %114 : vector<256x2xf32>
    %116 = vector.broadcast %4 : vector<256x1xf32> to vector<256x2xf32>
    %117 = arith.mulf %115, %116 : vector<256x2xf32>
    %118 = arith.addf %111, %117 : vector<256x2xf32>
    %c8_70 = arith.constant 8 : index
    %c0_71 = arith.constant 0 : index
    %119 = vector.load %arg11[%c8_70, %c0_71] : memref<288x2xf32, #tpu.memory_space<vmem>>, vector<256x2xf32>
    %c1_72 = arith.constant 1 : index
    %c0_73 = arith.constant 0 : index
    %120 = vector.load %arg8[%c1_72, %c0_73] : memref<9x2xf32, #tpu.memory_space<vmem>>, vector<1x2xf32>
    %121 = vector.broadcast %120 : vector<1x2xf32> to vector<256x2xf32>
    %122 = arith.mulf %119, %121 : vector<256x2xf32>
    %123 = vector.broadcast %5 : vector<256x1xf32> to vector<256x2xf32>
    %124 = arith.mulf %122, %123 : vector<256x2xf32>
    %125 = arith.addf %118, %124 : vector<256x2xf32>
    %c9_74 = arith.constant 9 : index
    %c0_75 = arith.constant 0 : index
    %126 = vector.load %arg11[%c9_74, %c0_75] : memref<288x2xf32, #tpu.memory_space<vmem>>, vector<256x2xf32>
    %c2_76 = arith.constant 2 : index
    %c0_77 = arith.constant 0 : index
    %127 = vector.load %arg8[%c2_76, %c0_77] : memref<9x2xf32, #tpu.memory_space<vmem>>, vector<1x2xf32>
    %128 = vector.broadcast %127 : vector<1x2xf32> to vector<256x2xf32>
    %129 = arith.mulf %126, %128 : vector<256x2xf32>
    %130 = vector.broadcast %6 : vector<256x1xf32> to vector<256x2xf32>
    %131 = arith.mulf %129, %130 : vector<256x2xf32>
    %132 = arith.addf %125, %131 : vector<256x2xf32>
    %c15_78 = arith.constant 15 : index
    %c0_79 = arith.constant 0 : index
    %133 = vector.load %arg11[%c15_78, %c0_79] : memref<288x2xf32, #tpu.memory_space<vmem>>, vector<256x2xf32>
    %c3_80 = arith.constant 3 : index
    %c0_81 = arith.constant 0 : index
    %134 = vector.load %arg8[%c3_80, %c0_81] : memref<9x2xf32, #tpu.memory_space<vmem>>, vector<1x2xf32>
    %135 = vector.broadcast %134 : vector<1x2xf32> to vector<256x2xf32>
    %136 = arith.mulf %133, %135 : vector<256x2xf32>
    %137 = vector.broadcast %7 : vector<256x1xf32> to vector<256x2xf32>
    %138 = arith.mulf %136, %137 : vector<256x2xf32>
    %139 = arith.addf %132, %138 : vector<256x2xf32>
    %c16_82 = arith.constant 16 : index
    %c0_83 = arith.constant 0 : index
    %140 = vector.load %arg11[%c16_82, %c0_83] : memref<288x2xf32, #tpu.memory_space<vmem>>, vector<256x2xf32>
    %c4_84 = arith.constant 4 : index
    %c0_85 = arith.constant 0 : index
    %141 = vector.load %arg8[%c4_84, %c0_85] : memref<9x2xf32, #tpu.memory_space<vmem>>, vector<1x2xf32>
    %142 = vector.broadcast %141 : vector<1x2xf32> to vector<256x2xf32>
    %143 = arith.mulf %140, %142 : vector<256x2xf32>
    %144 = arith.addf %139, %143 : vector<256x2xf32>
    %c17_86 = arith.constant 17 : index
    %c0_87 = arith.constant 0 : index
    %145 = vector.load %arg11[%c17_86, %c0_87] : memref<288x2xf32, #tpu.memory_space<vmem>>, vector<256x2xf32>
    %c5_88 = arith.constant 5 : index
    %c0_89 = arith.constant 0 : index
    %146 = vector.load %arg8[%c5_88, %c0_89] : memref<9x2xf32, #tpu.memory_space<vmem>>, vector<1x2xf32>
    %147 = vector.broadcast %146 : vector<1x2xf32> to vector<256x2xf32>
    %148 = arith.mulf %145, %147 : vector<256x2xf32>
    %149 = vector.broadcast %8 : vector<256x1xf32> to vector<256x2xf32>
    %150 = arith.mulf %148, %149 : vector<256x2xf32>
    %151 = arith.addf %144, %150 : vector<256x2xf32>
    %c23_90 = arith.constant 23 : index
    %c0_91 = arith.constant 0 : index
    %152 = vector.load %arg11[%c23_90, %c0_91] : memref<288x2xf32, #tpu.memory_space<vmem>>, vector<256x2xf32>
    %c6_92 = arith.constant 6 : index
    %c0_93 = arith.constant 0 : index
    %153 = vector.load %arg8[%c6_92, %c0_93] : memref<9x2xf32, #tpu.memory_space<vmem>>, vector<1x2xf32>
    %154 = vector.broadcast %153 : vector<1x2xf32> to vector<256x2xf32>
    %155 = arith.mulf %152, %154 : vector<256x2xf32>
    %156 = vector.broadcast %9 : vector<256x1xf32> to vector<256x2xf32>
    %157 = arith.mulf %155, %156 : vector<256x2xf32>
    %158 = arith.addf %151, %157 : vector<256x2xf32>
    %c24_94 = arith.constant 24 : index
    %c0_95 = arith.constant 0 : index
    %159 = vector.load %arg11[%c24_94, %c0_95] : memref<288x2xf32, #tpu.memory_space<vmem>>, vector<256x2xf32>
    %c7_96 = arith.constant 7 : index
    %c0_97 = arith.constant 0 : index
    %160 = vector.load %arg8[%c7_96, %c0_97] : memref<9x2xf32, #tpu.memory_space<vmem>>, vector<1x2xf32>
    %161 = vector.broadcast %160 : vector<1x2xf32> to vector<256x2xf32>
    %162 = arith.mulf %159, %161 : vector<256x2xf32>
    %163 = vector.broadcast %10 : vector<256x1xf32> to vector<256x2xf32>
    %164 = arith.mulf %162, %163 : vector<256x2xf32>
    %165 = arith.addf %158, %164 : vector<256x2xf32>
    %c25_98 = arith.constant 25 : index
    %c0_99 = arith.constant 0 : index
    %166 = vector.load %arg11[%c25_98, %c0_99] : memref<288x2xf32, #tpu.memory_space<vmem>>, vector<256x2xf32>
    %c8_100 = arith.constant 8 : index
    %c0_101 = arith.constant 0 : index
    %167 = vector.load %arg8[%c8_100, %c0_101] : memref<9x2xf32, #tpu.memory_space<vmem>>, vector<1x2xf32>
    %168 = vector.broadcast %167 : vector<1x2xf32> to vector<256x2xf32>
    %169 = arith.mulf %166, %168 : vector<256x2xf32>
    %170 = vector.broadcast %11 : vector<256x1xf32> to vector<256x2xf32>
    %171 = arith.mulf %169, %170 : vector<256x2xf32>
    %172 = arith.addf %165, %171 : vector<256x2xf32>
    %cst_102 = arith.constant dense<0.000000e+00> : vector<256xf32>
    %173 = vector.multi_reduction <add>, %172, %cst_102 [1] : vector<256x2xf32> to vector<256xf32>
    %174 = vector.shape_cast %173 : vector<256xf32> to vector<256x1xf32>
    %175 = arith.negf %174 : vector<256x1xf32>
    %176 = math.exp %175 : vector<256x1xf32>
    %cst_103 = arith.constant 1.000000e+00 : f32
    %177 = vector.broadcast %cst_103 : f32 to vector<256x1xf32>
    %178 = arith.addf %177, %176 : vector<256x1xf32>
    %179 = arith.divf %177, %178 : vector<256x1xf32>
    %180 = vector.broadcast %179 : vector<256x1xf32> to vector<256x128xf32>
    %181 = arith.mulf %104, %180 : vector<256x128xf32>
    %182 = arith.truncf %181 : vector<256x128xf32> to vector<256x128xbf16>
    %c0_104 = arith.constant 0 : index
    %c0_105 = arith.constant 0 : index
    %183 = vector.load %arg4[%c0_104, %c0_105] : memref<128x128xbf16, #tpu.memory_space<vmem>>, vector<128x128xbf16>
    %cst_106 = arith.constant dense<0.000000e+00> : vector<256x128xf32>
    %184 = tpu.matmul %182, %183, %cst_106 {dimension_numbers = #tpu.dot_dimension_numbers<[1], [0], [0], [1], [0, 0, 1, 1], [], []>} : vector<256x128xbf16>, vector<128x128xbf16>, vector<256x128xf32> -> vector<256x128xf32>
    %c0_107 = arith.constant 0 : index
    %c0_108 = arith.constant 0 : index
    %185 = vector.load %arg10[%c0_107, %c0_108] : memref<256x128xf32, #tpu.memory_space<vmem>>, vector<256x128xf32>
    tpu.vector_store %arg10[%c0_107, %c0_108], %184 {strides = array<i32>} : memref<256x128xf32, #tpu.memory_space<vmem>>, vector<256x128xf32>,
    return
  }
  func.func @transform_0(%arg0: i32) -> (i32, i32) {
    %c0_i32 = arith.constant 0 : i32
    %c0_i32_0 = arith.constant 0 : i32
    return %arg0, %c0_i32 : i32, i32
  }
  func.func @transform_1(%arg0: i32) -> (i32, i32) {
    %c0_i32 = arith.constant 0 : i32
    %c0_i32_0 = arith.constant 0 : i32
    %c0_i32_1 = arith.constant 0 : i32
    return %c0_i32, %c0_i32_0 : i32, i32
  }
  func.func @transform_2(%arg0: i32) -> (i32, i32) {
    %c0_i32 = arith.constant 0 : i32
    %c0_i32_0 = arith.constant 0 : i32
    %c0_i32_1 = arith.constant 0 : i32
    return %c0_i32, %c0_i32_0 : i32, i32
  }
  func.func @transform_3(%arg0: i32) -> (i32, i32) {
    %c0_i32 = arith.constant 0 : i32
    %c0_i32_0 = arith.constant 0 : i32
    %c0_i32_1 = arith.constant 0 : i32
    return %c0_i32, %c0_i32_0 : i32, i32
  }
  func.func @transform_4(%arg0: i32) -> (i32, i32) {
    %c0_i32 = arith.constant 0 : i32
    %c0_i32_0 = arith.constant 0 : i32
    %c0_i32_1 = arith.constant 0 : i32
    return %c0_i32, %c0_i32_0 : i32, i32
  }
  func.func @transform_5(%arg0: i32) -> (i32, i32) {
    %c0_i32 = arith.constant 0 : i32
    %c0_i32_0 = arith.constant 0 : i32
    %c0_i32_1 = arith.constant 0 : i32
    return %c0_i32, %c0_i32_0 : i32, i32
  }
  func.func @transform_6(%arg0: i32) -> (i32, i32) {
    %c0_i32 = arith.constant 0 : i32
    %c0_i32_0 = arith.constant 0 : i32
    %c0_i32_1 = arith.constant 0 : i32
    return %c0_i32, %c0_i32_0 : i32, i32
  }
  func.func @transform_7(%arg0: i32) -> (i32, i32) {
    %c0_i32 = arith.constant 0 : i32
    %c0_i32_0 = arith.constant 0 : i32
    %c0_i32_1 = arith.constant 0 : i32
    return %c0_i32, %c0_i32_0 : i32, i32
  }
  func.func @transform_8(%arg0: i32) -> (i32, i32) {
    %c0_i32 = arith.constant 0 : i32
    %c0_i32_0 = arith.constant 0 : i32
    %c0_i32_1 = arith.constant 0 : i32
    return %c0_i32, %c0_i32_0 : i32, i32
  }
  func.func @transform_9(%arg0: i32) -> (i32, i32) {
    %c0_i32 = arith.constant 0 : i32
    %c0_i32_0 = arith.constant 0 : i32
    return %arg0, %c0_i32 : i32, i32
  }
}

</mosaic_0001>

<llo_original>
// kernel: tpu_custom_call.1
$region0: #{tpu_custom_call.1}
  #allocation0 [shape = 'u32[]', space=smem, size = 0x4, offset = 0x4, fixed_abs, tag = 'smem constant byte address 0x4 - core index']
  #allocation1 [shape = 'u32[144,128]{1,0:T(1,128)}', space=vmem, size = 0x12000, scoped, tag = 'internal scratch']
  #allocation2 [shape = 'f32[288,2]{1,0:T(8,128)}', space=vmem, size = 0x24000, scoped, tag = 'scratch operand']
  %s0 = inlined_call_operand.vmem [shape: bf16[512,128], index: 0, kind: input, shape index: {}]
  %s1 = inlined_call_operand.vmem [shape: bf16[128,128], index: 1, kind: input, shape index: {}]
  %s2 = inlined_call_operand.hbm [shape: bf16[128,128], index: 2, kind: input, shape index: {}]
  %s3 = inlined_call_operand.hbm [shape: bf16[128,128], index: 3, kind: input, shape index: {}]
  %s4 = inlined_call_operand.hbm [shape: f32[1,128], index: 4, kind: input, shape index: {}]
  %s5 = inlined_call_operand.hbm [shape: f32[1,128], index: 5, kind: input, shape index: {}]
  %s6 = inlined_call_operand.vmem [shape: f32[9,2], index: 6, kind: input, shape index: {}]
  %s7 = inlined_call_operand.vmem [shape: f32[9,2], index: 7, kind: input, shape index: {}]
  %s8 = inlined_call_operand.vmem [shape: f32[256,9], index: 8, kind: input, shape index: {}]
  %s9 = inlined_call_operand.hbm [shape: f32[512,128], index: 9, kind: output, shape index: {}]
  %s10 = sld [smem:[#allocation0]]
  $region85: #{tpu_custom_call.1} parent=0
    _
  %s12 = ssub.s32 1, %s10
  %s13 = scalar_select 0, %s12, %s10
  $region1: #{tpu_custom_call.1} parent=0
    #allocation3 [shape = 'u8[32768]{0}', space=vmem, size = 0x8000, scoped, tag = 'input window, operand 2, single buffered']
    #allocation4 [shape = 's32[2]{0}', space=sflag, size = 0x8, scoped, tag = 'scoped memory for tpu_custom_call.1']
    #allocation5 [shape = 's32[2]{0}', space=sflag, size = 0x8, scoped, tag = 'scoped memory for tpu_custom_call.1']
    #allocation6 [shape = 'u8[32768]{0}', space=vmem, size = 0x8000, scoped, tag = 'input window, operand 3, single buffered']
    #allocation7 [shape = 's32[1]{0}', space=sflag, size = 0x4, scoped, tag = 'scoped memory for tpu_custom_call.1']
    #allocation8 [shape = 'u8[512]{0}', space=vmem, size = 0x400, scoped, tag = 'input window, operand 4, single buffered']
    #allocation9 [shape = 'u8[512]{0}', space=vmem, size = 0x400, scoped, tag = 'input window, operand 5, single buffered']
    #allocation10 [shape = 's32[1]{0}', space=sflag, size = 0x4, scoped, tag = 'scoped memory for tpu_custom_call.1']
    #allocation11 [shape = 'u8[262144]{0}', space=vmem, size = 0x40000, scoped, tag = 'output window, operand 0']
    %14 = vsyncpa [#allocation4], 0
    %15 = vsyncpa [#allocation7], 0
    %16 = vsyncpa [#allocation10], 0
    %17 = vsyncpa [#allocation5], 0
    %s18 = scalar_lea.sflag [#allocation5], 1
    %19 = vsyncpa %s18, 0
    loop: start=0, step=1, limit=4
    $region2: #{tpu_custom_call.1} parent=1 // loop_pre_header
      _
    $region3: #{tpu_custom_call.1} parent=1 // loop_header
      %s21 = sphi 0, %s25
      %p22 = scmp.ge.s32.totalorder %s21, 4
      %s31 = sphi 0, %s33
      %s34 = sphi 0, %s31
      %s35 = sphi 0, %s34
      %s51 = sphi 0, %s35
      %s55 = sphi 0, %s55
      %s57 = sphi 0, %s55
      %s58 = sphi 0, %s57
      %s72 = sphi 0, %s58
      %s76 = sphi 0, %s76
      %s78 = sphi 0, %s76
      %s79 = sphi 0, %s78
      %s93 = sphi 0, %s79
      %s97 = sphi 0, %s97
      %s99 = sphi 0, %s97
      %s100 = sphi 0, %s99
      %s114 = sphi 0, %s100
      %s118 = sphi 0, %s118
      %s120 = sphi 0, %s118
      %s121 = sphi 0, %s120
      %s135 = sphi 0, %s121
      %s139 = sphi 0, %s139
      %s141 = sphi 0, %s139
      %s142 = sphi 0, %s141
      %s156 = sphi 0, %s142
      %s160 = sphi 0, %s160
      %s162 = sphi 0, %s160
      %s163 = sphi 0, %s162
      %s177 = sphi 0, %s163
      %s181 = sphi 0, %s181
      %s183 = sphi 0, %s181
      %s184 = sphi 0, %s183
      %s198 = sphi 0, %s184
      %s202 = sphi 0, %s202
      %s204 = sphi 0, %s202
      %s205 = sphi 0, %s204
      %s219 = sphi 0, %s205
      %s225 = sphi 0, %s227
      %s228 = sphi 0, %s225
      %s229 = sphi 0, %s228
      %s245 = sphi 0, %s229
    $region4: #{tpu_custom_call.1} parent=1 // loop_header_branch
      %24 = sbr.rel (%p22) target = $region8
    $region5: #{tpu_custom_call.1} parent=1 // loop_body
      %s26 = ssub.s32 %s21, 1
      %s27 = ssub.s32 %s21, 2
      %s28 = sadd.s32 %s21, 1
      %s29 = ssub.s32 %s21, %s28
      %p30 = scmp.eq.s32.totalorder %s29, 0
      %s32 = sadd.s32 %s31, 1
      %s33 = scalar_select %p30, %s31, %s32
      %p36 = pneg %p30
      %p37 = scmp.eq.s32.totalorder %s21, 1
      %p38 = por %p36, %p37
      %p39 = scmp.ne.s32.totalorder %s31, %s34
      %p40 = scmp.eq.s32.totalorder %s21, 0
      %p41 = por %p39, %p40
      %p42 = scmp.ne.s32.totalorder %s31, %s34
      %p43 = scmp.eq.s32.totalorder %s26, 1
      %p44 = por %p42, %p43
      %p45 = scmp.ne.s32.totalorder %s34, %s35
      %p46 = scmp.eq.s32.totalorder %s26, 0
      %p47 = por %p45, %p46
      %p48 = scmp.ne.s32.totalorder %s34, %s35
      %p49 = scmp.eq.s32.totalorder %s27, 1
      %p50 = por %p48, %p49
      %p52 = scmp.ne.s32.totalorder %s35, %s51
      %p53 = scmp.eq.s32.totalorder %s27, 0
      %p54 = por %p52, %p53
      %s56 = sadd.s32 %s55, 1
      %p59 = scmp.eq.s32.totalorder %s21, 1
      %p60 = scmp.ne.s32.totalorder %s55, %s57
      %p61 = scmp.eq.s32.totalorder %s21, 0
      %p62 = por %p60, %p61
      %p63 = scmp.ne.s32.totalorder %s55, %s57
      %p64 = scmp.eq.s32.totalorder %s26, 1
      %p65 = por %p63, %p64
      %p66 = scmp.ne.s32.totalorder %s57, %s58
      %p67 = scmp.eq.s32.totalorder %s26, 0
      %p68 = por %p66, %p67
      %p69 = scmp.ne.s32.totalorder %s57, %s58
      %p70 = scmp.eq.s32.totalorder %s27, 1
      %p71 = por %p69, %p70
      %p73 = scmp.ne.s32.totalorder %s58, %s72
      %p74 = scmp.eq.s32.totalorder %s27, 0
      %p75 = por %p73, %p74
      %s77 = sadd.s32 %s76, 1
      %p80 = scmp.eq.s32.totalorder %s21, 1
      %p81 = scmp.ne.s32.totalorder %s76, %s78
      %p82 = scmp.eq.s32.totalorder %s21, 0
      %p83 = por %p81, %p82
      %p84 = scmp.ne.s32.totalorder %s76, %s78
      %p85 = scmp.eq.s32.totalorder %s26, 1
      %p86 = por %p84, %p85
      %p87 = scmp.ne.s32.totalorder %s78, %s79
      %p88 = scmp.eq.s32.totalorder %s26, 0
      %p89 = por %p87, %p88
      %p90 = scmp.ne.s32.totalorder %s78, %s79
      %p91 = scmp.eq.s32.totalorder %s27, 1
      %p92 = por %p90, %p91
      %p94 = scmp.ne.s32.totalorder %s79, %s93
      %p95 = scmp.eq.s32.totalorder %s27, 0
      %p96 = por %p94, %p95
      %s98 = sadd.s32 %s97, 1
      %p101 = scmp.eq.s32.totalorder %s21, 1
      %p102 = scmp.ne.s32.totalorder %s97, %s99
      %p103 = scmp.eq.s32.totalorder %s21, 0
      %p104 = por %p102, %p103
      %p105 = scmp.ne.s32.totalorder %s97, %s99
      %p106 = scmp.eq.s32.totalorder %s26, 1
      %p107 = por %p105, %p106
      %p108 = scmp.ne.s32.totalorder %s99, %s100
      %p109 = scmp.eq.s32.totalorder %s26, 0
      %p110 = por %p108, %p109
      %p111 = scmp.ne.s32.totalorder %s99, %s100
      %p112 = scmp.eq.s32.totalorder %s27, 1
      %p113 = por %p111, %p112
      %p115 = scmp.ne.s32.totalorder %s100, %s114
      %p116 = scmp.eq.s32.totalorder %s27, 0
      %p117 = por %p115, %p116
      %s119 = sadd.s32 %s118, 1
      %p122 = scmp.eq.s32.totalorder %s21, 1
      %p123 = scmp.ne.s32.totalorder %s118, %s120
      %p124 = scmp.eq.s32.totalorder %s21, 0
      %p125 = por %p123, %p124
      %p126 = scmp.ne.s32.totalorder %s118, %s120
      %p127 = scmp.eq.s32.totalorder %s26, 1
      %p128 = por %p126, %p127
      %p129 = scmp.ne.s32.totalorder %s120, %s121
      %p130 = scmp.eq.s32.totalorder %s26, 0
      %p131 = por %p129, %p130
      %p132 = scmp.ne.s32.totalorder %s120, %s121
      %p133 = scmp.eq.s32.totalorder %s27, 1
      %p134 = por %p132, %p133
      %p136 = scmp.ne.s32.totalorder %s121, %s135
      %p137 = scmp.eq.s32.totalorder %s27, 0
      %p138 = por %p136, %p137
      %s140 = sadd.s32 %s139, 1
      %p143 = scmp.eq.s32.totalorder %s21, 1
      %p144 = scmp.ne.s32.totalorder %s139, %s141
      %p145 = scmp.eq.s32.totalorder %s21, 0
      %p146 = por %p144, %p145
      %p147 = scmp.ne.s32.totalorder %s139, %s141
      %p148 = scmp.eq.s32.totalorder %s26, 1
      %p149 = por %p147, %p148
      %p150 = scmp.ne.s32.totalorder %s141, %s142
      %p151 = scmp.eq.s32.totalorder %s26, 0
      %p152 = por %p150, %p151
      %p153 = scmp.ne.s32.totalorder %s141, %s142
      %p154 = scmp.eq.s32.totalorder %s27, 1
      %p155 = por %p153, %p154
      %p157 = scmp.ne.s32.totalorder %s142, %s156
      %p158 = scmp.eq.s32.totalorder %s27, 0
      %p159 = por %p157, %p158
      %s161 = sadd.s32 %s160, 1
      %p164 = scmp.eq.s32.totalorder %s21, 1
      %p165 = scmp.ne.s32.totalorder %s160, %s162
      %p166 = scmp.eq.s32.totalorder %s21, 0
      %p167 = por %p165, %p166
      %p168 = scmp.ne.s32.totalorder %s160, %s162
      %p169 = scmp.eq.s32.totalorder %s26, 1
      %p170 = por %p168, %p169
      %p171 = scmp.ne.s32.totalorder %s162, %s163
      %p172 = scmp.eq.s32.totalorder %s26, 0
      %p173 = por %p171, %p172
      %p174 = scmp.ne.s32.totalorder %s162, %s163
      %p175 = scmp.eq.s32.totalorder %s27, 1
      %p176 = por %p174, %p175
      %p178 = scmp.ne.s32.totalorder %s163, %s177
      %p179 = scmp.eq.s32.totalorder %s27, 0
      %p180 = por %p178, %p179
      %s182 = sadd.s32 %s181, 1
      %p185 = scmp.eq.s32.totalorder %s21, 1
      %p186 = scmp.ne.s32.totalorder %s181, %s183
      %p187 = scmp.eq.s32.totalorder %s21, 0
      %p188 = por %p186, %p187
      %p189 = scmp.ne.s32.totalorder %s181, %s183
      %p190 = scmp.eq.s32.totalorder %s26, 1
      %p191 = por %p189, %p190
      %p192 = scmp.ne.s32.totalorder %s183, %s184
      %p193 = scmp.eq.s32.totalorder %s26, 0
      %p194 = por %p192, %p193
      %p195 = scmp.ne.s32.totalorder %s183, %s184
      %p196 = scmp.eq.s32.totalorder %s27, 1
      %p197 = por %p195, %p196
      %p199 = scmp.ne.s32.totalorder %s184, %s198
      %p200 = scmp.eq.s32.totalorder %s27, 0
      %p201 = por %p199, %p200
      %s203 = sadd.s32 %s202, 1
      %p206 = scmp.eq.s32.totalorder %s21, 1
      %p207 = scmp.ne.s32.totalorder %s202, %s204
      %p208 = scmp.eq.s32.totalorder %s21, 0
      %p209 = por %p207, %p208
      %p210 = scmp.ne.s32.totalorder %s202, %s204
      %p211 = scmp.eq.s32.totalorder %s26, 1
      %p212 = por %p210, %p211
      %p213 = scmp.ne.s32.totalorder %s204, %s205
      %p214 = scmp.eq.s32.totalorder %s26, 0
      %p215 = por %p213, %p214
      %p216 = scmp.ne.s32.totalorder %s204, %s205
      %p217 = scmp.eq.s32.totalorder %s27, 1
      %p218 = por %p216, %p217
      %p220 = scmp.ne.s32.totalorder %s205, %s219
      %p221 = scmp.eq.s32.totalorder %s27, 0
      %p222 = por %p220, %p221
      %s223 = ssub.s32 %s21, %s28
      %p224 = scmp.eq.s32.totalorder %s223, 0
      %s226 = sadd.s32 %s225, 1
      %s227 = scalar_select %p224, %s225, %s226
      %p230 = pneg %p224
      %p231 = scmp.eq.s32.totalorder %s21, 1
      %p232 = por %p230, %p231
      %p233 = scmp.ne.s32.totalorder %s225, %s228
      %p234 = scmp.eq.s32.totalorder %s21, 0
      %p235 = por %p233, %p234
      %p236 = scmp.ne.s32.totalorder %s225, %s228
      %p237 = scmp.eq.s32.totalorder %s26, 1
      %p238 = por %p236, %p237
      %p239 = scmp.ne.s32.totalorder %s228, %s229
      %p240 = scmp.eq.s32.totalorder %s26, 0
      %p241 = por %p239, %p240
      %p242 = scmp.ne.s32.totalorder %s228, %s229
      %p243 = scmp.eq.s32.totalorder %s27, 1
      %p244 = por %p242, %p243
      %p246 = scmp.ne.s32.totalorder %s229, %s245
      %p247 = scmp.eq.s32.totalorder %s27, 0
      %p248 = por %p246, %p247
      %p249 = scmp.le.s32.totalorder 1, %s21
      %p250 = scmp.lt.s32.totalorder %s21, 3
      %p251 = pnand %p249, %p250
      %p252 = pneg %p251
      // Predicated region
      $region9: #{tpu_custom_call.1} parent=5 // pred_check
        _
      $region10: #{tpu_custom_call.1} parent=5 // pred_check_branch
        %254 = sbr.rel (%p251) target = $region12
      $region11: #{tpu_custom_call.1} parent=5 // pred_region
        %s255 = ssub.s32 %s21, 1
        // Predicated region
        $region13: #{tpu_custom_call.1} parent=11 // pred_check
          %p256 = pneg %p68
        $region14: #{tpu_custom_call.1} parent=11 // pred_check_branch
          %258 = sbr.rel (%p256) target = $region16
        $region15: #{tpu_custom_call.1} parent=11 // pred_region
          _
        $region16: #{tpu_custom_call.1} parent=11 // pred_fallthru
          _
        // Predicated region
        $region17: #{tpu_custom_call.1} parent=11 // pred_check
          %p259 = pneg %p89
        $region18: #{tpu_custom_call.1} parent=11 // pred_check_branch
          %261 = sbr.rel (%p259) target = $region20
        $region19: #{tpu_custom_call.1} parent=11 // pred_region
          %s263 = ssub.s32 1024, 1024
          %264 = vsyncadd [#allocation4], %s263
          %s265 = sshll.u32 [#allocation3], 4
          %s266 = int_to_ptr.vmem [resolvable:$true] %s265
          %271 = dma.hbm_to_vmem [thread:$0]  %s2, 1024, %s266, [#allocation4], 64, 64, 4
        $region20: #{tpu_custom_call.1} parent=11 // pred_fallthru
          _
        // Predicated region
        $region21: #{tpu_custom_call.1} parent=11 // pred_check
          %p272 = pneg %p110
        $region22: #{tpu_custom_call.1} parent=11 // pred_check_branch
          %274 = sbr.rel (%p272) target = $region24
        $region23: #{tpu_custom_call.1} parent=11 // pred_region
          %s276 = ssub.s32 1024, 1024
          %277 = vsyncadd [#allocation7], %s276
          %s278 = sshll.u32 [#allocation6], 4
          %s279 = int_to_ptr.vmem [resolvable:$true] %s278
          %284 = dma.hbm_to_vmem [thread:$0]  %s3, 1024, %s279, [#allocation7], 64, 64, 4
        $region24: #{tpu_custom_call.1} parent=11 // pred_fallthru
          _
        // Predicated region
        $region25: #{tpu_custom_call.1} parent=11 // pred_check
          %p285 = pneg %p131
        $region26: #{tpu_custom_call.1} parent=11 // pred_check_branch
          %287 = sbr.rel (%p285) target = $region28
        $region27: #{tpu_custom_call.1} parent=11 // pred_region
          %s289 = ssub.s32 16, 16
          %290 = vsyncadd [#allocation7], %s289
          %s292 = sshll.u32 [#allocation8], 4
          %s293 = int_to_ptr.vmem [resolvable:$true] %s292
          %295 = dma.hbm_to_vmem [thread:$0]  %s4, 16, %s293, [#allocation7]
        $region28: #{tpu_custom_call.1} parent=11 // pred_fallthru
          _
        // Predicated region
        $region29: #{tpu_custom_call.1} parent=11 // pred_check
          %p296 = pneg %p152
        $region30: #{tpu_custom_call.1} parent=11 // pred_check_branch
          %298 = sbr.rel (%p296) target = $region32
        $region31: #{tpu_custom_call.1} parent=11 // pred_region
          %s300 = ssub.s32 16, 16
          %301 = vsyncadd [#allocation10], %s300
          %s303 = sshll.u32 [#allocation9], 4
          %s304 = int_to_ptr.vmem [resolvable:$true] %s303
          %306 = dma.hbm_to_vmem [thread:$0]  %s5, 16, %s304, [#allocation10]
        $region32: #{tpu_custom_call.1} parent=11 // pred_fallthru
          _
        // Predicated region
        $region33: #{tpu_custom_call.1} parent=11 // pred_check
          %p307 = pneg %p173
        $region34: #{tpu_custom_call.1} parent=11 // pred_check_branch
          %309 = sbr.rel (%p307) target = $region36
        $region35: #{tpu_custom_call.1} parent=11 // pred_region
          _
        $region36: #{tpu_custom_call.1} parent=11 // pred_fallthru
          _
        // Predicated region
        $region37: #{tpu_custom_call.1} parent=11 // pred_check
          %p310 = pneg %p194
        $region38: #{tpu_custom_call.1} parent=11 // pred_check_branch
          %312 = sbr.rel (%p310) target = $region40
        $region39: #{tpu_custom_call.1} parent=11 // pred_region
          _
        $region40: #{tpu_custom_call.1} parent=11 // pred_fallthru
          _
        // Predicated region
        $region41: #{tpu_custom_call.1} parent=11 // pred_check
          %p313 = pneg %p215
        $region42: #{tpu_custom_call.1} parent=11 // pred_check_branch
          %315 = sbr.rel (%p313) target = $region44
        $region43: #{tpu_custom_call.1} parent=11 // pred_region
          _
        $region44: #{tpu_custom_call.1} parent=11 // pred_fallthru
          _
      $region12: #{tpu_custom_call.1} parent=5 // pred_fallthru
        _
      %p316 = scmp.lt.s32.totalorder %s21, 2
      // Predicated region
      $region45: #{tpu_custom_call.1} parent=5 // pred_check
        %p317 = pneg %p316
      $region46: #{tpu_custom_call.1} parent=5 // pred_check_branch
        %319 = sbr.rel (%p317) target = $region48
      $region47: #{tpu_custom_call.1} parent=5 // pred_region
        // Predicated region
        $region49: #{tpu_custom_call.1} parent=47 // pred_check
          %p320 = pneg %p41
        $region50: #{tpu_custom_call.1} parent=47 // pred_check_branch
          %322 = sbr.rel (%p320) target = $region52
        $region51: #{tpu_custom_call.1} parent=47 // pred_region
          %s323 = smul.u32 32, %s21
          %p324 = scmp.lt.s32.totalorder %s323, 63
          %s325 = scalar_select %p324, %s323, 63
          %s326 = smul.addr %s325, 4
          %s327 = scalar_lea.vmem %s0, %s326
          %s328 = smul.u32 32, %s21
        $region52: #{tpu_custom_call.1} parent=47 // pred_fallthru
          _
      $region48: #{tpu_custom_call.1} parent=5 // pred_fallthru
        _
      %p329 = scmp.le.s32.totalorder 1, %s21
      %p330 = scmp.lt.s32.totalorder %s21, 3
      %p331 = pnand %p329, %p330
      %p332 = pneg %p331
      // Predicated region
      $region53: #{tpu_custom_call.1} parent=5 // pred_check
        _
      $region54: #{tpu_custom_call.1} parent=5 // pred_check_branch
        %334 = sbr.rel (%p331) target = $region56
      $region55: #{tpu_custom_call.1} parent=5 // pred_region
        %s335 = ssub.s32 %s21, 1
        // Predicated region
        $region57: #{tpu_custom_call.1} parent=55 // pred_check
          %p336 = pneg %p89
        $region58: #{tpu_custom_call.1} parent=55 // pred_check_branch
          %338 = sbr.rel (%p336) target = $region60
        $region59: #{tpu_custom_call.1} parent=55 // pred_region
          %339 = dma.done [#allocation4], 1024
        $region60: #{tpu_custom_call.1} parent=55 // pred_fallthru
          _
        // Predicated region
        $region61: #{tpu_custom_call.1} parent=55 // pred_check
          %p340 = pneg %p110
        $region62: #{tpu_custom_call.1} parent=55 // pred_check_branch
          %342 = sbr.rel (%p340) target = $region64
        $region63: #{tpu_custom_call.1} parent=55 // pred_region
          %343 = dma.done [#allocation7], 1024
        $region64: #{tpu_custom_call.1} parent=55 // pred_fallthru
          _
        // Predicated region
        $region65: #{tpu_custom_call.1} parent=55 // pred_check
          %p344 = pneg %p131
        $region66: #{tpu_custom_call.1} parent=55 // pred_check_branch
          %346 = sbr.rel (%p344) target = $region68
        $region67: #{tpu_custom_call.1} parent=55 // pred_region
          %347 = dma.done [#allocation7], 16
        $region68: #{tpu_custom_call.1} parent=55 // pred_fallthru
          _
        // Predicated region
        $region69: #{tpu_custom_call.1} parent=55 // pred_check
          %p348 = pneg %p152
        $region70: #{tpu_custom_call.1} parent=55 // pred_check_branch
          %350 = sbr.rel (%p348) target = $region72
        $region71: #{tpu_custom_call.1} parent=55 // pred_region
          %351 = dma.done [#allocation10], 16
        $region72: #{tpu_custom_call.1} parent=55 // pred_fallthru
          _
        %s352 = smul.u32 32, %s26
        %p353 = scmp.lt.s32.totalorder %s352, 63
        %s354 = scalar_select %p353, %s352, 63
        %s355 = smul.addr %s354, 4
        %s356 = scalar_lea.vmem %s0, %s355
        %p357 = pneg %p47
        %p358 = pneg %p44
        %p359 = pneg %p68
        %p360 = pneg %p65
        %p361 = pneg %p89
        %p362 = pneg %p86
        %p363 = pneg %p110
        %p364 = pneg %p107
        %p365 = pneg %p131
        %p366 = pneg %p128
        %p367 = pneg %p152
        %p368 = pneg %p149
        %p369 = pneg %p173
        %p370 = pneg %p170
        %p371 = pneg %p194
        %p372 = pneg %p191
        %p373 = pneg %p215
        %p374 = pneg %p212
        %p375 = pneg %p241
        %p376 = pneg %p238
        %s377 = sand.u32 %s228, 1
        %s378 = scalar_lea.sflag [#allocation5], %s377
        %s379 = sand.u32 %s228, 1
        %s380 = smul.addr %s379, 256
        %s381 = scalar_lea.vmem [#allocation11], %s380
        %s382 = smul.u32 32, %s26
        %p383 = scmp.lt.s32.totalorder %s382, 63
        %s384 = scalar_select %p383, %s382, 63
        %s385 = smul.addr %s384, 4
        %s386 = scalar_lea.vmem %s0, %s385
        %s387 = smul.u32 32, %s26
        %s388 = smul.u32 32, %s26
        %vm390 = vcmask 15360
        %391 = vst.msk [vmem:[#allocation2] sm:$0xff] %vm390, 0.0
        %392 = vst.msk [vmem:[#allocation2 + $0x8] sm:$0xff] %vm390, 0.0
        %393 = vst.msk [vmem:[#allocation2 + $0x110] sm:$0xff] %vm390, 0.0
        %394 = vst.msk [vmem:[#allocation2 + $0x118] sm:$0xff] %vm390, 0.0
        %v395 = vld [vmem:[%s8] sm:$0xff]
        %v396 = vld [vmem:[%s8 + $0x8] sm:$0xff]
        %v397 = vld [vmem:[%s8 + $0x10] sm:$0xff]
        %v398 = vld [vmem:[%s8 + $0x18] sm:$0xff]
        %v399 = vld [vmem:[%s8 + $0x20] sm:$0xff]
        %v400 = vld [vmem:[%s8 + $0x28] sm:$0xff]
        %v401 = vld [vmem:[%s8 + $0x30] sm:$0xff]
        %v402 = vld [vmem:[%s8 + $0x38] sm:$0xff]
        %v403 = vld [vmem:[%s8 + $0x40] sm:$0xff]
        %v404 = vld [vmem:[%s8 + $0x48] sm:$0xff]
        %v405 = vld [vmem:[%s8 + $0x50] sm:$0xff]
        %v406 = vld [vmem:[%s8 + $0x58] sm:$0xff]
        %v407 = vld [vmem:[%s8 + $0x60] sm:$0xff]
        %v408 = vld [vmem:[%s8 + $0x68] sm:$0xff]
        %v409 = vld [vmem:[%s8 + $0x70] sm:$0xff]
        %v410 = vld [vmem:[%s8 + $0x78] sm:$0xff]
        %v411 = vld [vmem:[%s8 + $0x80] sm:$0xff]
        %v412 = vld [vmem:[%s8 + $0x88] sm:$0xff]
        %v413 = vld [vmem:[%s8 + $0x90] sm:$0xff]
        %v414 = vld [vmem:[%s8 + $0x98] sm:$0xff]
        %v415 = vld [vmem:[%s8 + $0xa0] sm:$0xff]
        %v416 = vld [vmem:[%s8 + $0xa8] sm:$0xff]
        %v417 = vld [vmem:[%s8 + $0xb0] sm:$0xff]
        %v418 = vld [vmem:[%s8 + $0xb8] sm:$0xff]
        %v419 = vld [vmem:[%s8 + $0xc0] sm:$0xff]
        %v420 = vld [vmem:[%s8 + $0xc8] sm:$0xff]
        %v421 = vld [vmem:[%s8 + $0xd0] sm:$0xff]
        %v422 = vld [vmem:[%s8 + $0xd8] sm:$0xff]
        %v423 = vld [vmem:[%s8 + $0xe0] sm:$0xff]
        %v424 = vld [vmem:[%s8 + $0xe8] sm:$0xff]
        %v425 = vld [vmem:[%s8 + $0xf0] sm:$0xff]
        %v426 = vld [vmem:[%s8 + $0xf8] sm:$0xff]
        %v427 = vld [vmem:[%s386] sm:$0xf]
        %v428 = vld [vmem:[%s386 + $0x4] sm:$0xf]
        %v429 = vld [vmem:[%s386 + $0x8] sm:$0xf]
        %v430 = vld [vmem:[%s386 + $0xc] sm:$0xf]
        %v431 = vld [vmem:[%s386 + $0x10] sm:$0xf]
        %v432 = vld [vmem:[%s386 + $0x14] sm:$0xf]
        %v433 = vld [vmem:[%s386 + $0x18] sm:$0xf]
        %v434 = vld [vmem:[%s386 + $0x1c] sm:$0xf]
        %v435 = vld [vmem:[%s386 + $0x20] sm:$0xf]
        %v436 = vld [vmem:[%s386 + $0x24] sm:$0xf]
        %v437 = vld [vmem:[%s386 + $0x28] sm:$0xf]
        %v438 = vld [vmem:[%s386 + $0x2c] sm:$0xf]
        %v439 = vld [vmem:[%s386 + $0x30] sm:$0xf]
        %v440 = vld [vmem:[%s386 + $0x34] sm:$0xf]
        %v441 = vld [vmem:[%s386 + $0x38] sm:$0xf]
        %v442 = vld [vmem:[%s386 + $0x3c] sm:$0xf]
        %v443 = vld [vmem:[%s386 + $0x40] sm:$0xf]
        %v444 = vld [vmem:[%s386 + $0x44] sm:$0xf]
        %v445 = vld [vmem:[%s386 + $0x48] sm:$0xf]
        %v446 = vld [vmem:[%s386 + $0x4c] sm:$0xf]
        %v447 = vld [vmem:[%s386 + $0x50] sm:$0xf]
        %v448 = vld [vmem:[%s386 + $0x54] sm:$0xf]
        %v449 = vld [vmem:[%s386 + $0x58] sm:$0xf]
        %v450 = vld [vmem:[%s386 + $0x5c] sm:$0xf]
        %v451 = vld [vmem:[%s386 + $0x60] sm:$0xf]
        %v452 = vld [vmem:[%s386 + $0x64] sm:$0xf]
        %v453 = vld [vmem:[%s386 + $0x68] sm:$0xf]
        %v454 = vld [vmem:[%s386 + $0x6c] sm:$0xf]
        %v455 = vld [vmem:[%s386 + $0x70] sm:$0xf]
        %v456 = vld [vmem:[%s386 + $0x74] sm:$0xf]
        %v457 = vld [vmem:[%s386 + $0x78] sm:$0xf]
        %v458 = vld [vmem:[%s386 + $0x7c] sm:$0xf]
        %v459 = vld [vmem:[%s1] sm:$0xf]
        %v460 = vld [vmem:[%s1 + $0x4] sm:$0xf]
        %v461 = vld [vmem:[%s1 + $0x8] sm:$0xf]
        %v462 = vld [vmem:[%s1 + $0xc] sm:$0xf]
        %v463 = vld [vmem:[%s1 + $0x10] sm:$0xf]
        %v464 = vld [vmem:[%s1 + $0x14] sm:$0xf]
        %v465 = vld [vmem:[%s1 + $0x18] sm:$0xf]
        %v466 = vld [vmem:[%s1 + $0x1c] sm:$0xf]
        %v467 = vld [vmem:[%s1 + $0x20] sm:$0xf]
        %v468 = vld [vmem:[%s1 + $0x24] sm:$0xf]
        %v469 = vld [vmem:[%s1 + $0x28] sm:$0xf]
        %v470 = vld [vmem:[%s1 + $0x2c] sm:$0xf]
        %v471 = vld [vmem:[%s1 + $0x30] sm:$0xf]
        %v472 = vld [vmem:[%s1 + $0x34] sm:$0xf]
        %v473 = vld [vmem:[%s1 + $0x38] sm:$0xf]
        %v474 = vld [vmem:[%s1 + $0x3c] sm:$0xf]
        %v475 = vld [vmem:[#allocation8] sm:$0x1]
        %v477 = vlaneseq
        %v478 = vshrl.u32 %v477, 7
        %v479 = vsub.s32 0, %v478
        %v480 = vrot.slane %v475, %v479
        %v514 = vunpack.c.l.b16 %v427
        %v515 = vunpack.c.l.b16 %v428
        %v516 = vunpack.c.l.b16 %v429
        %v517 = vunpack.c.l.b16 %v430
        %v518 = vunpack.c.l.b16 %v431
        %v519 = vunpack.c.l.b16 %v432
        %v520 = vunpack.c.l.b16 %v433
        %v521 = vunpack.c.l.b16 %v434
        %v522 = vunpack.c.l.b16 %v435
        %v523 = vunpack.c.l.b16 %v436
        %v524 = vunpack.c.l.b16 %v437
        %v525 = vunpack.c.l.b16 %v438
        %v526 = vunpack.c.l.b16 %v439
        %v527 = vunpack.c.l.b16 %v440
        %v528 = vunpack.c.l.b16 %v441
        %v529 = vunpack.c.l.b16 %v442
        %v530 = vunpack.c.l.b16 %v443
        %v531 = vunpack.c.l.b16 %v444
        %v532 = vunpack.c.l.b16 %v445
        %v533 = vunpack.c.l.b16 %v446
        %v534 = vunpack.c.l.b16 %v447
        %v535 = vunpack.c.l.b16 %v448
        %v536 = vunpack.c.l.b16 %v449
        %v537 = vunpack.c.l.b16 %v450
        %v538 = vunpack.c.l.b16 %v451
        %v539 = vunpack.c.l.b16 %v452
        %v540 = vunpack.c.l.b16 %v453
        %v541 = vunpack.c.l.b16 %v454
        %v542 = vunpack.c.l.b16 %v455
        %v543 = vunpack.c.l.b16 %v456
        %v544 = vunpack.c.l.b16 %v457
        %v545 = vunpack.c.l.b16 %v458
        %v546 = vpack.c.b16 %v515, %v514
        %v547 = vpack.c.b16 %v517, %v516
        %v548 = vpack.c.b16 %v519, %v518
        %v549 = vpack.c.b16 %v521, %v520
        %v550 = vpack.c.b16 %v523, %v522
        %v551 = vpack.c.b16 %v525, %v524
        %v552 = vpack.c.b16 %v527, %v526
        %v553 = vpack.c.b16 %v529, %v528
        %v554 = vpack.c.b16 %v531, %v530
        %v555 = vpack.c.b16 %v533, %v532
        %v556 = vpack.c.b16 %v535, %v534
        %v557 = vpack.c.b16 %v537, %v536
        %v558 = vpack.c.b16 %v539, %v538
        %v559 = vpack.c.b16 %v541, %v540
        %v560 = vpack.c.b16 %v543, %v542
        %v561 = vpack.c.b16 %v545, %v544
        %v594 = vunpack.c.l.b16 %v459
        %v595 = vunpack.c.l.b16 %v460
        %v596 = vunpack.c.l.b16 %v461
        %v597 = vunpack.c.l.b16 %v462
        %v598 = vunpack.c.l.b16 %v463
        %v599 = vunpack.c.l.b16 %v464
        %v600 = vunpack.c.l.b16 %v465
        %v601 = vunpack.c.l.b16 %v466
        %v602 = vunpack.c.l.b16 %v467
        %v603 = vunpack.c.l.b16 %v468
        %v604 = vunpack.c.l.b16 %v469
        %v605 = vunpack.c.l.b16 %v470
        %v606 = vunpack.c.l.b16 %v471
        %v607 = vunpack.c.l.b16 %v472
        %v608 = vunpack.c.l.b16 %v473
        %v609 = vunpack.c.l.b16 %v474
        %v610 = vpack.c.b16 %v595, %v594
        %v611 = vpack.c.b16 %v597, %v596
        %v612 = vpack.c.b16 %v599, %v598
        %v613 = vpack.c.b16 %v601, %v600
        %v614 = vpack.c.b16 %v603, %v602
        %v615 = vpack.c.b16 %v605, %v604
        %v616 = vpack.c.b16 %v607, %v606
        %v617 = vpack.c.b16 %v609, %v608
        %626 = vmatprep.subr.bf16.mxu0 0
        %627 = vmatpush1.bf16.msra.mxu0 %v610
        %628 = vmatprep.subr.bf16.mxu0 0
        %629 = vmatpush1.bf16.msra.mxu0 %v611
        %630 = vmatprep.subr.bf16.mxu0 0
        %631 = vmatpush1.bf16.msra.mxu0 %v612
        %632 = vmatprep.subr.bf16.mxu0 0
        %633 = vmatpush1.bf16.msra.mxu0 %v613
        %634 = vmatprep.subr.bf16.mxu0 0
        %635 = vmatpush1.bf16.msra.mxu0 %v614
        %636 = vmatprep.subr.bf16.mxu0 0
        %637 = vmatpush1.bf16.msra.mxu0 %v615
        %638 = vmatprep.subr.bf16.mxu0 0
        %639 = vmatpush1.bf16.msra.mxu0 %v616
        %640 = vmatprep.subr.bf16.mxu0 0
        %641 = vmatpush1.bf16.msra.mxu0 %v617
        %642 = vmatprep.subr.bf16.mxu0 0
        %643 = vmatpush1.bf16.msra.mxu0 0
        %644 = vmatprep.subr.bf16.mxu0 0
        %645 = vmatpush1.bf16.msra.mxu0 0
        %646 = vmatprep.subr.bf16.mxu0 0
        %647 = vmatpush1.bf16.msra.mxu0 0
        %648 = vmatprep.subr.bf16.mxu0 0
        %649 = vmatpush1.bf16.msra.mxu0 0
        %650 = vmatprep.subr.bf16.mxu0 0
        %651 = vmatpush1.bf16.msra.mxu0 0
        %652 = vmatprep.subr.bf16.mxu0 0
        %653 = vmatpush1.bf16.msra.mxu0 0
        %654 = vmatprep.subr.bf16.mxu0 0
        %655 = vmatpush1.bf16.msra.mxu0 0
        %656 = vmatprep.subr.bf16.mxu0 0
        %657 = vmatpush1.bf16.msra.mxu0 0
        %658 = vmatprep.mubr.bf16.mxu0 0
        %659 = vmatmul.mubr.bf16.gmra.mrb[0].mxu0 %v546
        %v660 = vpop.f32.mrb[0].mxu0
        %v661 = vadd.f32 %v480, %v660
        %v662 = vpop.f32.mrb[0].mxu0
        %v663 = vpop.f32.mrb[0].mxu0
        %v664 = vadd.f32 %v480, %v663
        %v665 = vpop.f32.mrb[0].mxu0
        %666 = vmatprep.mubr.bf16.mxu0 0
        %667 = vmatmul.mubr.bf16.gmra.mrb[0].mxu0 %v547
        %v668 = vpop.f32.mrb[0].mxu0
        %v669 = vadd.f32 %v480, %v668
        %v670 = vpop.f32.mrb[0].mxu0
        %v671 = vpop.f32.mrb[0].mxu0
        %v672 = vadd.f32 %v480, %v671
        %v673 = vpop.f32.mrb[0].mxu0
        %674 = vmatprep.mubr.bf16.mxu0 0
        %675 = vmatmul.mubr.bf16.gmra.mrb[0].mxu0 %v548
        %v676 = vpop.f32.mrb[0].mxu0
        %v677 = vadd.f32 %v480, %v676
        %v678 = vpop.f32.mrb[0].mxu0
        %v679 = vpop.f32.mrb[0].mxu0
        %v680 = vadd.f32 %v480, %v679
        %v681 = vpop.f32.mrb[0].mxu0
        %682 = vmatprep.mubr.bf16.mxu0 0
        %683 = vmatmul.mubr.bf16.gmra.mrb[0].mxu0 %v549
        %v684 = vpop.f32.mrb[0].mxu0
        %v685 = vadd.f32 %v480, %v684
        %v686 = vpop.f32.mrb[0].mxu0
        %v687 = vpop.f32.mrb[0].mxu0
        %v688 = vadd.f32 %v480, %v687
        %v689 = vpop.f32.mrb[0].mxu0
        %690 = vmatprep.mubr.bf16.mxu0 0
        %691 = vmatmul.mubr.bf16.gmra.mrb[0].mxu0 %v550
        %v692 = vpop.f32.mrb[0].mxu0
        %v693 = vadd.f32 %v480, %v692
        %v694 = vpop.f32.mrb[0].mxu0
        %v695 = vpop.f32.mrb[0].mxu0
        %v696 = vadd.f32 %v480, %v695
        %v697 = vpop.f32.mrb[0].mxu0
        %698 = vmatprep.mubr.bf16.mxu0 0
        %699 = vmatmul.mubr.bf16.gmra.mrb[0].mxu0 %v551
        %v700 = vpop.f32.mrb[0].mxu0
        %v701 = vadd.f32 %v480, %v700
        %v702 = vpop.f32.mrb[0].mxu0
        %v703 = vpop.f32.mrb[0].mxu0
        %v704 = vadd.f32 %v480, %v703
        %v705 = vpop.f32.mrb[0].mxu0
        %706 = vmatprep.mubr.bf16.mxu0 0
        %707 = vmatmul.mubr.bf16.gmra.mrb[0].mxu0 %v552
        %v708 = vpop.f32.mrb[0].mxu0
        %v709 = vadd.f32 %v480, %v708
        %v710 = vpop.f32.mrb[0].mxu0
        %v711 = vpop.f32.mrb[0].mxu0
        %v712 = vadd.f32 %v480, %v711
        %v713 = vpop.f32.mrb[0].mxu0
        %714 = vmatprep.mubr.bf16.mxu0 0
        %715 = vmatmul.mubr.bf16.gmra.mrb[0].mxu0 %v553
        %v716 = vpop.f32.mrb[0].mxu0
        %v717 = vadd.f32 %v480, %v716
        %v718 = vpop.f32.mrb[0].mxu0
        %v719 = vpop.f32.mrb[0].mxu0
        %v720 = vadd.f32 %v480, %v719
        %v721 = vpop.f32.mrb[0].mxu0
        %722 = vmatprep.mubr.bf16.mxu0 0
        %723 = vmatmul.mubr.bf16.gmra.mrb[0].mxu0 %v554
        %v724 = vpop.f32.mrb[0].mxu0
        %v725 = vadd.f32 %v480, %v724
        %v726 = vpop.f32.mrb[0].mxu0
        %v727 = vpop.f32.mrb[0].mxu0
        %v728 = vadd.f32 %v480, %v727
        %v729 = vpop.f32.mrb[0].mxu0
        %730 = vmatprep.mubr.bf16.mxu0 0
        %731 = vmatmul.mubr.bf16.gmra.mrb[0].mxu0 %v555
        %v732 = vpop.f32.mrb[0].mxu0
        %v733 = vadd.f32 %v480, %v732
        %v734 = vpop.f32.mrb[0].mxu0
        %v735 = vpop.f32.mrb[0].mxu0
        %v736 = vadd.f32 %v480, %v735
        %v737 = vpop.f32.mrb[0].mxu0
        %738 = vmatprep.mubr.bf16.mxu0 0
        %739 = vmatmul.mubr.bf16.gmra.mrb[0].mxu0 %v556
        %v740 = vpop.f32.mrb[0].mxu0
        %v741 = vadd.f32 %v480, %v740
        %v742 = vpop.f32.mrb[0].mxu0
        %v743 = vpop.f32.mrb[0].mxu0
        %v744 = vadd.f32 %v480, %v743
        %v745 = vpop.f32.mrb[0].mxu0
        %746 = vmatprep.mubr.bf16.mxu0 0
        %747 = vmatmul.mubr.bf16.gmra.mrb[0].mxu0 %v557
        %v748 = vpop.f32.mrb[0].mxu0
        %v749 = vadd.f32 %v480, %v748
        %v750 = vpop.f32.mrb[0].mxu0
        %v751 = vpop.f32.mrb[0].mxu0
        %v752 = vadd.f32 %v480, %v751
        %v753 = vpop.f32.mrb[0].mxu0
        %754 = vmatprep.mubr.bf16.mxu0 0
        %755 = vmatmul.mubr.bf16.gmra.mrb[0].mxu0 %v558
        %v756 = vpop.f32.mrb[0].mxu0
        %v757 = vadd.f32 %v480, %v756
        %v758 = vpop.f32.mrb[0].mxu0
        %v759 = vpop.f32.mrb[0].mxu0
        %v760 = vadd.f32 %v480, %v759
        %v761 = vpop.f32.mrb[0].mxu0
        %762 = vmatprep.mubr.bf16.mxu0 0
        %763 = vmatmul.mubr.bf16.gmra.mrb[0].mxu0 %v559
        %v764 = vpop.f32.mrb[0].mxu0
        %v765 = vadd.f32 %v480, %v764
        %v766 = vpop.f32.mrb[0].mxu0
        %v767 = vpop.f32.mrb[0].mxu0
        %v768 = vadd.f32 %v480, %v767
        %v769 = vpop.f32.mrb[0].mxu0
        %770 = vmatprep.mubr.bf16.mxu0 0
        %771 = vmatmul.mubr.bf16.gmra.mrb[0].mxu0 %v560
        %v772 = vpop.f32.mrb[0].mxu0
        %v773 = vadd.f32 %v480, %v772
        %v774 = vpop.f32.mrb[0].mxu0
        %v775 = vpop.f32.mrb[0].mxu0
        %v776 = vadd.f32 %v480, %v775
        %v777 = vpop.f32.mrb[0].mxu0
        %778 = vmatprep.mubr.bf16.mxu0 0
        %779 = vmatmul.mubr.bf16.gmra.mrb[0].mxu0 %v561
        %v780 = vpop.f32.mrb[0].mxu0
        %v781 = vadd.f32 %v480, %v780
        %v782 = vpop.f32.mrb[0].mxu0
        %v783 = vpop.f32.mrb[0].mxu0
        %v784 = vadd.f32 %v480, %v783
        %v785 = vpop.f32.mrb[0].mxu0
        %786 = vdwg.mxu0
        %v787 = vmax.f32 %v661, 0.0
        %v788 = vmax.f32 %v664, 0.0
        %v789 = vmax.f32 %v669, 0.0
        %v790 = vmax.f32 %v672, 0.0
        %v791 = vmax.f32 %v677, 0.0
        %v792 = vmax.f32 %v680, 0.0
        %v793 = vmax.f32 %v685, 0.0
        %v794 = vmax.f32 %v688, 0.0
        %v795 = vmax.f32 %v693, 0.0
        %v796 = vmax.f32 %v696, 0.0
        %v797 = vmax.f32 %v701, 0.0
        %v798 = vmax.f32 %v704, 0.0
        %v799 = vmax.f32 %v709, 0.0
        %v800 = vmax.f32 %v712, 0.0
        %v801 = vmax.f32 %v717, 0.0
        %v802 = vmax.f32 %v720, 0.0
        %v803 = vmax.f32 %v725, 0.0
        %v804 = vmax.f32 %v728, 0.0
        %v805 = vmax.f32 %v733, 0.0
        %v806 = vmax.f32 %v736, 0.0
        %v807 = vmax.f32 %v741, 0.0
        %v808 = vmax.f32 %v744, 0.0
        %v809 = vmax.f32 %v749, 0.0
        %v810 = vmax.f32 %v752, 0.0
        %v811 = vmax.f32 %v757, 0.0
        %v812 = vmax.f32 %v760, 0.0
        %v813 = vmax.f32 %v765, 0.0
        %v814 = vmax.f32 %v768, 0.0
        %v815 = vmax.f32 %v773, 0.0
        %v816 = vmax.f32 %v776, 0.0
        %v817 = vmax.f32 %v781, 0.0
        %v818 = vmax.f32 %v784, 0.0
        %819 = vadd.xlane.f32.xlu0 %v787
        %v820 = vpop.xlane.xlu0 %819
        %821 = vadd.xlane.f32.xlu0 %v788
        %v822 = vpop.xlane.xlu0 %821
        %823 = vadd.xlane.f32.xlu0 %v789
        %v824 = vpop.xlane.xlu0 %823
        %825 = vadd.xlane.f32.xlu0 %v790
        %v826 = vpop.xlane.xlu0 %825
        %827 = vadd.xlane.f32.xlu0 %v791
        %v828 = vpop.xlane.xlu0 %827
        %829 = vadd.xlane.f32.xlu0 %v792
        %v830 = vpop.xlane.xlu0 %829
        %831 = vadd.xlane.f32.xlu0 %v793
        %v832 = vpop.xlane.xlu0 %831
        %833 = vadd.xlane.f32.xlu0 %v794
        %v834 = vpop.xlane.xlu0 %833
        %835 = vadd.xlane.f32.xlu0 %v795
        %v836 = vpop.xlane.xlu0 %835
        %837 = vadd.xlane.f32.xlu0 %v796
        %v838 = vpop.xlane.xlu0 %837
        %839 = vadd.xlane.f32.xlu0 %v797
        %v840 = vpop.xlane.xlu0 %839
        %841 = vadd.xlane.f32.xlu0 %v798
        %v842 = vpop.xlane.xlu0 %841
        %843 = vadd.xlane.f32.xlu0 %v799
        %v844 = vpop.xlane.xlu0 %843
        %845 = vadd.xlane.f32.xlu0 %v800
        %v846 = vpop.xlane.xlu0 %845
        %847 = vadd.xlane.f32.xlu0 %v801
        %v848 = vpop.xlane.xlu0 %847
        %849 = vadd.xlane.f32.xlu0 %v802
        %v850 = vpop.xlane.xlu0 %849
        %851 = vadd.xlane.f32.xlu0 %v803
        %v852 = vpop.xlane.xlu0 %851
        %853 = vadd.xlane.f32.xlu0 %v804
        %v854 = vpop.xlane.xlu0 %853
        %855 = vadd.xlane.f32.xlu0 %v805
        %v856 = vpop.xlane.xlu0 %855
        %857 = vadd.xlane.f32.xlu0 %v806
        %v858 = vpop.xlane.xlu0 %857
        %859 = vadd.xlane.f32.xlu0 %v807
        %v860 = vpop.xlane.xlu0 %859
        %861 = vadd.xlane.f32.xlu0 %v808
        %v862 = vpop.xlane.xlu0 %861
        %863 = vadd.xlane.f32.xlu0 %v809
        %v864 = vpop.xlane.xlu0 %863
        %865 = vadd.xlane.f32.xlu0 %v810
        %v866 = vpop.xlane.xlu0 %865
        %867 = vadd.xlane.f32.xlu0 %v811
        %v868 = vpop.xlane.xlu0 %867
        %869 = vadd.xlane.f32.xlu0 %v812
        %v870 = vpop.xlane.xlu0 %869
        %871 = vadd.xlane.f32.xlu0 %v813
        %v872 = vpop.xlane.xlu0 %871
        %873 = vadd.xlane.f32.xlu0 %v814
        %v874 = vpop.xlane.xlu0 %873
        %875 = vadd.xlane.f32.xlu0 %v815
        %v876 = vpop.xlane.xlu0 %875
        %877 = vadd.xlane.f32.xlu0 %v816
        %v878 = vpop.xlane.xlu0 %877
        %879 = vadd.xlane.f32.xlu0 %v817
        %v880 = vpop.xlane.xlu0 %879
        %881 = vadd.xlane.f32.xlu0 %v818
        %v882 = vpop.xlane.xlu0 %881
        %883 = vmax.xlane.f32.xlu0 %v787
        %v884 = vpop.xlane.xlu0 %883
        %885 = vmax.xlane.f32.xlu0 %v788
        %v886 = vpop.xlane.xlu0 %885
        %887 = vmax.xlane.f32.xlu0 %v789
        %v888 = vpop.xlane.xlu0 %887
        %889 = vmax.xlane.f32.xlu0 %v790
        %v890 = vpop.xlane.xlu0 %889
        %891 = vmax.xlane.f32.xlu0 %v791
        %v892 = vpop.xlane.xlu0 %891
        %893 = vmax.xlane.f32.xlu0 %v792
        %v894 = vpop.xlane.xlu0 %893
        %895 = vmax.xlane.f32.xlu0 %v793
        %v896 = vpop.xlane.xlu0 %895
        %897 = vmax.xlane.f32.xlu0 %v794
        %v898 = vpop.xlane.xlu0 %897
        %899 = vmax.xlane.f32.xlu0 %v795
        %v900 = vpop.xlane.xlu0 %899
        %901 = vmax.xlane.f32.xlu0 %v796
        %v902 = vpop.xlane.xlu0 %901
        %903 = vmax.xlane.f32.xlu0 %v797
        %v904 = vpop.xlane.xlu0 %903
        %905 = vmax.xlane.f32.xlu0 %v798
        %v906 = vpop.xlane.xlu0 %905
        %907 = vmax.xlane.f32.xlu0 %v799
        %v908 = vpop.xlane.xlu0 %907
        %909 = vmax.xlane.f32.xlu0 %v800
        %v910 = vpop.xlane.xlu0 %909
        %911 = vmax.xlane.f32.xlu0 %v801
        %v912 = vpop.xlane.xlu0 %911
        %913 = vmax.xlane.f32.xlu0 %v802
        %v914 = vpop.xlane.xlu0 %913
        %915 = vmax.xlane.f32.xlu0 %v803
        %v916 = vpop.xlane.xlu0 %915
        %917 = vmax.xlane.f32.xlu0 %v804
        %v918 = vpop.xlane.xlu0 %917
        %919 = vmax.xlane.f32.xlu0 %v805
        %v920 = vpop.xlane.xlu0 %919
        %921 = vmax.xlane.f32.xlu0 %v806
        %v922 = vpop.xlane.xlu0 %921
        %923 = vmax.xlane.f32.xlu0 %v807
        %v924 = vpop.xlane.xlu0 %923
        %925 = vmax.xlane.f32.xlu0 %v808
        %v926 = vpop.xlane.xlu0 %925
        %927 = vmax.xlane.f32.xlu0 %v809
        %v928 = vpop.xlane.xlu0 %927
        %929 = vmax.xlane.f32.xlu0 %v810
        %v930 = vpop.xlane.xlu0 %929
        %931 = vmax.xlane.f32.xlu0 %v811
        %v932 = vpop.xlane.xlu0 %931
        %933 = vmax.xlane.f32.xlu0 %v812
        %v934 = vpop.xlane.xlu0 %933
        %935 = vmax.xlane.f32.xlu0 %v813
        %v936 = vpop.xlane.xlu0 %935
        %937 = vmax.xlane.f32.xlu0 %v814
        %v938 = vpop.xlane.xlu0 %937
        %939 = vmax.xlane.f32.xlu0 %v815
        %v940 = vpop.xlane.xlu0 %939
        %941 = vmax.xlane.f32.xlu0 %v816
        %v942 = vpop.xlane.xlu0 %941
        %943 = vmax.xlane.f32.xlu0 %v817
        %v944 = vpop.xlane.xlu0 %943
        %945 = vmax.xlane.f32.xlu0 %v818
        %v946 = vpop.xlane.xlu0 %945
        %vm947 = vcmask 7168
        %v948 = vsel %vm947, %v820, %v884
        %v949 = vsel %vm947, %v822, %v886
        %v950 = vsel %vm947, %v824, %v888
        %v951 = vsel %vm947, %v826, %v890
        %v952 = vsel %vm947, %v828, %v892
        %v953 = vsel %vm947, %v830, %v894
        %v954 = vsel %vm947, %v832, %v896
        %v955 = vsel %vm947, %v834, %v898
        %v956 = vsel %vm947, %v836, %v900
        %v957 = vsel %vm947, %v838, %v902
        %v958 = vsel %vm947, %v840, %v904
        %v959 = vsel %vm947, %v842, %v906
        %v960 = vsel %vm947, %v844, %v908
        %v961 = vsel %vm947, %v846, %v910
        %v962 = vsel %vm947, %v848, %v912
        %v963 = vsel %vm947, %v850, %v914
        %v964 = vsel %vm947, %v852, %v916
        %v965 = vsel %vm947, %v854, %v918
        %v966 = vsel %vm947, %v856, %v920
        %v967 = vsel %vm947, %v858, %v922
        %v968 = vsel %vm947, %v860, %v924
        %v969 = vsel %vm947, %v862, %v926
        %v970 = vsel %vm947, %v864, %v928
        %v971 = vsel %vm947, %v866, %v930
        %v972 = vsel %vm947, %v868, %v932
        %v973 = vsel %vm947, %v870, %v934
        %v974 = vsel %vm947, %v872, %v936
        %v975 = vsel %vm947, %v874, %v938
        %v976 = vsel %vm947, %v876, %v940
        %v977 = vsel %vm947, %v878, %v942
        %v978 = vsel %vm947, %v880, %v944
        %v979 = vsel %vm947, %v882, %v946
        %980 = vst.msk [vmem:[#allocation2 + $0x10] sm:$0xff] %vm390, %v948
        %981 = vst.msk [vmem:[#allocation2 + $0x18] sm:$0xff] %vm390, %v949
        %982 = vst.msk [vmem:[#allocation2 + $0x20] sm:$0xff] %vm390, %v950
        %983 = vst.msk [vmem:[#allocation2 + $0x28] sm:$0xff] %vm390, %v951
        %984 = vst.msk [vmem:[#allocation2 + $0x30] sm:$0xff] %vm390, %v952
        %985 = vst.msk [vmem:[#allocation2 + $0x38] sm:$0xff] %vm390, %v953
        %986 = vst.msk [vmem:[#allocation2 + $0x40] sm:$0xff] %vm390, %v954
        %987 = vst.msk [vmem:[#allocation2 + $0x48] sm:$0xff] %vm390, %v955
        %988 = vst.msk [vmem:[#allocation2 + $0x50] sm:$0xff] %vm390, %v956
        %989 = vst.msk [vmem:[#allocation2 + $0x58] sm:$0xff] %vm390, %v957
        %990 = vst.msk [vmem:[#allocation2 + $0x60] sm:$0xff] %vm390, %v958
        %991 = vst.msk [vmem:[#allocation2 + $0x68] sm:$0xff] %vm390, %v959
        %992 = vst.msk [vmem:[#allocation2 + $0x70] sm:$0xff] %vm390, %v960
        %993 = vst.msk [vmem:[#allocation2 + $0x78] sm:$0xff] %vm390, %v961
        %994 = vst.msk [vmem:[#allocation2 + $0x80] sm:$0xff] %vm390, %v962
        %995 = vst.msk [vmem:[#allocation2 + $0x88] sm:$0xff] %vm390, %v963
        %996 = vst.msk [vmem:[#allocation2 + $0x90] sm:$0xff] %vm390, %v964
        %997 = vst.msk [vmem:[#allocation2 + $0x98] sm:$0xff] %vm390, %v965
        %998 = vst.msk [vmem:[#allocation2 + $0xa0] sm:$0xff] %vm390, %v966
        %999 = vst.msk [vmem:[#allocation2 + $0xa8] sm:$0xff] %vm390, %v967
        %1000 = vst.msk [vmem:[#allocation2 + $0xb0] sm:$0xff] %vm390, %v968
        %1001 = vst.msk [vmem:[#allocation2 + $0xb8] sm:$0xff] %vm390, %v969
        %1002 = vst.msk [vmem:[#allocation2 + $0xc0] sm:$0xff] %vm390, %v970
        %1003 = vst.msk [vmem:[#allocation2 + $0xc8] sm:$0xff] %vm390, %v971
        %1004 = vst.msk [vmem:[#allocation2 + $0xd0] sm:$0xff] %vm390, %v972
        %1005 = vst.msk [vmem:[#allocation2 + $0xd8] sm:$0xff] %vm390, %v973
        %1006 = vst.msk [vmem:[#allocation2 + $0xe0] sm:$0xff] %vm390, %v974
        %1007 = vst.msk [vmem:[#allocation2 + $0xe8] sm:$0xff] %vm390, %v975
        %1008 = vst.msk [vmem:[#allocation2 + $0xf0] sm:$0xff] %vm390, %v976
        %1009 = vst.msk [vmem:[#allocation2 + $0xf8] sm:$0xff] %vm390, %v977
        %1010 = vst.msk [vmem:[#allocation2 + $0x100] sm:$0xff] %vm390, %v978
        %1011 = vst.msk [vmem:[#allocation2 + $0x108] sm:$0xff] %vm390, %v979
        %v1012 = vld [vmem:[#allocation2 + $0x7] sm:$0xff]
        %v1013 = vld [vmem:[#allocation2 + $0xf] sm:$0xff]
        %v1014 = vld [vmem:[#allocation2 + $0x17] sm:$0xff]
        %v1015 = vld [vmem:[#allocation2 + $0x1f] sm:$0xff]
        %v1016 = vld [vmem:[#allocation2 + $0x27] sm:$0xff]
        %v1017 = vld [vmem:[#allocation2 + $0x2f] sm:$0xff]
        %v1018 = vld [vmem:[#allocation2 + $0x37] sm:$0xff]
        %v1019 = vld [vmem:[#allocation2 + $0x3f] sm:$0xff]
        %v1020 = vld [vmem:[#allocation2 + $0x47] sm:$0xff]
        %v1021 = vld [vmem:[#allocation2 + $0x4f] sm:$0xff]
        %v1022 = vld [vmem:[#allocation2 + $0x57] sm:$0xff]
        %v1023 = vld [vmem:[#allocation2 + $0x5f] sm:$0xff]
        %v1024 = vld [vmem:[#allocation2 + $0x67] sm:$0xff]
        %v1025 = vld [vmem:[#allocation2 + $0x6f] sm:$0xff]
        %v1026 = vld [vmem:[#allocation2 + $0x77] sm:$0xff]
        %v1027 = vld [vmem:[#allocation2 + $0x7f] sm:$0xff]
        %v1028 = vld [vmem:[#allocation2 + $0x87] sm:$0xff]
        %v1029 = vld [vmem:[#allocation2 + $0x8f] sm:$0xff]
        %v1030 = vld [vmem:[#allocation2 + $0x97] sm:$0xff]
        %v1031 = vld [vmem:[#allocation2 + $0x9f] sm:$0xff]
        %v1032 = vld [vmem:[#allocation2 + $0xa7] sm:$0xff]
        %v1033 = vld [vmem:[#allocation2 + $0xaf] sm:$0xff]
        %v1034 = vld [vmem:[#allocation2 + $0xb7] sm:$0xff]
        %v1035 = vld [vmem:[#allocation2 + $0xbf] sm:$0xff]
        %v1036 = vld [vmem:[#allocation2 + $0xc7] sm:$0xff]
        %v1037 = vld [vmem:[#allocation2 + $0xcf] sm:$0xff]
        %v1038 = vld [vmem:[#allocation2 + $0xd7] sm:$0xff]
        %v1039 = vld [vmem:[#allocation2 + $0xdf] sm:$0xff]
        %v1040 = vld [vmem:[#allocation2 + $0xe7] sm:$0xff]
        %v1041 = vld [vmem:[#allocation2 + $0xef] sm:$0xff]
        %v1042 = vld [vmem:[#allocation2 + $0xf7] sm:$0xff]
        %v1043 = vld [vmem:[#allocation2 + $0xff] sm:$0xff]
        %v1044 = vld [vmem:[%s6] sm:$0x1]
        %v1045 = vlaneseq
        %v1046 = vshrl.u32 %v1045, 7
        %v1047 = vsub.s32 0, %v1046
        %v1048 = vrot.slane %v1044, %v1047
        %v1049 = vmul.f32 %v1012, %v1048
        %v1050 = vmul.f32 %v1013, %v1048
        %v1051 = vmul.f32 %v1014, %v1048
        %v1052 = vmul.f32 %v1015, %v1048
        %v1053 = vmul.f32 %v1016, %v1048
        %v1054 = vmul.f32 %v1017, %v1048
        %v1055 = vmul.f32 %v1018, %v1048
        %v1056 = vmul.f32 %v1019, %v1048
        %v1057 = vmul.f32 %v1020, %v1048
        %v1058 = vmul.f32 %v1021, %v1048
        %v1059 = vmul.f32 %v1022, %v1048
        %v1060 = vmul.f32 %v1023, %v1048
        %v1061 = vmul.f32 %v1024, %v1048
        %v1062 = vmul.f32 %v1025, %v1048
        %v1063 = vmul.f32 %v1026, %v1048
        %v1064 = vmul.f32 %v1027, %v1048
        %v1065 = vmul.f32 %v1028, %v1048
        %v1066 = vmul.f32 %v1029, %v1048
        %v1067 = vmul.f32 %v1030, %v1048
        %v1068 = vmul.f32 %v1031, %v1048
        %v1069 = vmul.f32 %v1032, %v1048
        %v1070 = vmul.f32 %v1033, %v1048
        %v1071 = vmul.f32 %v1034, %v1048
        %v1072 = vmul.f32 %v1035, %v1048
        %v1073 = vmul.f32 %v1036, %v1048
        %v1074 = vmul.f32 %v1037, %v1048
        %v1075 = vmul.f32 %v1038, %v1048
        %v1076 = vmul.f32 %v1039, %v1048
        %v1077 = vmul.f32 %v1040, %v1048
        %v1078 = vmul.f32 %v1041, %v1048
        %v1079 = vmul.f32 %v1042, %v1048
        %v1080 = vmul.f32 %v1043, %v1048
        %1082 = vset.pattern.permute.xlu0 0
        %1083 = vperm.xlu0 %1082, %v395
        %v1084 = vpop.permute.xlu0 %1083
        %1087 = vset.pattern.permute.xlu0 0
        %1088 = vperm.xlu0 %1087, %v396
        %v1089 = vpop.permute.xlu0 %1088
        %1092 = vset.pattern.permute.xlu0 0
        %1093 = vperm.xlu0 %1092, %v397
        %v1094 = vpop.permute.xlu0 %1093
        %1097 = vset.pattern.permute.xlu0 0
        %1098 = vperm.xlu0 %1097, %v398
        %v1099 = vpop.permute.xlu0 %1098
        %1102 = vset.pattern.permute.xlu0 0
        %1103 = vperm.xlu0 %1102, %v399
        %v1104 = vpop.permute.xlu0 %1103
        %1107 = vset.pattern.permute.xlu0 0
        %1108 = vperm.xlu0 %1107, %v400
        %v1109 = vpop.permute.xlu0 %1108
        %1112 = vset.pattern.permute.xlu0 0
        %1113 = vperm.xlu0 %1112, %v401
        %v1114 = vpop.permute.xlu0 %1113
        %1117 = vset.pattern.permute.xlu0 0
        %1118 = vperm.xlu0 %1117, %v402
        %v1119 = vpop.permute.xlu0 %1118
        %1122 = vset.pattern.permute.xlu0 0
        %1123 = vperm.xlu0 %1122, %v403
        %v1124 = vpop.permute.xlu0 %1123
        %1127 = vset.pattern.permute.xlu0 0
        %1128 = vperm.xlu0 %1127, %v404
        %v1129 = vpop.permute.xlu0 %1128
        %1132 = vset.pattern.permute.xlu0 0
        %1133 = vperm.xlu0 %1132, %v405
        %v1134 = vpop.permute.xlu0 %1133
        %1137 = vset.pattern.permute.xlu0 0
        %1138 = vperm.xlu0 %1137, %v406
        %v1139 = vpop.permute.xlu0 %1138
        %1142 = vset.pattern.permute.xlu0 0
        %1143 = vperm.xlu0 %1142, %v407
        %v1144 = vpop.permute.xlu0 %1143
        %1147 = vset.pattern.permute.xlu0 0
        %1148 = vperm.xlu0 %1147, %v408
        %v1149 = vpop.permute.xlu0 %1148
        %1152 = vset.pattern.permute.xlu0 0
        %1153 = vperm.xlu0 %1152, %v409
        %v1154 = vpop.permute.xlu0 %1153
        %1157 = vset.pattern.permute.xlu0 0
        %1158 = vperm.xlu0 %1157, %v410
        %v1159 = vpop.permute.xlu0 %1158
        %1162 = vset.pattern.permute.xlu0 0
        %1163 = vperm.xlu0 %1162, %v411
        %v1164 = vpop.permute.xlu0 %1163
        %1167 = vset.pattern.permute.xlu0 0
        %1168 = vperm.xlu0 %1167, %v412
        %v1169 = vpop.permute.xlu0 %1168
        %1172 = vset.pattern.permute.xlu0 0
        %1173 = vperm.xlu0 %1172, %v413
        %v1174 = vpop.permute.xlu0 %1173
        %1177 = vset.pattern.permute.xlu0 0
        %1178 = vperm.xlu0 %1177, %v414
        %v1179 = vpop.permute.xlu0 %1178
        %1182 = vset.pattern.permute.xlu0 0
        %1183 = vperm.xlu0 %1182, %v415
        %v1184 = vpop.permute.xlu0 %1183
        %1187 = vset.pattern.permute.xlu0 0
        %1188 = vperm.xlu0 %1187, %v416
        %v1189 = vpop.permute.xlu0 %1188
        %1192 = vset.pattern.permute.xlu0 0
        %1193 = vperm.xlu0 %1192, %v417
        %v1194 = vpop.permute.xlu0 %1193
        %1197 = vset.pattern.permute.xlu0 0
        %1198 = vperm.xlu0 %1197, %v418
        %v1199 = vpop.permute.xlu0 %1198
        %1202 = vset.pattern.permute.xlu0 0
        %1203 = vperm.xlu0 %1202, %v419
        %v1204 = vpop.permute.xlu0 %1203
        %1207 = vset.pattern.permute.xlu0 0
        %1208 = vperm.xlu0 %1207, %v420
        %v1209 = vpop.permute.xlu0 %1208
        %1212 = vset.pattern.permute.xlu0 0
        %1213 = vperm.xlu0 %1212, %v421
        %v1214 = vpop.permute.xlu0 %1213
        %1217 = vset.pattern.permute.xlu0 0
        %1218 = vperm.xlu0 %1217, %v422
        %v1219 = vpop.permute.xlu0 %1218
        %1222 = vset.pattern.permute.xlu0 0
        %1223 = vperm.xlu0 %1222, %v423
        %v1224 = vpop.permute.xlu0 %1223
        %1227 = vset.pattern.permute.xlu0 0
        %1228 = vperm.xlu0 %1227, %v424
        %v1229 = vpop.permute.xlu0 %1228
        %1232 = vset.pattern.permute.xlu0 0
        %1233 = vperm.xlu0 %1232, %v425
        %v1234 = vpop.permute.xlu0 %1233
        %1237 = vset.pattern.permute.xlu0 0
        %1238 = vperm.xlu0 %1237, %v426
        %v1239 = vpop.permute.xlu0 %1238
        %v1241 = vmul.f32 %v1049, %v1084
        %v1242 = vmul.f32 %v1050, %v1089
        %v1243 = vmul.f32 %v1051, %v1094
        %v1244 = vmul.f32 %v1052, %v1099
        %v1245 = vmul.f32 %v1053, %v1104
        %v1246 = vmul.f32 %v1054, %v1109
        %v1247 = vmul.f32 %v1055, %v1114
        %v1248 = vmul.f32 %v1056, %v1119
        %v1249 = vmul.f32 %v1057, %v1124
        %v1250 = vmul.f32 %v1058, %v1129
        %v1251 = vmul.f32 %v1059, %v1134
        %v1252 = vmul.f32 %v1060, %v1139
        %v1253 = vmul.f32 %v1061, %v1144
        %v1254 = vmul.f32 %v1062, %v1149
        %v1255 = vmul.f32 %v1063, %v1154
        %v1256 = vmul.f32 %v1064, %v1159
        %v1257 = vmul.f32 %v1065, %v1164
        %v1258 = vmul.f32 %v1066, %v1169
        %v1259 = vmul.f32 %v1067, %v1174
        %v1260 = vmul.f32 %v1068, %v1179
        %v1261 = vmul.f32 %v1069, %v1184
        %v1262 = vmul.f32 %v1070, %v1189
        %v1263 = vmul.f32 %v1071, %v1194
        %v1264 = vmul.f32 %v1072, %v1199
        %v1265 = vmul.f32 %v1073, %v1204
        %v1266 = vmul.f32 %v1074, %v1209
        %v1267 = vmul.f32 %v1075, %v1214
        %v1268 = vmul.f32 %v1076, %v1219
        %v1269 = vmul.f32 %v1077, %v1224
        %v1270 = vmul.f32 %v1078, %v1229
        %v1271 = vmul.f32 %v1079, %v1234
        %v1272 = vmul.f32 %v1080, %v1239
        %v1273 = vadd.f32 %v1241, 0.0
        %v1274 = vadd.f32 %v1242, 0.0
        %v1275 = vadd.f32 %v1243, 0.0
        %v1276 = vadd.f32 %v1244, 0.0
        %v1277 = vadd.f32 %v1245, 0.0
        %v1278 = vadd.f32 %v1246, 0.0
        %v1279 = vadd.f32 %v1247, 0.0
        %v1280 = vadd.f32 %v1248, 0.0
        %v1281 = vadd.f32 %v1249, 0.0
        %v1282 = vadd.f32 %v1250, 0.0
        %v1283 = vadd.f32 %v1251, 0.0
        %v1284 = vadd.f32 %v1252, 0.0
        %v1285 = vadd.f32 %v1253, 0.0
        %v1286 = vadd.f32 %v1254, 0.0
        %v1287 = vadd.f32 %v1255, 0.0
        %v1288 = vadd.f32 %v1256, 0.0
        %v1289 = vadd.f32 %v1257, 0.0
        %v1290 = vadd.f32 %v1258, 0.0
        %v1291 = vadd.f32 %v1259, 0.0
        %v1292 = vadd.f32 %v1260, 0.0
        %v1293 = vadd.f32 %v1261, 0.0
        %v1294 = vadd.f32 %v1262, 0.0
        %v1295 = vadd.f32 %v1263, 0.0
        %v1296 = vadd.f32 %v1264, 0.0
        %v1297 = vadd.f32 %v1265, 0.0
        %v1298 = vadd.f32 %v1266, 0.0
        %v1299 = vadd.f32 %v1267, 0.0
        %v1300 = vadd.f32 %v1268, 0.0
        %v1301 = vadd.f32 %v1269, 0.0
        %v1302 = vadd.f32 %v1270, 0.0
        %v1303 = vadd.f32 %v1271, 0.0
        %v1304 = vadd.f32 %v1272, 0.0
        %v1305 = vld [vmem:[#allocation2 + $0x8] sm:$0xff]
        %v1306 = vld [vmem:[#allocation2 + $0x10] sm:$0xff]
        %v1307 = vld [vmem:[#allocation2 + $0x18] sm:$0xff]
        %v1308 = vld [vmem:[#allocation2 + $0x20] sm:$0xff]
        %v1309 = vld [vmem:[#allocation2 + $0x28] sm:$0xff]
        %v1310 = vld [vmem:[#allocation2 + $0x30] sm:$0xff]
        %v1311 = vld [vmem:[#allocation2 + $0x38] sm:$0xff]
        %v1312 = vld [vmem:[#allocation2 + $0x40] sm:$0xff]
        %v1313 = vld [vmem:[#allocation2 + $0x48] sm:$0xff]
        %v1314 = vld [vmem:[#allocation2 + $0x50] sm:$0xff]
        %v1315 = vld [vmem:[#allocation2 + $0x58] sm:$0xff]
        %v1316 = vld [vmem:[#allocation2 + $0x60] sm:$0xff]
        %v1317 = vld [vmem:[#allocation2 + $0x68] sm:$0xff]
        %v1318 = vld [vmem:[#allocation2 + $0x70] sm:$0xff]
        %v1319 = vld [vmem:[#allocation2 + $0x78] sm:$0xff]
        %v1320 = vld [vmem:[#allocation2 + $0x80] sm:$0xff]
        %v1321 = vld [vmem:[#allocation2 + $0x88] sm:$0xff]
        %v1322 = vld [vmem:[#allocation2 + $0x90] sm:$0xff]
        %v1323 = vld [vmem:[#allocation2 + $0x98] sm:$0xff]
        %v1324 = vld [vmem:[#allocation2 + $0xa0] sm:$0xff]
        %v1325 = vld [vmem:[#allocation2 + $0xa8] sm:$0xff]
        %v1326 = vld [vmem:[#allocation2 + $0xb0] sm:$0xff]
        %v1327 = vld [vmem:[#allocation2 + $0xb8] sm:$0xff]
        %v1328 = vld [vmem:[#allocation2 + $0xc0] sm:$0xff]
        %v1329 = vld [vmem:[#allocation2 + $0xc8] sm:$0xff]
        %v1330 = vld [vmem:[#allocation2 + $0xd0] sm:$0xff]
        %v1331 = vld [vmem:[#allocation2 + $0xd8] sm:$0xff]
        %v1332 = vld [vmem:[#allocation2 + $0xe0] sm:$0xff]
        %v1333 = vld [vmem:[#allocation2 + $0xe8] sm:$0xff]
        %v1334 = vld [vmem:[#allocation2 + $0xf0] sm:$0xff]
        %v1335 = vld [vmem:[#allocation2 + $0xf8] sm:$0xff]
        %v1336 = vld [vmem:[#allocation2 + $0x100] sm:$0xff]
        %v1337 = vld [vmem:[%s6 + $0x1] sm:$0x1]
        %v1338 = vlaneseq
        %v1339 = vshrl.u32 %v1338, 7
        %v1340 = vsub.s32 0, %v1339
        %v1341 = vrot.slane %v1337, %v1340
        %v1342 = vmul.f32 %v1305, %v1341
        %v1343 = vmul.f32 %v1306, %v1341
        %v1344 = vmul.f32 %v1307, %v1341
        %v1345 = vmul.f32 %v1308, %v1341
        %v1346 = vmul.f32 %v1309, %v1341
        %v1347 = vmul.f32 %v1310, %v1341
        %v1348 = vmul.f32 %v1311, %v1341
        %v1349 = vmul.f32 %v1312, %v1341
        %v1350 = vmul.f32 %v1313, %v1341
        %v1351 = vmul.f32 %v1314, %v1341
        %v1352 = vmul.f32 %v1315, %v1341
        %v1353 = vmul.f32 %v1316, %v1341
        %v1354 = vmul.f32 %v1317, %v1341
        %v1355 = vmul.f32 %v1318, %v1341
        %v1356 = vmul.f32 %v1319, %v1341
        %v1357 = vmul.f32 %v1320, %v1341
        %v1358 = vmul.f32 %v1321, %v1341
        %v1359 = vmul.f32 %v1322, %v1341
        %v1360 = vmul.f32 %v1323, %v1341
        %v1361 = vmul.f32 %v1324, %v1341
        %v1362 = vmul.f32 %v1325, %v1341
        %v1363 = vmul.f32 %v1326, %v1341
        %v1364 = vmul.f32 %v1327, %v1341
        %v1365 = vmul.f32 %v1328, %v1341
        %v1366 = vmul.f32 %v1329, %v1341
        %v1367 = vmul.f32 %v1330, %v1341
        %v1368 = vmul.f32 %v1331, %v1341
        %v1369 = vmul.f32 %v1332, %v1341
        %v1370 = vmul.f32 %v1333, %v1341
        %v1371 = vmul.f32 %v1334, %v1341
        %v1372 = vmul.f32 %v1335, %v1341
        %v1373 = vmul.f32 %v1336, %v1341
        %1374 = vset.pattern.permute.xlu0 1
        %1375 = vperm.xlu0 %1374, %v395
        %v1376 = vpop.permute.xlu0 %1375
        %1378 = vset.pattern.permute.xlu0 1
        %1379 = vperm.xlu0 %1378, %v396
        %v1380 = vpop.permute.xlu0 %1379
        %1382 = vset.pattern.permute.xlu0 1
        %1383 = vperm.xlu0 %1382, %v397
        %v1384 = vpop.permute.xlu0 %1383
        %1386 = vset.pattern.permute.xlu0 1
        %1387 = vperm.xlu0 %1386, %v398
        %v1388 = vpop.permute.xlu0 %1387
        %1390 = vset.pattern.permute.xlu0 1
        %1391 = vperm.xlu0 %1390, %v399
        %v1392 = vpop.permute.xlu0 %1391
        %1394 = vset.pattern.permute.xlu0 1
        %1395 = vperm.xlu0 %1394, %v400
        %v1396 = vpop.permute.xlu0 %1395
        %1398 = vset.pattern.permute.xlu0 1
        %1399 = vperm.xlu0 %1398, %v401
        %v1400 = vpop.permute.xlu0 %1399
        %1402 = vset.pattern.permute.xlu0 1
        %1403 = vperm.xlu0 %1402, %v402
        %v1404 = vpop.permute.xlu0 %1403
        %1406 = vset.pattern.permute.xlu0 1
        %1407 = vperm.xlu0 %1406, %v403
        %v1408 = vpop.permute.xlu0 %1407
        %1410 = vset.pattern.permute.xlu0 1
        %1411 = vperm.xlu0 %1410, %v404
        %v1412 = vpop.permute.xlu0 %1411
        %1414 = vset.pattern.permute.xlu0 1
        %1415 = vperm.xlu0 %1414, %v405
        %v1416 = vpop.permute.xlu0 %1415
        %1418 = vset.pattern.permute.xlu0 1
        %1419 = vperm.xlu0 %1418, %v406
        %v1420 = vpop.permute.xlu0 %1419
        %1422 = vset.pattern.permute.xlu0 1
        %1423 = vperm.xlu0 %1422, %v407
        %v1424 = vpop.permute.xlu0 %1423
        %1426 = vset.pattern.permute.xlu0 1
        %1427 = vperm.xlu0 %1426, %v408
        %v1428 = vpop.permute.xlu0 %1427
        %1430 = vset.pattern.permute.xlu0 1
        %1431 = vperm.xlu0 %1430, %v409
        %v1432 = vpop.permute.xlu0 %1431
        %1434 = vset.pattern.permute.xlu0 1
        %1435 = vperm.xlu0 %1434, %v410
        %v1436 = vpop.permute.xlu0 %1435
        %1438 = vset.pattern.permute.xlu0 1
        %1439 = vperm.xlu0 %1438, %v411
        %v1440 = vpop.permute.xlu0 %1439
        %1442 = vset.pattern.permute.xlu0 1
        %1443 = vperm.xlu0 %1442, %v412
        %v1444 = vpop.permute.xlu0 %1443
        %1446 = vset.pattern.permute.xlu0 1
        %1447 = vperm.xlu0 %1446, %v413
        %v1448 = vpop.permute.xlu0 %1447
        %1450 = vset.pattern.permute.xlu0 1
        %1451 = vperm.xlu0 %1450, %v414
        %v1452 = vpop.permute.xlu0 %1451
        %1454 = vset.pattern.permute.xlu0 1
        %1455 = vperm.xlu0 %1454, %v415
        %v1456 = vpop.permute.xlu0 %1455
        %1458 = vset.pattern.permute.xlu0 1
        %1459 = vperm.xlu0 %1458, %v416
        %v1460 = vpop.permute.xlu0 %1459
        %1462 = vset.pattern.permute.xlu0 1
        %1463 = vperm.xlu0 %1462, %v417
        %v1464 = vpop.permute.xlu0 %1463
        %1466 = vset.pattern.permute.xlu0 1
        %1467 = vperm.xlu0 %1466, %v418
        %v1468 = vpop.permute.xlu0 %1467
        %1470 = vset.pattern.permute.xlu0 1
        %1471 = vperm.xlu0 %1470, %v419
        %v1472 = vpop.permute.xlu0 %1471
        %1474 = vset.pattern.permute.xlu0 1
        %1475 = vperm.xlu0 %1474, %v420
        %v1476 = vpop.permute.xlu0 %1475
        %1478 = vset.pattern.permute.xlu0 1
        %1479 = vperm.xlu0 %1478, %v421
        %v1480 = vpop.permute.xlu0 %1479
        %1482 = vset.pattern.permute.xlu0 1
        %1483 = vperm.xlu0 %1482, %v422
        %v1484 = vpop.permute.xlu0 %1483
        %1486 = vset.pattern.permute.xlu0 1
        %1487 = vperm.xlu0 %1486, %v423
        %v1488 = vpop.permute.xlu0 %1487
        %1490 = vset.pattern.permute.xlu0 1
        %1491 = vperm.xlu0 %1490, %v424
        %v1492 = vpop.permute.xlu0 %1491
        %1494 = vset.pattern.permute.xlu0 1
        %1495 = vperm.xlu0 %1494, %v425
        %v1496 = vpop.permute.xlu0 %1495
        %1498 = vset.pattern.permute.xlu0 1
        %1499 = vperm.xlu0 %1498, %v426
        %v1500 = vpop.permute.xlu0 %1499
        %v1502 = vmul.f32 %v1342, %v1376
        %v1503 = vmul.f32 %v1343, %v1380
        %v1504 = vmul.f32 %v1344, %v1384
        %v1505 = vmul.f32 %v1345, %v1388
        %v1506 = vmul.f32 %v1346, %v1392
        %v1507 = vmul.f32 %v1347, %v1396
        %v1508 = vmul.f32 %v1348, %v1400
        %v1509 = vmul.f32 %v1349, %v1404
        %v1510 = vmul.f32 %v1350, %v1408
        %v1511 = vmul.f32 %v1351, %v1412
        %v1512 = vmul.f32 %v1352, %v1416
        %v1513 = vmul.f32 %v1353, %v1420
        %v1514 = vmul.f32 %v1354, %v1424
        %v1515 = vmul.f32 %v1355, %v1428
        %v1516 = vmul.f32 %v1356, %v1432
        %v1517 = vmul.f32 %v1357, %v1436
        %v1518 = vmul.f32 %v1358, %v1440
        %v1519 = vmul.f32 %v1359, %v1444
        %v1520 = vmul.f32 %v1360, %v1448
        %v1521 = vmul.f32 %v1361, %v1452
        %v1522 = vmul.f32 %v1362, %v1456
        %v1523 = vmul.f32 %v1363, %v1460
        %v1524 = vmul.f32 %v1364, %v1464
        %v1525 = vmul.f32 %v1365, %v1468
        %v1526 = vmul.f32 %v1366, %v1472
        %v1527 = vmul.f32 %v1367, %v1476
        %v1528 = vmul.f32 %v1368, %v1480
        %v1529 = vmul.f32 %v1369, %v1484
        %v1530 = vmul.f32 %v1370, %v1488
        %v1531 = vmul.f32 %v1371, %v1492
        %v1532 = vmul.f32 %v1372, %v1496
        %v1533 = vmul.f32 %v1373, %v1500
        %v1534 = vadd.f32 %v1273, %v1502
        %v1535 = vadd.f32 %v1274, %v1503
        %v1536 = vadd.f32 %v1275, %v1504
        %v1537 = vadd.f32 %v1276, %v1505
        %v1538 = vadd.f32 %v1277, %v1506
        %v1539 = vadd.f32 %v1278, %v1507
        %v1540 = vadd.f32 %v1279, %v1508
        %v1541 = vadd.f32 %v1280, %v1509
        %v1542 = vadd.f32 %v1281, %v1510
        %v1543 = vadd.f32 %v1282, %v1511
        %v1544 = vadd.f32 %v1283, %v1512
        %v1545 = vadd.f32 %v1284, %v1513
        %v1546 = vadd.f32 %v1285, %v1514
        %v1547 = vadd.f32 %v1286, %v1515
        %v1548 = vadd.f32 %v1287, %v1516
        %v1549 = vadd.f32 %v1288, %v1517
        %v1550 = vadd.f32 %v1289, %v1518
        %v1551 = vadd.f32 %v1290, %v1519
        %v1552 = vadd.f32 %v1291, %v1520
        %v1553 = vadd.f32 %v1292, %v1521
        %v1554 = vadd.f32 %v1293, %v1522
        %v1555 = vadd.f32 %v1294, %v1523
        %v1556 = vadd.f32 %v1295, %v1524
        %v1557 = vadd.f32 %v1296, %v1525
        %v1558 = vadd.f32 %v1297, %v1526
        %v1559 = vadd.f32 %v1298, %v1527
        %v1560 = vadd.f32 %v1299, %v1528
        %v1561 = vadd.f32 %v1300, %v1529
        %v1562 = vadd.f32 %v1301, %v1530
        %v1563 = vadd.f32 %v1302, %v1531
        %v1564 = vadd.f32 %v1303, %v1532
        %v1565 = vadd.f32 %v1304, %v1533
        %v1566 = vld [vmem:[#allocation2 + $0x9] sm:$0xff]
        %v1567 = vld [vmem:[#allocation2 + $0x11] sm:$0xff]
        %v1568 = vld [vmem:[#allocation2 + $0x19] sm:$0xff]
        %v1569 = vld [vmem:[#allocation2 + $0x21] sm:$0xff]
        %v1570 = vld [vmem:[#allocation2 + $0x29] sm:$0xff]
        %v1571 = vld [vmem:[#allocation2 + $0x31] sm:$0xff]
        %v1572 = vld [vmem:[#allocation2 + $0x39] sm:$0xff]
        %v1573 = vld [vmem:[#allocation2 + $0x41] sm:$0xff]
        %v1574 = vld [vmem:[#allocation2 + $0x49] sm:$0xff]
        %v1575 = vld [vmem:[#allocation2 + $0x51] sm:$0xff]
        %v1576 = vld [vmem:[#allocation2 + $0x59] sm:$0xff]
        %v1577 = vld [vmem:[#allocation2 + $0x61] sm:$0xff]
        %v1578 = vld [vmem:[#allocation2 + $0x69] sm:$0xff]
        %v1579 = vld [vmem:[#allocation2 + $0x71] sm:$0xff]
        %v1580 = vld [vmem:[#allocation2 + $0x79] sm:$0xff]
        %v1581 = vld [vmem:[#allocation2 + $0x81] sm:$0xff]
        %v1582 = vld [vmem:[#allocation2 + $0x89] sm:$0xff]
        %v1583 = vld [vmem:[#allocation2 + $0x91] sm:$0xff]
        %v1584 = vld [vmem:[#allocation2 + $0x99] sm:$0xff]
        %v1585 = vld [vmem:[#allocation2 + $0xa1] sm:$0xff]
        %v1586 = vld [vmem:[#allocation2 + $0xa9] sm:$0xff]
        %v1587 = vld [vmem:[#allocation2 + $0xb1] sm:$0xff]
        %v1588 = vld [vmem:[#allocation2 + $0xb9] sm:$0xff]
        %v1589 = vld [vmem:[#allocation2 + $0xc1] sm:$0xff]
        %v1590 = vld [vmem:[#allocation2 + $0xc9] sm:$0xff]
        %v1591 = vld [vmem:[#allocation2 + $0xd1] sm:$0xff]
        %v1592 = vld [vmem:[#allocation2 + $0xd9] sm:$0xff]
        %v1593 = vld [vmem:[#allocation2 + $0xe1] sm:$0xff]
        %v1594 = vld [vmem:[#allocation2 + $0xe9] sm:$0xff]
        %v1595 = vld [vmem:[#allocation2 + $0xf1] sm:$0xff]
        %v1596 = vld [vmem:[#allocation2 + $0xf9] sm:$0xff]
        %v1597 = vld [vmem:[#allocation2 + $0x101] sm:$0xff]
        %v1598 = vld [vmem:[%s6 + $0x2] sm:$0x1]
        %v1599 = vlaneseq
        %v1600 = vshrl.u32 %v1599, 7
        %v1601 = vsub.s32 0, %v1600
        %v1602 = vrot.slane %v1598, %v1601
        %v1603 = vmul.f32 %v1566, %v1602
        %v1604 = vmul.f32 %v1567, %v1602
        %v1605 = vmul.f32 %v1568, %v1602
        %v1606 = vmul.f32 %v1569, %v1602
        %v1607 = vmul.f32 %v1570, %v1602
        %v1608 = vmul.f32 %v1571, %v1602
        %v1609 = vmul.f32 %v1572, %v1602
        %v1610 = vmul.f32 %v1573, %v1602
        %v1611 = vmul.f32 %v1574, %v1602
        %v1612 = vmul.f32 %v1575, %v1602
        %v1613 = vmul.f32 %v1576, %v1602
        %v1614 = vmul.f32 %v1577, %v1602
        %v1615 = vmul.f32 %v1578, %v1602
        %v1616 = vmul.f32 %v1579, %v1602
        %v1617 = vmul.f32 %v1580, %v1602
        %v1618 = vmul.f32 %v1581, %v1602
        %v1619 = vmul.f32 %v1582, %v1602
        %v1620 = vmul.f32 %v1583, %v1602
        %v1621 = vmul.f32 %v1584, %v1602
        %v1622 = vmul.f32 %v1585, %v1602
        %v1623 = vmul.f32 %v1586, %v1602
        %v1624 = vmul.f32 %v1587, %v1602
        %v1625 = vmul.f32 %v1588, %v1602
        %v1626 = vmul.f32 %v1589, %v1602
        %v1627 = vmul.f32 %v1590, %v1602
        %v1628 = vmul.f32 %v1591, %v1602
        %v1629 = vmul.f32 %v1592, %v1602
        %v1630 = vmul.f32 %v1593, %v1602
        %v1631 = vmul.f32 %v1594, %v1602
        %v1632 = vmul.f32 %v1595, %v1602
        %v1633 = vmul.f32 %v1596, %v1602
        %v1634 = vmul.f32 %v1597, %v1602
        %1635 = vset.pattern.permute.xlu0 2
        %1636 = vperm.xlu0 %1635, %v395
        %v1637 = vpop.permute.xlu0 %1636
        %1639 = vset.pattern.permute.xlu0 2
        %1640 = vperm.xlu0 %1639, %v396
        %v1641 = vpop.permute.xlu0 %1640
        %1643 = vset.pattern.permute.xlu0 2
        %1644 = vperm.xlu0 %1643, %v397
        %v1645 = vpop.permute.xlu0 %1644
        %1647 = vset.pattern.permute.xlu0 2
        %1648 = vperm.xlu0 %1647, %v398
        %v1649 = vpop.permute.xlu0 %1648
        %1651 = vset.pattern.permute.xlu0 2
        %1652 = vperm.xlu0 %1651, %v399
        %v1653 = vpop.permute.xlu0 %1652
        %1655 = vset.pattern.permute.xlu0 2
        %1656 = vperm.xlu0 %1655, %v400
        %v1657 = vpop.permute.xlu0 %1656
        %1659 = vset.pattern.permute.xlu0 2
        %1660 = vperm.xlu0 %1659, %v401
        %v1661 = vpop.permute.xlu0 %1660
        %1663 = vset.pattern.permute.xlu0 2
        %1664 = vperm.xlu0 %1663, %v402
        %v1665 = vpop.permute.xlu0 %1664
        %1667 = vset.pattern.permute.xlu0 2
        %1668 = vperm.xlu0 %1667, %v403
        %v1669 = vpop.permute.xlu0 %1668
        %1671 = vset.pattern.permute.xlu0 2
        %1672 = vperm.xlu0 %1671, %v404
        %v1673 = vpop.permute.xlu0 %1672
        %1675 = vset.pattern.permute.xlu0 2
        %1676 = vperm.xlu0 %1675, %v405
        %v1677 = vpop.permute.xlu0 %1676
        %1679 = vset.pattern.permute.xlu0 2
        %1680 = vperm.xlu0 %1679, %v406
        %v1681 = vpop.permute.xlu0 %1680
        %1683 = vset.pattern.permute.xlu0 2
        %1684 = vperm.xlu0 %1683, %v407
        %v1685 = vpop.permute.xlu0 %1684
        %1687 = vset.pattern.permute.xlu0 2
        %1688 = vperm.xlu0 %1687, %v408
        %v1689 = vpop.permute.xlu0 %1688
        %1691 = vset.pattern.permute.xlu0 2
        %1692 = vperm.xlu0 %1691, %v409
        %v1693 = vpop.permute.xlu0 %1692
        %1695 = vset.pattern.permute.xlu0 2
        %1696 = vperm.xlu0 %1695, %v410
        %v1697 = vpop.permute.xlu0 %1696
        %1699 = vset.pattern.permute.xlu0 2
        %1700 = vperm.xlu0 %1699, %v411
        %v1701 = vpop.permute.xlu0 %1700
        %1703 = vset.pattern.permute.xlu0 2
        %1704 = vperm.xlu0 %1703, %v412
        %v1705 = vpop.permute.xlu0 %1704
        %1707 = vset.pattern.permute.xlu0 2
        %1708 = vperm.xlu0 %1707, %v413
        %v1709 = vpop.permute.xlu0 %1708
        %1711 = vset.pattern.permute.xlu0 2
        %1712 = vperm.xlu0 %1711, %v414
        %v1713 = vpop.permute.xlu0 %1712
        %1715 = vset.pattern.permute.xlu0 2
        %1716 = vperm.xlu0 %1715, %v415
        %v1717 = vpop.permute.xlu0 %1716
        %1719 = vset.pattern.permute.xlu0 2
        %1720 = vperm.xlu0 %1719, %v416
        %v1721 = vpop.permute.xlu0 %1720
        %1723 = vset.pattern.permute.xlu0 2
        %1724 = vperm.xlu0 %1723, %v417
        %v1725 = vpop.permute.xlu0 %1724
        %1727 = vset.pattern.permute.xlu0 2
        %1728 = vperm.xlu0 %1727, %v418
        %v1729 = vpop.permute.xlu0 %1728
        %1731 = vset.pattern.permute.xlu0 2
        %1732 = vperm.xlu0 %1731, %v419
        %v1733 = vpop.permute.xlu0 %1732
        %1735 = vset.pattern.permute.xlu0 2
        %1736 = vperm.xlu0 %1735, %v420
        %v1737 = vpop.permute.xlu0 %1736
        %1739 = vset.pattern.permute.xlu0 2
        %1740 = vperm.xlu0 %1739, %v421
        %v1741 = vpop.permute.xlu0 %1740
        %1743 = vset.pattern.permute.xlu0 2
        %1744 = vperm.xlu0 %1743, %v422
        %v1745 = vpop.permute.xlu0 %1744
        %1747 = vset.pattern.permute.xlu0 2
        %1748 = vperm.xlu0 %1747, %v423
        %v1749 = vpop.permute.xlu0 %1748
        %1751 = vset.pattern.permute.xlu0 2
        %1752 = vperm.xlu0 %1751, %v424
        %v1753 = vpop.permute.xlu0 %1752
        %1755 = vset.pattern.permute.xlu0 2
        %1756 = vperm.xlu0 %1755, %v425
        %v1757 = vpop.permute.xlu0 %1756
        %1759 = vset.pattern.permute.xlu0 2
        %1760 = vperm.xlu0 %1759, %v426
        %v1761 = vpop.permute.xlu0 %1760
        %v1763 = vmul.f32 %v1603, %v1637
        %v1764 = vmul.f32 %v1604, %v1641
        %v1765 = vmul.f32 %v1605, %v1645
        %v1766 = vmul.f32 %v1606, %v1649
        %v1767 = vmul.f32 %v1607, %v1653
        %v1768 = vmul.f32 %v1608, %v1657
        %v1769 = vmul.f32 %v1609, %v1661
        %v1770 = vmul.f32 %v1610, %v1665
        %v1771 = vmul.f32 %v1611, %v1669
        %v1772 = vmul.f32 %v1612, %v1673
        %v1773 = vmul.f32 %v1613, %v1677
        %v1774 = vmul.f32 %v1614, %v1681
        %v1775 = vmul.f32 %v1615, %v1685
        %v1776 = vmul.f32 %v1616, %v1689
        %v1777 = vmul.f32 %v1617, %v1693
        %v1778 = vmul.f32 %v1618, %v1697
        %v1779 = vmul.f32 %v1619, %v1701
        %v1780 = vmul.f32 %v1620, %v1705
        %v1781 = vmul.f32 %v1621, %v1709
        %v1782 = vmul.f32 %v1622, %v1713
        %v1783 = vmul.f32 %v1623, %v1717
        %v1784 = vmul.f32 %v1624, %v1721
        %v1785 = vmul.f32 %v1625, %v1725
        %v1786 = vmul.f32 %v1626, %v1729
        %v1787 = vmul.f32 %v1627, %v1733
        %v1788 = vmul.f32 %v1628, %v1737
        %v1789 = vmul.f32 %v1629, %v1741
        %v1790 = vmul.f32 %v1630, %v1745
        %v1791 = vmul.f32 %v1631, %v1749
        %v1792 = vmul.f32 %v1632, %v1753
        %v1793 = vmul.f32 %v1633, %v1757
        %v1794 = vmul.f32 %v1634, %v1761
        %v1795 = vadd.f32 %v1534, %v1763
        %v1796 = vadd.f32 %v1535, %v1764
        %v1797 = vadd.f32 %v1536, %v1765
        %v1798 = vadd.f32 %v1537, %v1766
        %v1799 = vadd.f32 %v1538, %v1767
        %v1800 = vadd.f32 %v1539, %v1768
        %v1801 = vadd.f32 %v1540, %v1769
        %v1802 = vadd.f32 %v1541, %v1770
        %v1803 = vadd.f32 %v1542, %v1771
        %v1804 = vadd.f32 %v1543, %v1772
        %v1805 = vadd.f32 %v1544, %v1773
        %v1806 = vadd.f32 %v1545, %v1774
        %v1807 = vadd.f32 %v1546, %v1775
        %v1808 = vadd.f32 %v1547, %v1776
        %v1809 = vadd.f32 %v1548, %v1777
        %v1810 = vadd.f32 %v1549, %v1778
        %v1811 = vadd.f32 %v1550, %v1779
        %v1812 = vadd.f32 %v1551, %v1780
        %v1813 = vadd.f32 %v1552, %v1781
        %v1814 = vadd.f32 %v1553, %v1782
        %v1815 = vadd.f32 %v1554, %v1783
        %v1816 = vadd.f32 %v1555, %v1784
        %v1817 = vadd.f32 %v1556, %v1785
        %v1818 = vadd.f32 %v1557, %v1786
        %v1819 = vadd.f32 %v1558, %v1787
        %v1820 = vadd.f32 %v1559, %v1788
        %v1821 = vadd.f32 %v1560, %v1789
        %v1822 = vadd.f32 %v1561, %v1790
        %v1823 = vadd.f32 %v1562, %v1791
        %v1824 = vadd.f32 %v1563, %v1792
        %v1825 = vadd.f32 %v1564, %v1793
        %v1826 = vadd.f32 %v1565, %v1794
        %v1827 = vld [vmem:[#allocation2 + $0xf] sm:$0xff]
        %v1828 = vld [vmem:[#allocation2 + $0x17] sm:$0xff]
        %v1829 = vld [vmem:[#allocation2 + $0x1f] sm:$0xff]
        %v1830 = vld [vmem:[#allocation2 + $0x27] sm:$0xff]
        %v1831 = vld [vmem:[#allocation2 + $0x2f] sm:$0xff]
        %v1832 = vld [vmem:[#allocation2 + $0x37] sm:$0xff]
        %v1833 = vld [vmem:[#allocation2 + $0x3f] sm:$0xff]
        %v1834 = vld [vmem:[#allocation2 + $0x47] sm:$0xff]
        %v1835 = vld [vmem:[#allocation2 + $0x4f] sm:$0xff]
        %v1836 = vld [vmem:[#allocation2 + $0x57] sm:$0xff]
        %v1837 = vld [vmem:[#allocation2 + $0x5f] sm:$0xff]
        %v1838 = vld [vmem:[#allocation2 + $0x67] sm:$0xff]
        %v1839 = vld [vmem:[#allocation2 + $0x6f] sm:$0xff]
        %v1840 = vld [vmem:[#allocation2 + $0x77] sm:$0xff]
        %v1841 = vld [vmem:[#allocation2 + $0x7f] sm:$0xff]
        %v1842 = vld [vmem:[#allocation2 + $0x87] sm:$0xff]
        %v1843 = vld [vmem:[#allocation2 + $0x8f] sm:$0xff]
        %v1844 = vld [vmem:[#allocation2 + $0x97] sm:$0xff]
        %v1845 = vld [vmem:[#allocation2 + $0x9f] sm:$0xff]
        %v1846 = vld [vmem:[#allocation2 + $0xa7] sm:$0xff]
        %v1847 = vld [vmem:[#allocation2 + $0xaf] sm:$0xff]
        %v1848 = vld [vmem:[#allocation2 + $0xb7] sm:$0xff]
        %v1849 = vld [vmem:[#allocation2 + $0xbf] sm:$0xff]
        %v1850 = vld [vmem:[#allocation2 + $0xc7] sm:$0xff]
        %v1851 = vld [vmem:[#allocation2 + $0xcf] sm:$0xff]
        %v1852 = vld [vmem:[#allocation2 + $0xd7] sm:$0xff]
        %v1853 = vld [vmem:[#allocation2 + $0xdf] sm:$0xff]
        %v1854 = vld [vmem:[#allocation2 + $0xe7] sm:$0xff]
        %v1855 = vld [vmem:[#allocation2 + $0xef] sm:$0xff]
        %v1856 = vld [vmem:[#allocation2 + $0xf7] sm:$0xff]
        %v1857 = vld [vmem:[#allocation2 + $0xff] sm:$0xff]
        %v1858 = vld [vmem:[#allocation2 + $0x107] sm:$0xff]
        %v1859 = vld [vmem:[%s6 + $0x3] sm:$0x1]
        %v1860 = vlaneseq
        %v1861 = vshrl.u32 %v1860, 7
        %v1862 = vsub.s32 0, %v1861
        %v1863 = vrot.slane %v1859, %v1862
        %v1864 = vmul.f32 %v1827, %v1863
        %v1865 = vmul.f32 %v1828, %v1863
        %v1866 = vmul.f32 %v1829, %v1863
        %v1867 = vmul.f32 %v1830, %v1863
        %v1868 = vmul.f32 %v1831, %v1863
        %v1869 = vmul.f32 %v1832, %v1863
        %v1870 = vmul.f32 %v1833, %v1863
        %v1871 = vmul.f32 %v1834, %v1863
        %v1872 = vmul.f32 %v1835, %v1863
        %v1873 = vmul.f32 %v1836, %v1863
        %v1874 = vmul.f32 %v1837, %v1863
        %v1875 = vmul.f32 %v1838, %v1863
        %v1876 = vmul.f32 %v1839, %v1863
        %v1877 = vmul.f32 %v1840, %v1863
        %v1878 = vmul.f32 %v1841, %v1863
        %v1879 = vmul.f32 %v1842, %v1863
        %v1880 = vmul.f32 %v1843, %v1863
        %v1881 = vmul.f32 %v1844, %v1863
        %v1882 = vmul.f32 %v1845, %v1863
        %v1883 = vmul.f32 %v1846, %v1863
        %v1884 = vmul.f32 %v1847, %v1863
        %v1885 = vmul.f32 %v1848, %v1863
        %v1886 = vmul.f32 %v1849, %v1863
        %v1887 = vmul.f32 %v1850, %v1863
        %v1888 = vmul.f32 %v1851, %v1863
        %v1889 = vmul.f32 %v1852, %v1863
        %v1890 = vmul.f32 %v1853, %v1863
        %v1891 = vmul.f32 %v1854, %v1863
        %v1892 = vmul.f32 %v1855, %v1863
        %v1893 = vmul.f32 %v1856, %v1863
        %v1894 = vmul.f32 %v1857, %v1863
        %v1895 = vmul.f32 %v1858, %v1863
        %1896 = vset.pattern.permute.xlu0 3
        %1897 = vperm.xlu0 %1896, %v395
        %v1898 = vpop.permute.xlu0 %1897
        %1900 = vset.pattern.permute.xlu0 3
        %1901 = vperm.xlu0 %1900, %v396
        %v1902 = vpop.permute.xlu0 %1901
        %1904 = vset.pattern.permute.xlu0 3
        %1905 = vperm.xlu0 %1904, %v397
        %v1906 = vpop.permute.xlu0 %1905
        %1908 = vset.pattern.permute.xlu0 3
        %1909 = vperm.xlu0 %1908, %v398
        %v1910 = vpop.permute.xlu0 %1909
        %1912 = vset.pattern.permute.xlu0 3
        %1913 = vperm.xlu0 %1912, %v399
        %v1914 = vpop.permute.xlu0 %1913
        %1916 = vset.pattern.permute.xlu0 3
        %1917 = vperm.xlu0 %1916, %v400
        %v1918 = vpop.permute.xlu0 %1917
        %1920 = vset.pattern.permute.xlu0 3
        %1921 = vperm.xlu0 %1920, %v401
        %v1922 = vpop.permute.xlu0 %1921
        %1924 = vset.pattern.permute.xlu0 3
        %1925 = vperm.xlu0 %1924, %v402
        %v1926 = vpop.permute.xlu0 %1925
        %1928 = vset.pattern.permute.xlu0 3
        %1929 = vperm.xlu0 %1928, %v403
        %v1930 = vpop.permute.xlu0 %1929
        %1932 = vset.pattern.permute.xlu0 3
        %1933 = vperm.xlu0 %1932, %v404
        %v1934 = vpop.permute.xlu0 %1933
        %1936 = vset.pattern.permute.xlu0 3
        %1937 = vperm.xlu0 %1936, %v405
        %v1938 = vpop.permute.xlu0 %1937
        %1940 = vset.pattern.permute.xlu0 3
        %1941 = vperm.xlu0 %1940, %v406
        %v1942 = vpop.permute.xlu0 %1941
        %1944 = vset.pattern.permute.xlu0 3
        %1945 = vperm.xlu0 %1944, %v407
        %v1946 = vpop.permute.xlu0 %1945
        %1948 = vset.pattern.permute.xlu0 3
        %1949 = vperm.xlu0 %1948, %v408
        %v1950 = vpop.permute.xlu0 %1949
        %1952 = vset.pattern.permute.xlu0 3
        %1953 = vperm.xlu0 %1952, %v409
        %v1954 = vpop.permute.xlu0 %1953
        %1956 = vset.pattern.permute.xlu0 3
        %1957 = vperm.xlu0 %1956, %v410
        %v1958 = vpop.permute.xlu0 %1957
        %1960 = vset.pattern.permute.xlu0 3
        %1961 = vperm.xlu0 %1960, %v411
        %v1962 = vpop.permute.xlu0 %1961
        %1964 = vset.pattern.permute.xlu0 3
        %1965 = vperm.xlu0 %1964, %v412
        %v1966 = vpop.permute.xlu0 %1965
        %1968 = vset.pattern.permute.xlu0 3
        %1969 = vperm.xlu0 %1968, %v413
        %v1970 = vpop.permute.xlu0 %1969
        %1972 = vset.pattern.permute.xlu0 3
        %1973 = vperm.xlu0 %1972, %v414
        %v1974 = vpop.permute.xlu0 %1973
        %1976 = vset.pattern.permute.xlu0 3
        %1977 = vperm.xlu0 %1976, %v415
        %v1978 = vpop.permute.xlu0 %1977
        %1980 = vset.pattern.permute.xlu0 3
        %1981 = vperm.xlu0 %1980, %v416
        %v1982 = vpop.permute.xlu0 %1981
        %1984 = vset.pattern.permute.xlu0 3
        %1985 = vperm.xlu0 %1984, %v417
        %v1986 = vpop.permute.xlu0 %1985
        %1988 = vset.pattern.permute.xlu0 3
        %1989 = vperm.xlu0 %1988, %v418
        %v1990 = vpop.permute.xlu0 %1989
        %1992 = vset.pattern.permute.xlu0 3
        %1993 = vperm.xlu0 %1992, %v419
        %v1994 = vpop.permute.xlu0 %1993
        %1996 = vset.pattern.permute.xlu0 3
        %1997 = vperm.xlu0 %1996, %v420
        %v1998 = vpop.permute.xlu0 %1997
        %2000 = vset.pattern.permute.xlu0 3
        %2001 = vperm.xlu0 %2000, %v421
        %v2002 = vpop.permute.xlu0 %2001
        %2004 = vset.pattern.permute.xlu0 3
        %2005 = vperm.xlu0 %2004, %v422
        %v2006 = vpop.permute.xlu0 %2005
        %2008 = vset.pattern.permute.xlu0 3
        %2009 = vperm.xlu0 %2008, %v423
        %v2010 = vpop.permute.xlu0 %2009
        %2012 = vset.pattern.permute.xlu0 3
        %2013 = vperm.xlu0 %2012, %v424
        %v2014 = vpop.permute.xlu0 %2013
        %2016 = vset.pattern.permute.xlu0 3
        %2017 = vperm.xlu0 %2016, %v425
        %v2018 = vpop.permute.xlu0 %2017
        %2020 = vset.pattern.permute.xlu0 3
        %2021 = vperm.xlu0 %2020, %v426
        %v2022 = vpop.permute.xlu0 %2021
        %v2024 = vmul.f32 %v1864, %v1898
        %v2025 = vmul.f32 %v1865, %v1902
        %v2026 = vmul.f32 %v1866, %v1906
        %v2027 = vmul.f32 %v1867, %v1910
        %v2028 = vmul.f32 %v1868, %v1914
        %v2029 = vmul.f32 %v1869, %v1918
        %v2030 = vmul.f32 %v1870, %v1922
        %v2031 = vmul.f32 %v1871, %v1926
        %v2032 = vmul.f32 %v1872, %v1930
        %v2033 = vmul.f32 %v1873, %v1934
        %v2034 = vmul.f32 %v1874, %v1938
        %v2035 = vmul.f32 %v1875, %v1942
        %v2036 = vmul.f32 %v1876, %v1946
        %v2037 = vmul.f32 %v1877, %v1950
        %v2038 = vmul.f32 %v1878, %v1954
        %v2039 = vmul.f32 %v1879, %v1958
        %v2040 = vmul.f32 %v1880, %v1962
        %v2041 = vmul.f32 %v1881, %v1966
        %v2042 = vmul.f32 %v1882, %v1970
        %v2043 = vmul.f32 %v1883, %v1974
        %v2044 = vmul.f32 %v1884, %v1978
        %v2045 = vmul.f32 %v1885, %v1982
        %v2046 = vmul.f32 %v1886, %v1986
        %v2047 = vmul.f32 %v1887, %v1990
        %v2048 = vmul.f32 %v1888, %v1994
        %v2049 = vmul.f32 %v1889, %v1998
        %v2050 = vmul.f32 %v1890, %v2002
        %v2051 = vmul.f32 %v1891, %v2006
        %v2052 = vmul.f32 %v1892, %v2010
        %v2053 = vmul.f32 %v1893, %v2014
        %v2054 = vmul.f32 %v1894, %v2018
        %v2055 = vmul.f32 %v1895, %v2022
        %v2056 = vadd.f32 %v1795, %v2024
        %v2057 = vadd.f32 %v1796, %v2025
        %v2058 = vadd.f32 %v1797, %v2026
        %v2059 = vadd.f32 %v1798, %v2027
        %v2060 = vadd.f32 %v1799, %v2028
        %v2061 = vadd.f32 %v1800, %v2029
        %v2062 = vadd.f32 %v1801, %v2030
        %v2063 = vadd.f32 %v1802, %v2031
        %v2064 = vadd.f32 %v1803, %v2032
        %v2065 = vadd.f32 %v1804, %v2033
        %v2066 = vadd.f32 %v1805, %v2034
        %v2067 = vadd.f32 %v1806, %v2035
        %v2068 = vadd.f32 %v1807, %v2036
        %v2069 = vadd.f32 %v1808, %v2037
        %v2070 = vadd.f32 %v1809, %v2038
        %v2071 = vadd.f32 %v1810, %v2039
        %v2072 = vadd.f32 %v1811, %v2040
        %v2073 = vadd.f32 %v1812, %v2041
        %v2074 = vadd.f32 %v1813, %v2042
        %v2075 = vadd.f32 %v1814, %v2043
        %v2076 = vadd.f32 %v1815, %v2044
        %v2077 = vadd.f32 %v1816, %v2045
        %v2078 = vadd.f32 %v1817, %v2046
        %v2079 = vadd.f32 %v1818, %v2047
        %v2080 = vadd.f32 %v1819, %v2048
        %v2081 = vadd.f32 %v1820, %v2049
        %v2082 = vadd.f32 %v1821, %v2050
        %v2083 = vadd.f32 %v1822, %v2051
        %v2084 = vadd.f32 %v1823, %v2052
        %v2085 = vadd.f32 %v1824, %v2053
        %v2086 = vadd.f32 %v1825, %v2054
        %v2087 = vadd.f32 %v1826, %v2055
        %v2088 = vld [vmem:[#allocation2 + $0x10] sm:$0xff]
        %v2089 = vld [vmem:[#allocation2 + $0x18] sm:$0xff]
        %v2090 = vld [vmem:[#allocation2 + $0x20] sm:$0xff]
        %v2091 = vld [vmem:[#allocation2 + $0x28] sm:$0xff]
        %v2092 = vld [vmem:[#allocation2 + $0x30] sm:$0xff]
        %v2093 = vld [vmem:[#allocation2 + $0x38] sm:$0xff]
        %v2094 = vld [vmem:[#allocation2 + $0x40] sm:$0xff]
        %v2095 = vld [vmem:[#allocation2 + $0x48] sm:$0xff]
        %v2096 = vld [vmem:[#allocation2 + $0x50] sm:$0xff]
        %v2097 = vld [vmem:[#allocation2 + $0x58] sm:$0xff]
        %v2098 = vld [vmem:[#allocation2 + $0x60] sm:$0xff]
        %v2099 = vld [vmem:[#allocation2 + $0x68] sm:$0xff]
        %v2100 = vld [vmem:[#allocation2 + $0x70] sm:$0xff]
        %v2101 = vld [vmem:[#allocation2 + $0x78] sm:$0xff]
        %v2102 = vld [vmem:[#allocation2 + $0x80] sm:$0xff]
        %v2103 = vld [vmem:[#allocation2 + $0x88] sm:$0xff]
        %v2104 = vld [vmem:[#allocation2 + $0x90] sm:$0xff]
        %v2105 = vld [vmem:[#allocation2 + $0x98] sm:$0xff]
        %v2106 = vld [vmem:[#allocation2 + $0xa0] sm:$0xff]
        %v2107 = vld [vmem:[#allocation2 + $0xa8] sm:$0xff]
        %v2108 = vld [vmem:[#allocation2 + $0xb0] sm:$0xff]
        %v2109 = vld [vmem:[#allocation2 + $0xb8] sm:$0xff]
        %v2110 = vld [vmem:[#allocation2 + $0xc0] sm:$0xff]
        %v2111 = vld [vmem:[#allocation2 + $0xc8] sm:$0xff]
        %v2112 = vld [vmem:[#allocation2 + $0xd0] sm:$0xff]
        %v2113 = vld [vmem:[#allocation2 + $0xd8] sm:$0xff]
        %v2114 = vld [vmem:[#allocation2 + $0xe0] sm:$0xff]
        %v2115 = vld [vmem:[#allocation2 + $0xe8] sm:$0xff]
        %v2116 = vld [vmem:[#allocation2 + $0xf0] sm:$0xff]
        %v2117 = vld [vmem:[#allocation2 + $0xf8] sm:$0xff]
        %v2118 = vld [vmem:[#allocation2 + $0x100] sm:$0xff]
        %v2119 = vld [vmem:[#allocation2 + $0x108] sm:$0xff]
        %v2120 = vld [vmem:[%s6 + $0x4] sm:$0x1]
        %v2121 = vlaneseq
        %v2122 = vshrl.u32 %v2121, 7
        %v2123 = vsub.s32 0, %v2122
        %v2124 = vrot.slane %v2120, %v2123
        %v2125 = vmul.f32 %v2088, %v2124
        %v2126 = vmul.f32 %v2089, %v2124
        %v2127 = vmul.f32 %v2090, %v2124
        %v2128 = vmul.f32 %v2091, %v2124
        %v2129 = vmul.f32 %v2092, %v2124
        %v2130 = vmul.f32 %v2093, %v2124
        %v2131 = vmul.f32 %v2094, %v2124
        %v2132 = vmul.f32 %v2095, %v2124
        %v2133 = vmul.f32 %v2096, %v2124
        %v2134 = vmul.f32 %v2097, %v2124
        %v2135 = vmul.f32 %v2098, %v2124
        %v2136 = vmul.f32 %v2099, %v2124
        %v2137 = vmul.f32 %v2100, %v2124
        %v2138 = vmul.f32 %v2101, %v2124
        %v2139 = vmul.f32 %v2102, %v2124
        %v2140 = vmul.f32 %v2103, %v2124
        %v2141 = vmul.f32 %v2104, %v2124
        %v2142 = vmul.f32 %v2105, %v2124
        %v2143 = vmul.f32 %v2106, %v2124
        %v2144 = vmul.f32 %v2107, %v2124
        %v2145 = vmul.f32 %v2108, %v2124
        %v2146 = vmul.f32 %v2109, %v2124
        %v2147 = vmul.f32 %v2110, %v2124
        %v2148 = vmul.f32 %v2111, %v2124
        %v2149 = vmul.f32 %v2112, %v2124
        %v2150 = vmul.f32 %v2113, %v2124
        %v2151 = vmul.f32 %v2114, %v2124
        %v2152 = vmul.f32 %v2115, %v2124
        %v2153 = vmul.f32 %v2116, %v2124
        %v2154 = vmul.f32 %v2117, %v2124
        %v2155 = vmul.f32 %v2118, %v2124
        %v2156 = vmul.f32 %v2119, %v2124
        %v2157 = vadd.f32 %v2056, %v2125
        %v2158 = vadd.f32 %v2057, %v2126
        %v2159 = vadd.f32 %v2058, %v2127
        %v2160 = vadd.f32 %v2059, %v2128
        %v2161 = vadd.f32 %v2060, %v2129
        %v2162 = vadd.f32 %v2061, %v2130
        %v2163 = vadd.f32 %v2062, %v2131
        %v2164 = vadd.f32 %v2063, %v2132
        %v2165 = vadd.f32 %v2064, %v2133
        %v2166 = vadd.f32 %v2065, %v2134
        %v2167 = vadd.f32 %v2066, %v2135
        %v2168 = vadd.f32 %v2067, %v2136
        %v2169 = vadd.f32 %v2068, %v2137
        %v2170 = vadd.f32 %v2069, %v2138
        %v2171 = vadd.f32 %v2070, %v2139
        %v2172 = vadd.f32 %v2071, %v2140
        %v2173 = vadd.f32 %v2072, %v2141
        %v2174 = vadd.f32 %v2073, %v2142
        %v2175 = vadd.f32 %v2074, %v2143
        %v2176 = vadd.f32 %v2075, %v2144
        %v2177 = vadd.f32 %v2076, %v2145
        %v2178 = vadd.f32 %v2077, %v2146
        %v2179 = vadd.f32 %v2078, %v2147
        %v2180 = vadd.f32 %v2079, %v2148
        %v2181 = vadd.f32 %v2080, %v2149
        %v2182 = vadd.f32 %v2081, %v2150
        %v2183 = vadd.f32 %v2082, %v2151
        %v2184 = vadd.f32 %v2083, %v2152
        %v2185 = vadd.f32 %v2084, %v2153
        %v2186 = vadd.f32 %v2085, %v2154
        %v2187 = vadd.f32 %v2086, %v2155
        %v2188 = vadd.f32 %v2087, %v2156
        %v2189 = vld [vmem:[#allocation2 + $0x11] sm:$0xff]
        %v2190 = vld [vmem:[#allocation2 + $0x19] sm:$0xff]
        %v2191 = vld [vmem:[#allocation2 + $0x21] sm:$0xff]
        %v2192 = vld [vmem:[#allocation2 + $0x29] sm:$0xff]
        %v2193 = vld [vmem:[#allocation2 + $0x31] sm:$0xff]
        %v2194 = vld [vmem:[#allocation2 + $0x39] sm:$0xff]
        %v2195 = vld [vmem:[#allocation2 + $0x41] sm:$0xff]
        %v2196 = vld [vmem:[#allocation2 + $0x49] sm:$0xff]
        %v2197 = vld [vmem:[#allocation2 + $0x51] sm:$0xff]
        %v2198 = vld [vmem:[#allocation2 + $0x59] sm:$0xff]
        %v2199 = vld [vmem:[#allocation2 + $0x61] sm:$0xff]
        %v2200 = vld [vmem:[#allocation2 + $0x69] sm:$0xff]
        %v2201 = vld [vmem:[#allocation2 + $0x71] sm:$0xff]
        %v2202 = vld [vmem:[#allocation2 + $0x79] sm:$0xff]
        %v2203 = vld [vmem:[#allocation2 + $0x81] sm:$0xff]
        %v2204 = vld [vmem:[#allocation2 + $0x89] sm:$0xff]
        %v2205 = vld [vmem:[#allocation2 + $0x91] sm:$0xff]
        %v2206 = vld [vmem:[#allocation2 + $0x99] sm:$0xff]
        %v2207 = vld [vmem:[#allocation2 + $0xa1] sm:$0xff]
        %v2208 = vld [vmem:[#allocation2 + $0xa9] sm:$0xff]
        %v2209 = vld [vmem:[#allocation2 + $0xb1] sm:$0xff]
        %v2210 = vld [vmem:[#allocation2 + $0xb9] sm:$0xff]
        %v2211 = vld [vmem:[#allocation2 + $0xc1] sm:$0xff]
        %v2212 = vld [vmem:[#allocation2 + $0xc9] sm:$0xff]
        %v2213 = vld [vmem:[#allocation2 + $0xd1] sm:$0xff]
        %v2214 = vld [vmem:[#allocation2 + $0xd9] sm:$0xff]
        %v2215 = vld [vmem:[#allocation2 + $0xe1] sm:$0xff]
        %v2216 = vld [vmem:[#allocation2 + $0xe9] sm:$0xff]
        %v2217 = vld [vmem:[#allocation2 + $0xf1] sm:$0xff]
        %v2218 = vld [vmem:[#allocation2 + $0xf9] sm:$0xff]
        %v2219 = vld [vmem:[#allocation2 + $0x101] sm:$0xff]
        %v2220 = vld [vmem:[#allocation2 + $0x109] sm:$0xff]
        %v2221 = vld [vmem:[%s6 + $0x5] sm:$0x1]
        %v2222 = vlaneseq
        %v2223 = vshrl.u32 %v2222, 7
        %v2224 = vsub.s32 0, %v2223
        %v2225 = vrot.slane %v2221, %v2224
        %v2226 = vmul.f32 %v2189, %v2225
        %v2227 = vmul.f32 %v2190, %v2225
        %v2228 = vmul.f32 %v2191, %v2225
        %v2229 = vmul.f32 %v2192, %v2225
        %v2230 = vmul.f32 %v2193, %v2225
        %v2231 = vmul.f32 %v2194, %v2225
        %v2232 = vmul.f32 %v2195, %v2225
        %v2233 = vmul.f32 %v2196, %v2225
        %v2234 = vmul.f32 %v2197, %v2225
        %v2235 = vmul.f32 %v2198, %v2225
        %v2236 = vmul.f32 %v2199, %v2225
        %v2237 = vmul.f32 %v2200, %v2225
        %v2238 = vmul.f32 %v2201, %v2225
        %v2239 = vmul.f32 %v2202, %v2225
        %v2240 = vmul.f32 %v2203, %v2225
        %v2241 = vmul.f32 %v2204, %v2225
        %v2242 = vmul.f32 %v2205, %v2225
        %v2243 = vmul.f32 %v2206, %v2225
        %v2244 = vmul.f32 %v2207, %v2225
        %v2245 = vmul.f32 %v2208, %v2225
        %v2246 = vmul.f32 %v2209, %v2225
        %v2247 = vmul.f32 %v2210, %v2225
        %v2248 = vmul.f32 %v2211, %v2225
        %v2249 = vmul.f32 %v2212, %v2225
        %v2250 = vmul.f32 %v2213, %v2225
        %v2251 = vmul.f32 %v2214, %v2225
        %v2252 = vmul.f32 %v2215, %v2225
        %v2253 = vmul.f32 %v2216, %v2225
        %v2254 = vmul.f32 %v2217, %v2225
        %v2255 = vmul.f32 %v2218, %v2225
        %v2256 = vmul.f32 %v2219, %v2225
        %v2257 = vmul.f32 %v2220, %v2225
        %2258 = vset.pattern.permute.xlu0 5
        %2259 = vperm.xlu0 %2258, %v395
        %v2260 = vpop.permute.xlu0 %2259
        %2262 = vset.pattern.permute.xlu0 5
        %2263 = vperm.xlu0 %2262, %v396
        %v2264 = vpop.permute.xlu0 %2263
        %2266 = vset.pattern.permute.xlu0 5
        %2267 = vperm.xlu0 %2266, %v397
        %v2268 = vpop.permute.xlu0 %2267
        %2270 = vset.pattern.permute.xlu0 5
        %2271 = vperm.xlu0 %2270, %v398
        %v2272 = vpop.permute.xlu0 %2271
        %2274 = vset.pattern.permute.xlu0 5
        %2275 = vperm.xlu0 %2274, %v399
        %v2276 = vpop.permute.xlu0 %2275
        %2278 = vset.pattern.permute.xlu0 5
        %2279 = vperm.xlu0 %2278, %v400
        %v2280 = vpop.permute.xlu0 %2279
        %2282 = vset.pattern.permute.xlu0 5
        %2283 = vperm.xlu0 %2282, %v401
        %v2284 = vpop.permute.xlu0 %2283
        %2286 = vset.pattern.permute.xlu0 5
        %2287 = vperm.xlu0 %2286, %v402
        %v2288 = vpop.permute.xlu0 %2287
        %2290 = vset.pattern.permute.xlu0 5
        %2291 = vperm.xlu0 %2290, %v403
        %v2292 = vpop.permute.xlu0 %2291
        %2294 = vset.pattern.permute.xlu0 5
        %2295 = vperm.xlu0 %2294, %v404
        %v2296 = vpop.permute.xlu0 %2295
        %2298 = vset.pattern.permute.xlu0 5
        %2299 = vperm.xlu0 %2298, %v405
        %v2300 = vpop.permute.xlu0 %2299
        %2302 = vset.pattern.permute.xlu0 5
        %2303 = vperm.xlu0 %2302, %v406
        %v2304 = vpop.permute.xlu0 %2303
        %2306 = vset.pattern.permute.xlu0 5
        %2307 = vperm.xlu0 %2306, %v407
        %v2308 = vpop.permute.xlu0 %2307
        %2310 = vset.pattern.permute.xlu0 5
        %2311 = vperm.xlu0 %2310, %v408
        %v2312 = vpop.permute.xlu0 %2311
        %2314 = vset.pattern.permute.xlu0 5
        %2315 = vperm.xlu0 %2314, %v409
        %v2316 = vpop.permute.xlu0 %2315
        %2318 = vset.pattern.permute.xlu0 5
        %2319 = vperm.xlu0 %2318, %v410
        %v2320 = vpop.permute.xlu0 %2319
        %2322 = vset.pattern.permute.xlu0 5
        %2323 = vperm.xlu0 %2322, %v411
        %v2324 = vpop.permute.xlu0 %2323
        %2326 = vset.pattern.permute.xlu0 5
        %2327 = vperm.xlu0 %2326, %v412
        %v2328 = vpop.permute.xlu0 %2327
        %2330 = vset.pattern.permute.xlu0 5
        %2331 = vperm.xlu0 %2330, %v413
        %v2332 = vpop.permute.xlu0 %2331
        %2334 = vset.pattern.permute.xlu0 5
        %2335 = vperm.xlu0 %2334, %v414
        %v2336 = vpop.permute.xlu0 %2335
        %2338 = vset.pattern.permute.xlu0 5
        %2339 = vperm.xlu0 %2338, %v415
        %v2340 = vpop.permute.xlu0 %2339
        %2342 = vset.pattern.permute.xlu0 5
        %2343 = vperm.xlu0 %2342, %v416
        %v2344 = vpop.permute.xlu0 %2343
        %2346 = vset.pattern.permute.xlu0 5
        %2347 = vperm.xlu0 %2346, %v417
        %v2348 = vpop.permute.xlu0 %2347
        %2350 = vset.pattern.permute.xlu0 5
        %2351 = vperm.xlu0 %2350, %v418
        %v2352 = vpop.permute.xlu0 %2351
        %2354 = vset.pattern.permute.xlu0 5
        %2355 = vperm.xlu0 %2354, %v419
        %v2356 = vpop.permute.xlu0 %2355
        %2358 = vset.pattern.permute.xlu0 5
        %2359 = vperm.xlu0 %2358, %v420
        %v2360 = vpop.permute.xlu0 %2359
        %2362 = vset.pattern.permute.xlu0 5
        %2363 = vperm.xlu0 %2362, %v421
        %v2364 = vpop.permute.xlu0 %2363
        %2366 = vset.pattern.permute.xlu0 5
        %2367 = vperm.xlu0 %2366, %v422
        %v2368 = vpop.permute.xlu0 %2367
        %2370 = vset.pattern.permute.xlu0 5
        %2371 = vperm.xlu0 %2370, %v423
        %v2372 = vpop.permute.xlu0 %2371
        %2374 = vset.pattern.permute.xlu0 5
        %2375 = vperm.xlu0 %2374, %v424
        %v2376 = vpop.permute.xlu0 %2375
        %2378 = vset.pattern.permute.xlu0 5
        %2379 = vperm.xlu0 %2378, %v425
        %v2380 = vpop.permute.xlu0 %2379
        %2382 = vset.pattern.permute.xlu0 5
        %2383 = vperm.xlu0 %2382, %v426
        %v2384 = vpop.permute.xlu0 %2383
        %v2386 = vmul.f32 %v2226, %v2260
        %v2387 = vmul.f32 %v2227, %v2264
        %v2388 = vmul.f32 %v2228, %v2268
        %v2389 = vmul.f32 %v2229, %v2272
        %v2390 = vmul.f32 %v2230, %v2276
        %v2391 = vmul.f32 %v2231, %v2280
        %v2392 = vmul.f32 %v2232, %v2284
        %v2393 = vmul.f32 %v2233, %v2288
        %v2394 = vmul.f32 %v2234, %v2292
        %v2395 = vmul.f32 %v2235, %v2296
        %v2396 = vmul.f32 %v2236, %v2300
        %v2397 = vmul.f32 %v2237, %v2304
        %v2398 = vmul.f32 %v2238, %v2308
        %v2399 = vmul.f32 %v2239, %v2312
        %v2400 = vmul.f32 %v2240, %v2316
        %v2401 = vmul.f32 %v2241, %v2320
        %v2402 = vmul.f32 %v2242, %v2324
        %v2403 = vmul.f32 %v2243, %v2328
        %v2404 = vmul.f32 %v2244, %v2332
        %v2405 = vmul.f32 %v2245, %v2336
        %v2406 = vmul.f32 %v2246, %v2340
        %v2407 = vmul.f32 %v2247, %v2344
        %v2408 = vmul.f32 %v2248, %v2348
        %v2409 = vmul.f32 %v2249, %v2352
        %v2410 = vmul.f32 %v2250, %v2356
        %v2411 = vmul.f32 %v2251, %v2360
        %v2412 = vmul.f32 %v2252, %v2364
        %v2413 = vmul.f32 %v2253, %v2368
        %v2414 = vmul.f32 %v2254, %v2372
        %v2415 = vmul.f32 %v2255, %v2376
        %v2416 = vmul.f32 %v2256, %v2380
        %v2417 = vmul.f32 %v2257, %v2384
        %v2418 = vadd.f32 %v2157, %v2386
        %v2419 = vadd.f32 %v2158, %v2387
        %v2420 = vadd.f32 %v2159, %v2388
        %v2421 = vadd.f32 %v2160, %v2389
        %v2422 = vadd.f32 %v2161, %v2390
        %v2423 = vadd.f32 %v2162, %v2391
        %v2424 = vadd.f32 %v2163, %v2392
        %v2425 = vadd.f32 %v2164, %v2393
        %v2426 = vadd.f32 %v2165, %v2394
        %v2427 = vadd.f32 %v2166, %v2395
        %v2428 = vadd.f32 %v2167, %v2396
        %v2429 = vadd.f32 %v2168, %v2397
        %v2430 = vadd.f32 %v2169, %v2398
        %v2431 = vadd.f32 %v2170, %v2399
        %v2432 = vadd.f32 %v2171, %v2400
        %v2433 = vadd.f32 %v2172, %v2401
        %v2434 = vadd.f32 %v2173, %v2402
        %v2435 = vadd.f32 %v2174, %v2403
        %v2436 = vadd.f32 %v2175, %v2404
        %v2437 = vadd.f32 %v2176, %v2405
        %v2438 = vadd.f32 %v2177, %v2406
        %v2439 = vadd.f32 %v2178, %v2407
        %v2440 = vadd.f32 %v2179, %v2408
        %v2441 = vadd.f32 %v2180, %v2409
        %v2442 = vadd.f32 %v2181, %v2410
        %v2443 = vadd.f32 %v2182, %v2411
        %v2444 = vadd.f32 %v2183, %v2412
        %v2445 = vadd.f32 %v2184, %v2413
        %v2446 = vadd.f32 %v2185, %v2414
        %v2447 = vadd.f32 %v2186, %v2415
        %v2448 = vadd.f32 %v2187, %v2416
        %v2449 = vadd.f32 %v2188, %v2417
        %v2450 = vld [vmem:[#allocation2 + $0x17] sm:$0xff]
        %v2451 = vld [vmem:[#allocation2 + $0x1f] sm:$0xff]
        %v2452 = vld [vmem:[#allocation2 + $0x27] sm:$0xff]
        %v2453 = vld [vmem:[#allocation2 + $0x2f] sm:$0xff]
        %v2454 = vld [vmem:[#allocation2 + $0x37] sm:$0xff]
        %v2455 = vld [vmem:[#allocation2 + $0x3f] sm:$0xff]
        %v2456 = vld [vmem:[#allocation2 + $0x47] sm:$0xff]
        %v2457 = vld [vmem:[#allocation2 + $0x4f] sm:$0xff]
        %v2458 = vld [vmem:[#allocation2 + $0x57] sm:$0xff]
        %v2459 = vld [vmem:[#allocation2 + $0x5f] sm:$0xff]
        %v2460 = vld [vmem:[#allocation2 + $0x67] sm:$0xff]
        %v2461 = vld [vmem:[#allocation2 + $0x6f] sm:$0xff]
        %v2462 = vld [vmem:[#allocation2 + $0x77] sm:$0xff]
        %v2463 = vld [vmem:[#allocation2 + $0x7f] sm:$0xff]
        %v2464 = vld [vmem:[#allocation2 + $0x87] sm:$0xff]
        %v2465 = vld [vmem:[#allocation2 + $0x8f] sm:$0xff]
        %v2466 = vld [vmem:[#allocation2 + $0x97] sm:$0xff]
        %v2467 = vld [vmem:[#allocation2 + $0x9f] sm:$0xff]
        %v2468 = vld [vmem:[#allocation2 + $0xa7] sm:$0xff]
        %v2469 = vld [vmem:[#allocation2 + $0xaf] sm:$0xff]
        %v2470 = vld [vmem:[#allocation2 + $0xb7] sm:$0xff]
        %v2471 = vld [vmem:[#allocation2 + $0xbf] sm:$0xff]
        %v2472 = vld [vmem:[#allocation2 + $0xc7] sm:$0xff]
        %v2473 = vld [vmem:[#allocation2 + $0xcf] sm:$0xff]
        %v2474 = vld [vmem:[#allocation2 + $0xd7] sm:$0xff]
        %v2475 = vld [vmem:[#allocation2 + $0xdf] sm:$0xff]
        %v2476 = vld [vmem:[#allocation2 + $0xe7] sm:$0xff]
        %v2477 = vld [vmem:[#allocation2 + $0xef] sm:$0xff]
        %v2478 = vld [vmem:[#allocation2 + $0xf7] sm:$0xff]
        %v2479 = vld [vmem:[#allocation2 + $0xff] sm:$0xff]
        %v2480 = vld [vmem:[#allocation2 + $0x107] sm:$0xff]
        %v2481 = vld [vmem:[#allocation2 + $0x10f] sm:$0xff]
        %v2482 = vld [vmem:[%s6 + $0x6] sm:$0x1]
        %v2483 = vlaneseq
        %v2484 = vshrl.u32 %v2483, 7
        %v2485 = vsub.s32 0, %v2484
        %v2486 = vrot.slane %v2482, %v2485
        %v2487 = vmul.f32 %v2450, %v2486
        %v2488 = vmul.f32 %v2451, %v2486
        %v2489 = vmul.f32 %v2452, %v2486
        %v2490 = vmul.f32 %v2453, %v2486
        %v2491 = vmul.f32 %v2454, %v2486
        %v2492 = vmul.f32 %v2455, %v2486
        %v2493 = vmul.f32 %v2456, %v2486
        %v2494 = vmul.f32 %v2457, %v2486
        %v2495 = vmul.f32 %v2458, %v2486
        %v2496 = vmul.f32 %v2459, %v2486
        %v2497 = vmul.f32 %v2460, %v2486
        %v2498 = vmul.f32 %v2461, %v2486
        %v2499 = vmul.f32 %v2462, %v2486
        %v2500 = vmul.f32 %v2463, %v2486
        %v2501 = vmul.f32 %v2464, %v2486
        %v2502 = vmul.f32 %v2465, %v2486
        %v2503 = vmul.f32 %v2466, %v2486
        %v2504 = vmul.f32 %v2467, %v2486
        %v2505 = vmul.f32 %v2468, %v2486
        %v2506 = vmul.f32 %v2469, %v2486
        %v2507 = vmul.f32 %v2470, %v2486
        %v2508 = vmul.f32 %v2471, %v2486
        %v2509 = vmul.f32 %v2472, %v2486
        %v2510 = vmul.f32 %v2473, %v2486
        %v2511 = vmul.f32 %v2474, %v2486
        %v2512 = vmul.f32 %v2475, %v2486
        %v2513 = vmul.f32 %v2476, %v2486
        %v2514 = vmul.f32 %v2477, %v2486
        %v2515 = vmul.f32 %v2478, %v2486
        %v2516 = vmul.f32 %v2479, %v2486
        %v2517 = vmul.f32 %v2480, %v2486
        %v2518 = vmul.f32 %v2481, %v2486
        %2519 = vset.pattern.permute.xlu0 6
        %2520 = vperm.xlu0 %2519, %v395
        %v2521 = vpop.permute.xlu0 %2520
        %2523 = vset.pattern.permute.xlu0 6
        %2524 = vperm.xlu0 %2523, %v396
        %v2525 = vpop.permute.xlu0 %2524
        %2527 = vset.pattern.permute.xlu0 6
        %2528 = vperm.xlu0 %2527, %v397
        %v2529 = vpop.permute.xlu0 %2528
        %2531 = vset.pattern.permute.xlu0 6
        %2532 = vperm.xlu0 %2531, %v398
        %v2533 = vpop.permute.xlu0 %2532
        %2535 = vset.pattern.permute.xlu0 6
        %2536 = vperm.xlu0 %2535, %v399
        %v2537 = vpop.permute.xlu0 %2536
        %2539 = vset.pattern.permute.xlu0 6
        %2540 = vperm.xlu0 %2539, %v400
        %v2541 = vpop.permute.xlu0 %2540
        %2543 = vset.pattern.permute.xlu0 6
        %2544 = vperm.xlu0 %2543, %v401
        %v2545 = vpop.permute.xlu0 %2544
        %2547 = vset.pattern.permute.xlu0 6
        %2548 = vperm.xlu0 %2547, %v402
        %v2549 = vpop.permute.xlu0 %2548
        %2551 = vset.pattern.permute.xlu0 6
        %2552 = vperm.xlu0 %2551, %v403
        %v2553 = vpop.permute.xlu0 %2552
        %2555 = vset.pattern.permute.xlu0 6
        %2556 = vperm.xlu0 %2555, %v404
        %v2557 = vpop.permute.xlu0 %2556
        %2559 = vset.pattern.permute.xlu0 6
        %2560 = vperm.xlu0 %2559, %v405
        %v2561 = vpop.permute.xlu0 %2560
        %2563 = vset.pattern.permute.xlu0 6
        %2564 = vperm.xlu0 %2563, %v406
        %v2565 = vpop.permute.xlu0 %2564
        %2567 = vset.pattern.permute.xlu0 6
        %2568 = vperm.xlu0 %2567, %v407
        %v2569 = vpop.permute.xlu0 %2568
        %2571 = vset.pattern.permute.xlu0 6
        %2572 = vperm.xlu0 %2571, %v408
        %v2573 = vpop.permute.xlu0 %2572
        %2575 = vset.pattern.permute.xlu0 6
        %2576 = vperm.xlu0 %2575, %v409
        %v2577 = vpop.permute.xlu0 %2576
        %2579 = vset.pattern.permute.xlu0 6
        %2580 = vperm.xlu0 %2579, %v410
        %v2581 = vpop.permute.xlu0 %2580
        %2583 = vset.pattern.permute.xlu0 6
        %2584 = vperm.xlu0 %2583, %v411
        %v2585 = vpop.permute.xlu0 %2584
        %2587 = vset.pattern.permute.xlu0 6
        %2588 = vperm.xlu0 %2587, %v412
        %v2589 = vpop.permute.xlu0 %2588
        %2591 = vset.pattern.permute.xlu0 6
        %2592 = vperm.xlu0 %2591, %v413
        %v2593 = vpop.permute.xlu0 %2592
        %2595 = vset.pattern.permute.xlu0 6
        %2596 = vperm.xlu0 %2595, %v414
        %v2597 = vpop.permute.xlu0 %2596
        %2599 = vset.pattern.permute.xlu0 6
        %2600 = vperm.xlu0 %2599, %v415
        %v2601 = vpop.permute.xlu0 %2600
        %2603 = vset.pattern.permute.xlu0 6
        %2604 = vperm.xlu0 %2603, %v416
        %v2605 = vpop.permute.xlu0 %2604
        %2607 = vset.pattern.permute.xlu0 6
        %2608 = vperm.xlu0 %2607, %v417
        %v2609 = vpop.permute.xlu0 %2608
        %2611 = vset.pattern.permute.xlu0 6
        %2612 = vperm.xlu0 %2611, %v418
        %v2613 = vpop.permute.xlu0 %2612
        %2615 = vset.pattern.permute.xlu0 6
        %2616 = vperm.xlu0 %2615, %v419
        %v2617 = vpop.permute.xlu0 %2616
        %2619 = vset.pattern.permute.xlu0 6
        %2620 = vperm.xlu0 %2619, %v420
        %v2621 = vpop.permute.xlu0 %2620
        %2623 = vset.pattern.permute.xlu0 6
        %2624 = vperm.xlu0 %2623, %v421
        %v2625 = vpop.permute.xlu0 %2624
        %2627 = vset.pattern.permute.xlu0 6
        %2628 = vperm.xlu0 %2627, %v422
        %v2629 = vpop.permute.xlu0 %2628
        %2631 = vset.pattern.permute.xlu0 6
        %2632 = vperm.xlu0 %2631, %v423
        %v2633 = vpop.permute.xlu0 %2632
        %2635 = vset.pattern.permute.xlu0 6
        %2636 = vperm.xlu0 %2635, %v424
        %v2637 = vpop.permute.xlu0 %2636
        %2639 = vset.pattern.permute.xlu0 6
        %2640 = vperm.xlu0 %2639, %v425
        %v2641 = vpop.permute.xlu0 %2640
        %2643 = vset.pattern.permute.xlu0 6
        %2644 = vperm.xlu0 %2643, %v426
        %v2645 = vpop.permute.xlu0 %2644
        %v2647 = vmul.f32 %v2487, %v2521
        %v2648 = vmul.f32 %v2488, %v2525
        %v2649 = vmul.f32 %v2489, %v2529
        %v2650 = vmul.f32 %v2490, %v2533
        %v2651 = vmul.f32 %v2491, %v2537
        %v2652 = vmul.f32 %v2492, %v2541
        %v2653 = vmul.f32 %v2493, %v2545
        %v2654 = vmul.f32 %v2494, %v2549
        %v2655 = vmul.f32 %v2495, %v2553
        %v2656 = vmul.f32 %v2496, %v2557
        %v2657 = vmul.f32 %v2497, %v2561
        %v2658 = vmul.f32 %v2498, %v2565
        %v2659 = vmul.f32 %v2499, %v2569
        %v2660 = vmul.f32 %v2500, %v2573
        %v2661 = vmul.f32 %v2501, %v2577
        %v2662 = vmul.f32 %v2502, %v2581
        %v2663 = vmul.f32 %v2503, %v2585
        %v2664 = vmul.f32 %v2504, %v2589
        %v2665 = vmul.f32 %v2505, %v2593
        %v2666 = vmul.f32 %v2506, %v2597
        %v2667 = vmul.f32 %v2507, %v2601
        %v2668 = vmul.f32 %v2508, %v2605
        %v2669 = vmul.f32 %v2509, %v2609
        %v2670 = vmul.f32 %v2510, %v2613
        %v2671 = vmul.f32 %v2511, %v2617
        %v2672 = vmul.f32 %v2512, %v2621
        %v2673 = vmul.f32 %v2513, %v2625
        %v2674 = vmul.f32 %v2514, %v2629
        %v2675 = vmul.f32 %v2515, %v2633
        %v2676 = vmul.f32 %v2516, %v2637
        %v2677 = vmul.f32 %v2517, %v2641
        %v2678 = vmul.f32 %v2518, %v2645
        %v2679 = vadd.f32 %v2418, %v2647
        %v2680 = vadd.f32 %v2419, %v2648
        %v2681 = vadd.f32 %v2420, %v2649
        %v2682 = vadd.f32 %v2421, %v2650
        %v2683 = vadd.f32 %v2422, %v2651
        %v2684 = vadd.f32 %v2423, %v2652
        %v2685 = vadd.f32 %v2424, %v2653
        %v2686 = vadd.f32 %v2425, %v2654
        %v2687 = vadd.f32 %v2426, %v2655
        %v2688 = vadd.f32 %v2427, %v2656
        %v2689 = vadd.f32 %v2428, %v2657
        %v2690 = vadd.f32 %v2429, %v2658
        %v2691 = vadd.f32 %v2430, %v2659
        %v2692 = vadd.f32 %v2431, %v2660
        %v2693 = vadd.f32 %v2432, %v2661
        %v2694 = vadd.f32 %v2433, %v2662
        %v2695 = vadd.f32 %v2434, %v2663
        %v2696 = vadd.f32 %v2435, %v2664
        %v2697 = vadd.f32 %v2436, %v2665
        %v2698 = vadd.f32 %v2437, %v2666
        %v2699 = vadd.f32 %v2438, %v2667
        %v2700 = vadd.f32 %v2439, %v2668
        %v2701 = vadd.f32 %v2440, %v2669
        %v2702 = vadd.f32 %v2441, %v2670
        %v2703 = vadd.f32 %v2442, %v2671
        %v2704 = vadd.f32 %v2443, %v2672
        %v2705 = vadd.f32 %v2444, %v2673
        %v2706 = vadd.f32 %v2445, %v2674
        %v2707 = vadd.f32 %v2446, %v2675
        %v2708 = vadd.f32 %v2447, %v2676
        %v2709 = vadd.f32 %v2448, %v2677
        %v2710 = vadd.f32 %v2449, %v2678
        %v2711 = vld [vmem:[#allocation2 + $0x18] sm:$0xff]
        %v2712 = vld [vmem:[#allocation2 + $0x20] sm:$0xff]
        %v2713 = vld [vmem:[#allocation2 + $0x28] sm:$0xff]
        %v2714 = vld [vmem:[#allocation2 + $0x30] sm:$0xff]
        %v2715 = vld [vmem:[#allocation2 + $0x38] sm:$0xff]
        %v2716 = vld [vmem:[#allocation2 + $0x40] sm:$0xff]
        %v2717 = vld [vmem:[#allocation2 + $0x48] sm:$0xff]
        %v2718 = vld [vmem:[#allocation2 + $0x50] sm:$0xff]
        %v2719 = vld [vmem:[#allocation2 + $0x58] sm:$0xff]
        %v2720 = vld [vmem:[#allocation2 + $0x60] sm:$0xff]
        %v2721 = vld [vmem:[#allocation2 + $0x68] sm:$0xff]
        %v2722 = vld [vmem:[#allocation2 + $0x70] sm:$0xff]
        %v2723 = vld [vmem:[#allocation2 + $0x78] sm:$0xff]
        %v2724 = vld [vmem:[#allocation2 + $0x80] sm:$0xff]
        %v2725 = vld [vmem:[#allocation2 + $0x88] sm:$0xff]
        %v2726 = vld [vmem:[#allocation2 + $0x90] sm:$0xff]
        %v2727 = vld [vmem:[#allocation2 + $0x98] sm:$0xff]
        %v2728 = vld [vmem:[#allocation2 + $0xa0] sm:$0xff]
        %v2729 = vld [vmem:[#allocation2 + $0xa8] sm:$0xff]
        %v2730 = vld [vmem:[#allocation2 + $0xb0] sm:$0xff]
        %v2731 = vld [vmem:[#allocation2 + $0xb8] sm:$0xff]
        %v2732 = vld [vmem:[#allocation2 + $0xc0] sm:$0xff]
        %v2733 = vld [vmem:[#allocation2 + $0xc8] sm:$0xff]
        %v2734 = vld [vmem:[#allocation2 + $0xd0] sm:$0xff]
        %v2735 = vld [vmem:[#allocation2 + $0xd8] sm:$0xff]
        %v2736 = vld [vmem:[#allocation2 + $0xe0] sm:$0xff]
        %v2737 = vld [vmem:[#allocation2 + $0xe8] sm:$0xff]
        %v2738 = vld [vmem:[#allocation2 + $0xf0] sm:$0xff]
        %v2739 = vld [vmem:[#allocation2 + $0xf8] sm:$0xff]
        %v2740 = vld [vmem:[#allocation2 + $0x100] sm:$0xff]
        %v2741 = vld [vmem:[#allocation2 + $0x108] sm:$0xff]
        %v2742 = vld [vmem:[#allocation2 + $0x110] sm:$0xff]
        %v2743 = vld [vmem:[%s6 + $0x7] sm:$0x1]
        %v2744 = vlaneseq
        %v2745 = vshrl.u32 %v2744, 7
        %v2746 = vsub.s32 0, %v2745
        %v2747 = vrot.slane %v2743, %v2746
        %v2748 = vmul.f32 %v2711, %v2747
        %v2749 = vmul.f32 %v2712, %v2747
        %v2750 = vmul.f32 %v2713, %v2747
        %v2751 = vmul.f32 %v2714, %v2747
        %v2752 = vmul.f32 %v2715, %v2747
        %v2753 = vmul.f32 %v2716, %v2747
        %v2754 = vmul.f32 %v2717, %v2747
        %v2755 = vmul.f32 %v2718, %v2747
        %v2756 = vmul.f32 %v2719, %v2747
        %v2757 = vmul.f32 %v2720, %v2747
        %v2758 = vmul.f32 %v2721, %v2747
        %v2759 = vmul.f32 %v2722, %v2747
        %v2760 = vmul.f32 %v2723, %v2747
        %v2761 = vmul.f32 %v2724, %v2747
        %v2762 = vmul.f32 %v2725, %v2747
        %v2763 = vmul.f32 %v2726, %v2747
        %v2764 = vmul.f32 %v2727, %v2747
        %v2765 = vmul.f32 %v2728, %v2747
        %v2766 = vmul.f32 %v2729, %v2747
        %v2767 = vmul.f32 %v2730, %v2747
        %v2768 = vmul.f32 %v2731, %v2747
        %v2769 = vmul.f32 %v2732, %v2747
        %v2770 = vmul.f32 %v2733, %v2747
        %v2771 = vmul.f32 %v2734, %v2747
        %v2772 = vmul.f32 %v2735, %v2747
        %v2773 = vmul.f32 %v2736, %v2747
        %v2774 = vmul.f32 %v2737, %v2747
        %v2775 = vmul.f32 %v2738, %v2747
        %v2776 = vmul.f32 %v2739, %v2747
        %v2777 = vmul.f32 %v2740, %v2747
        %v2778 = vmul.f32 %v2741, %v2747
        %v2779 = vmul.f32 %v2742, %v2747
        %2780 = vset.pattern.permute.xlu0 7
        %2781 = vperm.xlu0 %2780, %v395
        %v2782 = vpop.permute.xlu0 %2781
        %2784 = vset.pattern.permute.xlu0 7
        %2785 = vperm.xlu0 %2784, %v396
        %v2786 = vpop.permute.xlu0 %2785
        %2788 = vset.pattern.permute.xlu0 7
        %2789 = vperm.xlu0 %2788, %v397
        %v2790 = vpop.permute.xlu0 %2789
        %2792 = vset.pattern.permute.xlu0 7
        %2793 = vperm.xlu0 %2792, %v398
        %v2794 = vpop.permute.xlu0 %2793
        %2796 = vset.pattern.permute.xlu0 7
        %2797 = vperm.xlu0 %2796, %v399
        %v2798 = vpop.permute.xlu0 %2797
        %2800 = vset.pattern.permute.xlu0 7
        %2801 = vperm.xlu0 %2800, %v400
        %v2802 = vpop.permute.xlu0 %2801
        %2804 = vset.pattern.permute.xlu0 7
        %2805 = vperm.xlu0 %2804, %v401
        %v2806 = vpop.permute.xlu0 %2805
        %2808 = vset.pattern.permute.xlu0 7
        %2809 = vperm.xlu0 %2808, %v402
        %v2810 = vpop.permute.xlu0 %2809
        %2812 = vset.pattern.permute.xlu0 7
        %2813 = vperm.xlu0 %2812, %v403
        %v2814 = vpop.permute.xlu0 %2813
        %2816 = vset.pattern.permute.xlu0 7
        %2817 = vperm.xlu0 %2816, %v404
        %v2818 = vpop.permute.xlu0 %2817
        %2820 = vset.pattern.permute.xlu0 7
        %2821 = vperm.xlu0 %2820, %v405
        %v2822 = vpop.permute.xlu0 %2821
        %2824 = vset.pattern.permute.xlu0 7
        %2825 = vperm.xlu0 %2824, %v406
        %v2826 = vpop.permute.xlu0 %2825
        %2828 = vset.pattern.permute.xlu0 7
        %2829 = vperm.xlu0 %2828, %v407
        %v2830 = vpop.permute.xlu0 %2829
        %2832 = vset.pattern.permute.xlu0 7
        %2833 = vperm.xlu0 %2832, %v408
        %v2834 = vpop.permute.xlu0 %2833
        %2836 = vset.pattern.permute.xlu0 7
        %2837 = vperm.xlu0 %2836, %v409
        %v2838 = vpop.permute.xlu0 %2837
        %2840 = vset.pattern.permute.xlu0 7
        %2841 = vperm.xlu0 %2840, %v410
        %v2842 = vpop.permute.xlu0 %2841
        %2844 = vset.pattern.permute.xlu0 7
        %2845 = vperm.xlu0 %2844, %v411
        %v2846 = vpop.permute.xlu0 %2845
        %2848 = vset.pattern.permute.xlu0 7
        %2849 = vperm.xlu0 %2848, %v412
        %v2850 = vpop.permute.xlu0 %2849
        %2852 = vset.pattern.permute.xlu0 7
        %2853 = vperm.xlu0 %2852, %v413
        %v2854 = vpop.permute.xlu0 %2853
        %2856 = vset.pattern.permute.xlu0 7
        %2857 = vperm.xlu0 %2856, %v414
        %v2858 = vpop.permute.xlu0 %2857
        %2860 = vset.pattern.permute.xlu0 7
        %2861 = vperm.xlu0 %2860, %v415
        %v2862 = vpop.permute.xlu0 %2861
        %2864 = vset.pattern.permute.xlu0 7
        %2865 = vperm.xlu0 %2864, %v416
        %v2866 = vpop.permute.xlu0 %2865
        %2868 = vset.pattern.permute.xlu0 7
        %2869 = vperm.xlu0 %2868, %v417
        %v2870 = vpop.permute.xlu0 %2869
        %2872 = vset.pattern.permute.xlu0 7
        %2873 = vperm.xlu0 %2872, %v418
        %v2874 = vpop.permute.xlu0 %2873
        %2876 = vset.pattern.permute.xlu0 7
        %2877 = vperm.xlu0 %2876, %v419
        %v2878 = vpop.permute.xlu0 %2877
        %2880 = vset.pattern.permute.xlu0 7
        %2881 = vperm.xlu0 %2880, %v420
        %v2882 = vpop.permute.xlu0 %2881
        %2884 = vset.pattern.permute.xlu0 7
        %2885 = vperm.xlu0 %2884, %v421
        %v2886 = vpop.permute.xlu0 %2885
        %2888 = vset.pattern.permute.xlu0 7
        %2889 = vperm.xlu0 %2888, %v422
        %v2890 = vpop.permute.xlu0 %2889
        %2892 = vset.pattern.permute.xlu0 7
        %2893 = vperm.xlu0 %2892, %v423
        %v2894 = vpop.permute.xlu0 %2893
        %2896 = vset.pattern.permute.xlu0 7
        %2897 = vperm.xlu0 %2896, %v424
        %v2898 = vpop.permute.xlu0 %2897
        %2900 = vset.pattern.permute.xlu0 7
        %2901 = vperm.xlu0 %2900, %v425
        %v2902 = vpop.permute.xlu0 %2901
        %2904 = vset.pattern.permute.xlu0 7
        %2905 = vperm.xlu0 %2904, %v426
        %v2906 = vpop.permute.xlu0 %2905
        %v2908 = vmul.f32 %v2748, %v2782
        %v2909 = vmul.f32 %v2749, %v2786
        %v2910 = vmul.f32 %v2750, %v2790
        %v2911 = vmul.f32 %v2751, %v2794
        %v2912 = vmul.f32 %v2752, %v2798
        %v2913 = vmul.f32 %v2753, %v2802
        %v2914 = vmul.f32 %v2754, %v2806
        %v2915 = vmul.f32 %v2755, %v2810
        %v2916 = vmul.f32 %v2756, %v2814
        %v2917 = vmul.f32 %v2757, %v2818
        %v2918 = vmul.f32 %v2758, %v2822
        %v2919 = vmul.f32 %v2759, %v2826
        %v2920 = vmul.f32 %v2760, %v2830
        %v2921 = vmul.f32 %v2761, %v2834
        %v2922 = vmul.f32 %v2762, %v2838
        %v2923 = vmul.f32 %v2763, %v2842
        %v2924 = vmul.f32 %v2764, %v2846
        %v2925 = vmul.f32 %v2765, %v2850
        %v2926 = vmul.f32 %v2766, %v2854
        %v2927 = vmul.f32 %v2767, %v2858
        %v2928 = vmul.f32 %v2768, %v2862
        %v2929 = vmul.f32 %v2769, %v2866
        %v2930 = vmul.f32 %v2770, %v2870
        %v2931 = vmul.f32 %v2771, %v2874
        %v2932 = vmul.f32 %v2772, %v2878
        %v2933 = vmul.f32 %v2773, %v2882
        %v2934 = vmul.f32 %v2774, %v2886
        %v2935 = vmul.f32 %v2775, %v2890
        %v2936 = vmul.f32 %v2776, %v2894
        %v2937 = vmul.f32 %v2777, %v2898
        %v2938 = vmul.f32 %v2778, %v2902
        %v2939 = vmul.f32 %v2779, %v2906
        %v2940 = vadd.f32 %v2679, %v2908
        %v2941 = vadd.f32 %v2680, %v2909
        %v2942 = vadd.f32 %v2681, %v2910
        %v2943 = vadd.f32 %v2682, %v2911
        %v2944 = vadd.f32 %v2683, %v2912
        %v2945 = vadd.f32 %v2684, %v2913
        %v2946 = vadd.f32 %v2685, %v2914
        %v2947 = vadd.f32 %v2686, %v2915
        %v2948 = vadd.f32 %v2687, %v2916
        %v2949 = vadd.f32 %v2688, %v2917
        %v2950 = vadd.f32 %v2689, %v2918
        %v2951 = vadd.f32 %v2690, %v2919
        %v2952 = vadd.f32 %v2691, %v2920
        %v2953 = vadd.f32 %v2692, %v2921
        %v2954 = vadd.f32 %v2693, %v2922
        %v2955 = vadd.f32 %v2694, %v2923
        %v2956 = vadd.f32 %v2695, %v2924
        %v2957 = vadd.f32 %v2696, %v2925
        %v2958 = vadd.f32 %v2697, %v2926
        %v2959 = vadd.f32 %v2698, %v2927
        %v2960 = vadd.f32 %v2699, %v2928
        %v2961 = vadd.f32 %v2700, %v2929
        %v2962 = vadd.f32 %v2701, %v2930
        %v2963 = vadd.f32 %v2702, %v2931
        %v2964 = vadd.f32 %v2703, %v2932
        %v2965 = vadd.f32 %v2704, %v2933
        %v2966 = vadd.f32 %v2705, %v2934
        %v2967 = vadd.f32 %v2706, %v2935
        %v2968 = vadd.f32 %v2707, %v2936
        %v2969 = vadd.f32 %v2708, %v2937
        %v2970 = vadd.f32 %v2709, %v2938
        %v2971 = vadd.f32 %v2710, %v2939
        %v2972 = vld [vmem:[#allocation2 + $0x19] sm:$0xff]
        %v2973 = vld [vmem:[#allocation2 + $0x21] sm:$0xff]
        %v2974 = vld [vmem:[#allocation2 + $0x29] sm:$0xff]
        %v2975 = vld [vmem:[#allocation2 + $0x31] sm:$0xff]
        %v2976 = vld [vmem:[#allocation2 + $0x39] sm:$0xff]
        %v2977 = vld [vmem:[#allocation2 + $0x41] sm:$0xff]
        %v2978 = vld [vmem:[#allocation2 + $0x49] sm:$0xff]
        %v2979 = vld [vmem:[#allocation2 + $0x51] sm:$0xff]
        %v2980 = vld [vmem:[#allocation2 + $0x59] sm:$0xff]
        %v2981 = vld [vmem:[#allocation2 + $0x61] sm:$0xff]
        %v2982 = vld [vmem:[#allocation2 + $0x69] sm:$0xff]
        %v2983 = vld [vmem:[#allocation2 + $0x71] sm:$0xff]
        %v2984 = vld [vmem:[#allocation2 + $0x79] sm:$0xff]
        %v2985 = vld [vmem:[#allocation2 + $0x81] sm:$0xff]
        %v2986 = vld [vmem:[#allocation2 + $0x89] sm:$0xff]
        %v2987 = vld [vmem:[#allocation2 + $0x91] sm:$0xff]
        %v2988 = vld [vmem:[#allocation2 + $0x99] sm:$0xff]
        %v2989 = vld [vmem:[#allocation2 + $0xa1] sm:$0xff]
        %v2990 = vld [vmem:[#allocation2 + $0xa9] sm:$0xff]
        %v2991 = vld [vmem:[#allocation2 + $0xb1] sm:$0xff]
        %v2992 = vld [vmem:[#allocation2 + $0xb9] sm:$0xff]
        %v2993 = vld [vmem:[#allocation2 + $0xc1] sm:$0xff]
        %v2994 = vld [vmem:[#allocation2 + $0xc9] sm:$0xff]
        %v2995 = vld [vmem:[#allocation2 + $0xd1] sm:$0xff]
        %v2996 = vld [vmem:[#allocation2 + $0xd9] sm:$0xff]
        %v2997 = vld [vmem:[#allocation2 + $0xe1] sm:$0xff]
        %v2998 = vld [vmem:[#allocation2 + $0xe9] sm:$0xff]
        %v2999 = vld [vmem:[#allocation2 + $0xf1] sm:$0xff]
        %v3000 = vld [vmem:[#allocation2 + $0xf9] sm:$0xff]
        %v3001 = vld [vmem:[#allocation2 + $0x101] sm:$0xff]
        %v3002 = vld [vmem:[#allocation2 + $0x109] sm:$0xff]
        %v3003 = vld [vmem:[#allocation2 + $0x111] sm:$0xff]
        %v3004 = vld [vmem:[%s6 + $0x8] sm:$0x1]
        %v3005 = vlaneseq
        %v3006 = vshrl.u32 %v3005, 7
        %v3007 = vsub.s32 0, %v3006
        %v3008 = vrot.slane %v3004, %v3007
        %v3009 = vmul.f32 %v2972, %v3008
        %v3010 = vmul.f32 %v2973, %v3008
        %v3011 = vmul.f32 %v2974, %v3008
        %v3012 = vmul.f32 %v2975, %v3008
        %v3013 = vmul.f32 %v2976, %v3008
        %v3014 = vmul.f32 %v2977, %v3008
        %v3015 = vmul.f32 %v2978, %v3008
        %v3016 = vmul.f32 %v2979, %v3008
        %v3017 = vmul.f32 %v2980, %v3008
        %v3018 = vmul.f32 %v2981, %v3008
        %v3019 = vmul.f32 %v2982, %v3008
        %v3020 = vmul.f32 %v2983, %v3008
        %v3021 = vmul.f32 %v2984, %v3008
        %v3022 = vmul.f32 %v2985, %v3008
        %v3023 = vmul.f32 %v2986, %v3008
        %v3024 = vmul.f32 %v2987, %v3008
        %v3025 = vmul.f32 %v2988, %v3008
        %v3026 = vmul.f32 %v2989, %v3008
        %v3027 = vmul.f32 %v2990, %v3008
        %v3028 = vmul.f32 %v2991, %v3008
        %v3029 = vmul.f32 %v2992, %v3008
        %v3030 = vmul.f32 %v2993, %v3008
        %v3031 = vmul.f32 %v2994, %v3008
        %v3032 = vmul.f32 %v2995, %v3008
        %v3033 = vmul.f32 %v2996, %v3008
        %v3034 = vmul.f32 %v2997, %v3008
        %v3035 = vmul.f32 %v2998, %v3008
        %v3036 = vmul.f32 %v2999, %v3008
        %v3037 = vmul.f32 %v3000, %v3008
        %v3038 = vmul.f32 %v3001, %v3008
        %v3039 = vmul.f32 %v3002, %v3008
        %v3040 = vmul.f32 %v3003, %v3008
        %3041 = vset.pattern.permute.xlu0 8
        %3042 = vperm.xlu0 %3041, %v395
        %v3043 = vpop.permute.xlu0 %3042
        %3045 = vset.pattern.permute.xlu0 8
        %3046 = vperm.xlu0 %3045, %v396
        %v3047 = vpop.permute.xlu0 %3046
        %3049 = vset.pattern.permute.xlu0 8
        %3050 = vperm.xlu0 %3049, %v397
        %v3051 = vpop.permute.xlu0 %3050
        %3053 = vset.pattern.permute.xlu0 8
        %3054 = vperm.xlu0 %3053, %v398
        %v3055 = vpop.permute.xlu0 %3054
        %3057 = vset.pattern.permute.xlu0 8
        %3058 = vperm.xlu0 %3057, %v399
        %v3059 = vpop.permute.xlu0 %3058
        %3061 = vset.pattern.permute.xlu0 8
        %3062 = vperm.xlu0 %3061, %v400
        %v3063 = vpop.permute.xlu0 %3062
        %3065 = vset.pattern.permute.xlu0 8
        %3066 = vperm.xlu0 %3065, %v401
        %v3067 = vpop.permute.xlu0 %3066
        %3069 = vset.pattern.permute.xlu0 8
        %3070 = vperm.xlu0 %3069, %v402
        %v3071 = vpop.permute.xlu0 %3070
        %3073 = vset.pattern.permute.xlu0 8
        %3074 = vperm.xlu0 %3073, %v403
        %v3075 = vpop.permute.xlu0 %3074
        %3077 = vset.pattern.permute.xlu0 8
        %3078 = vperm.xlu0 %3077, %v404
        %v3079 = vpop.permute.xlu0 %3078
        %3081 = vset.pattern.permute.xlu0 8
        %3082 = vperm.xlu0 %3081, %v405
        %v3083 = vpop.permute.xlu0 %3082
        %3085 = vset.pattern.permute.xlu0 8
        %3086 = vperm.xlu0 %3085, %v406
        %v3087 = vpop.permute.xlu0 %3086
        %3089 = vset.pattern.permute.xlu0 8
        %3090 = vperm.xlu0 %3089, %v407
        %v3091 = vpop.permute.xlu0 %3090
        %3093 = vset.pattern.permute.xlu0 8
        %3094 = vperm.xlu0 %3093, %v408
        %v3095 = vpop.permute.xlu0 %3094
        %3097 = vset.pattern.permute.xlu0 8
        %3098 = vperm.xlu0 %3097, %v409
        %v3099 = vpop.permute.xlu0 %3098
        %3101 = vset.pattern.permute.xlu0 8
        %3102 = vperm.xlu0 %3101, %v410
        %v3103 = vpop.permute.xlu0 %3102
        %3105 = vset.pattern.permute.xlu0 8
        %3106 = vperm.xlu0 %3105, %v411
        %v3107 = vpop.permute.xlu0 %3106
        %3109 = vset.pattern.permute.xlu0 8
        %3110 = vperm.xlu0 %3109, %v412
        %v3111 = vpop.permute.xlu0 %3110
        %3113 = vset.pattern.permute.xlu0 8
        %3114 = vperm.xlu0 %3113, %v413
        %v3115 = vpop.permute.xlu0 %3114
        %3117 = vset.pattern.permute.xlu0 8
        %3118 = vperm.xlu0 %3117, %v414
        %v3119 = vpop.permute.xlu0 %3118
        %3121 = vset.pattern.permute.xlu0 8
        %3122 = vperm.xlu0 %3121, %v415
        %v3123 = vpop.permute.xlu0 %3122
        %3125 = vset.pattern.permute.xlu0 8
        %3126 = vperm.xlu0 %3125, %v416
        %v3127 = vpop.permute.xlu0 %3126
        %3129 = vset.pattern.permute.xlu0 8
        %3130 = vperm.xlu0 %3129, %v417
        %v3131 = vpop.permute.xlu0 %3130
        %3133 = vset.pattern.permute.xlu0 8
        %3134 = vperm.xlu0 %3133, %v418
        %v3135 = vpop.permute.xlu0 %3134
        %3137 = vset.pattern.permute.xlu0 8
        %3138 = vperm.xlu0 %3137, %v419
        %v3139 = vpop.permute.xlu0 %3138
        %3141 = vset.pattern.permute.xlu0 8
        %3142 = vperm.xlu0 %3141, %v420
        %v3143 = vpop.permute.xlu0 %3142
        %3145 = vset.pattern.permute.xlu0 8
        %3146 = vperm.xlu0 %3145, %v421
        %v3147 = vpop.permute.xlu0 %3146
        %3149 = vset.pattern.permute.xlu0 8
        %3150 = vperm.xlu0 %3149, %v422
        %v3151 = vpop.permute.xlu0 %3150
        %3153 = vset.pattern.permute.xlu0 8
        %3154 = vperm.xlu0 %3153, %v423
        %v3155 = vpop.permute.xlu0 %3154
        %3157 = vset.pattern.permute.xlu0 8
        %3158 = vperm.xlu0 %3157, %v424
        %v3159 = vpop.permute.xlu0 %3158
        %3161 = vset.pattern.permute.xlu0 8
        %3162 = vperm.xlu0 %3161, %v425
        %v3163 = vpop.permute.xlu0 %3162
        %3165 = vset.pattern.permute.xlu0 8
        %3166 = vperm.xlu0 %3165, %v426
        %v3167 = vpop.permute.xlu0 %3166
        %v3169 = vmul.f32 %v3009, %v3043
        %v3170 = vmul.f32 %v3010, %v3047
        %v3171 = vmul.f32 %v3011, %v3051
        %v3172 = vmul.f32 %v3012, %v3055
        %v3173 = vmul.f32 %v3013, %v3059
        %v3174 = vmul.f32 %v3014, %v3063
        %v3175 = vmul.f32 %v3015, %v3067
        %v3176 = vmul.f32 %v3016, %v3071
        %v3177 = vmul.f32 %v3017, %v3075
        %v3178 = vmul.f32 %v3018, %v3079
        %v3179 = vmul.f32 %v3019, %v3083
        %v3180 = vmul.f32 %v3020, %v3087
        %v3181 = vmul.f32 %v3021, %v3091
        %v3182 = vmul.f32 %v3022, %v3095
        %v3183 = vmul.f32 %v3023, %v3099
        %v3184 = vmul.f32 %v3024, %v3103
        %v3185 = vmul.f32 %v3025, %v3107
        %v3186 = vmul.f32 %v3026, %v3111
        %v3187 = vmul.f32 %v3027, %v3115
        %v3188 = vmul.f32 %v3028, %v3119
        %v3189 = vmul.f32 %v3029, %v3123
        %v3190 = vmul.f32 %v3030, %v3127
        %v3191 = vmul.f32 %v3031, %v3131
        %v3192 = vmul.f32 %v3032, %v3135
        %v3193 = vmul.f32 %v3033, %v3139
        %v3194 = vmul.f32 %v3034, %v3143
        %v3195 = vmul.f32 %v3035, %v3147
        %v3196 = vmul.f32 %v3036, %v3151
        %v3197 = vmul.f32 %v3037, %v3155
        %v3198 = vmul.f32 %v3038, %v3159
        %v3199 = vmul.f32 %v3039, %v3163
        %v3200 = vmul.f32 %v3040, %v3167
        %v3201 = vadd.f32 %v2940, %v3169
        %v3202 = vadd.f32 %v2941, %v3170
        %v3203 = vadd.f32 %v2942, %v3171
        %v3204 = vadd.f32 %v2943, %v3172
        %v3205 = vadd.f32 %v2944, %v3173
        %v3206 = vadd.f32 %v2945, %v3174
        %v3207 = vadd.f32 %v2946, %v3175
        %v3208 = vadd.f32 %v2947, %v3176
        %v3209 = vadd.f32 %v2948, %v3177
        %v3210 = vadd.f32 %v2949, %v3178
        %v3211 = vadd.f32 %v2950, %v3179
        %v3212 = vadd.f32 %v2951, %v3180
        %v3213 = vadd.f32 %v2952, %v3181
        %v3214 = vadd.f32 %v2953, %v3182
        %v3215 = vadd.f32 %v2954, %v3183
        %v3216 = vadd.f32 %v2955, %v3184
        %v3217 = vadd.f32 %v2956, %v3185
        %v3218 = vadd.f32 %v2957, %v3186
        %v3219 = vadd.f32 %v2958, %v3187
        %v3220 = vadd.f32 %v2959, %v3188
        %v3221 = vadd.f32 %v2960, %v3189
        %v3222 = vadd.f32 %v2961, %v3190
        %v3223 = vadd.f32 %v2962, %v3191
        %v3224 = vadd.f32 %v2963, %v3192
        %v3225 = vadd.f32 %v2964, %v3193
        %v3226 = vadd.f32 %v2965, %v3194
        %v3227 = vadd.f32 %v2966, %v3195
        %v3228 = vadd.f32 %v2967, %v3196
        %v3229 = vadd.f32 %v2968, %v3197
        %v3230 = vadd.f32 %v2969, %v3198
        %v3231 = vadd.f32 %v2970, %v3199
        %v3232 = vadd.f32 %v2971, %v3200
        %v3233 = vsel %vm390, %v3201, 0.0
        %3234 = vadd.xlane.f32.xlu0 %v3233
        %v3235 = vpop.xlane.xlu0 %3234
        %v3236 = vsel %vm390, %v3202, 0.0
        %3237 = vadd.xlane.f32.xlu0 %v3236
        %v3238 = vpop.xlane.xlu0 %3237
        %v3239 = vsel %vm390, %v3203, 0.0
        %3240 = vadd.xlane.f32.xlu0 %v3239
        %v3241 = vpop.xlane.xlu0 %3240
        %v3242 = vsel %vm390, %v3204, 0.0
        %3243 = vadd.xlane.f32.xlu0 %v3242
        %v3244 = vpop.xlane.xlu0 %3243
        %v3245 = vsel %vm390, %v3205, 0.0
        %3246 = vadd.xlane.f32.xlu0 %v3245
        %v3247 = vpop.xlane.xlu0 %3246
        %v3248 = vsel %vm390, %v3206, 0.0
        %3249 = vadd.xlane.f32.xlu0 %v3248
        %v3250 = vpop.xlane.xlu0 %3249
        %v3251 = vsel %vm390, %v3207, 0.0
        %3252 = vadd.xlane.f32.xlu0 %v3251
        %v3253 = vpop.xlane.xlu0 %3252
        %v3254 = vsel %vm390, %v3208, 0.0
        %3255 = vadd.xlane.f32.xlu0 %v3254
        %v3256 = vpop.xlane.xlu0 %3255
        %v3257 = vsel %vm390, %v3209, 0.0
        %3258 = vadd.xlane.f32.xlu0 %v3257
        %v3259 = vpop.xlane.xlu0 %3258
        %v3260 = vsel %vm390, %v3210, 0.0
        %3261 = vadd.xlane.f32.xlu0 %v3260
        %v3262 = vpop.xlane.xlu0 %3261
        %v3263 = vsel %vm390, %v3211, 0.0
        %3264 = vadd.xlane.f32.xlu0 %v3263
        %v3265 = vpop.xlane.xlu0 %3264
        %v3266 = vsel %vm390, %v3212, 0.0
        %3267 = vadd.xlane.f32.xlu0 %v3266
        %v3268 = vpop.xlane.xlu0 %3267
        %v3269 = vsel %vm390, %v3213, 0.0
        %3270 = vadd.xlane.f32.xlu0 %v3269
        %v3271 = vpop.xlane.xlu0 %3270
        %v3272 = vsel %vm390, %v3214, 0.0
        %3273 = vadd.xlane.f32.xlu0 %v3272
        %v3274 = vpop.xlane.xlu0 %3273
        %v3275 = vsel %vm390, %v3215, 0.0
        %3276 = vadd.xlane.f32.xlu0 %v3275
        %v3277 = vpop.xlane.xlu0 %3276
        %v3278 = vsel %vm390, %v3216, 0.0
        %3279 = vadd.xlane.f32.xlu0 %v3278
        %v3280 = vpop.xlane.xlu0 %3279
        %v3281 = vsel %vm390, %v3217, 0.0
        %3282 = vadd.xlane.f32.xlu0 %v3281
        %v3283 = vpop.xlane.xlu0 %3282
        %v3284 = vsel %vm390, %v3218, 0.0
        %3285 = vadd.xlane.f32.xlu0 %v3284
        %v3286 = vpop.xlane.xlu0 %3285
        %v3287 = vsel %vm390, %v3219, 0.0
        %3288 = vadd.xlane.f32.xlu0 %v3287
        %v3289 = vpop.xlane.xlu0 %3288
        %v3290 = vsel %vm390, %v3220, 0.0
        %3291 = vadd.xlane.f32.xlu0 %v3290
        %v3292 = vpop.xlane.xlu0 %3291
        %v3293 = vsel %vm390, %v3221, 0.0
        %3294 = vadd.xlane.f32.xlu0 %v3293
        %v3295 = vpop.xlane.xlu0 %3294
        %v3296 = vsel %vm390, %v3222, 0.0
        %3297 = vadd.xlane.f32.xlu0 %v3296
        %v3298 = vpop.xlane.xlu0 %3297
        %v3299 = vsel %vm390, %v3223, 0.0
        %3300 = vadd.xlane.f32.xlu0 %v3299
        %v3301 = vpop.xlane.xlu0 %3300
        %v3302 = vsel %vm390, %v3224, 0.0
        %3303 = vadd.xlane.f32.xlu0 %v3302
        %v3304 = vpop.xlane.xlu0 %3303
        %v3305 = vsel %vm390, %v3225, 0.0
        %3306 = vadd.xlane.f32.xlu0 %v3305
        %v3307 = vpop.xlane.xlu0 %3306
        %v3308 = vsel %vm390, %v3226, 0.0
        %3309 = vadd.xlane.f32.xlu0 %v3308
        %v3310 = vpop.xlane.xlu0 %3309
        %v3311 = vsel %vm390, %v3227, 0.0
        %3312 = vadd.xlane.f32.xlu0 %v3311
        %v3313 = vpop.xlane.xlu0 %3312
        %v3314 = vsel %vm390, %v3228, 0.0
        %3315 = vadd.xlane.f32.xlu0 %v3314
        %v3316 = vpop.xlane.xlu0 %3315
        %v3317 = vsel %vm390, %v3229, 0.0
        %3318 = vadd.xlane.f32.xlu0 %v3317
        %v3319 = vpop.xlane.xlu0 %3318
        %v3320 = vsel %vm390, %v3230, 0.0
        %3321 = vadd.xlane.f32.xlu0 %v3320
        %v3322 = vpop.xlane.xlu0 %3321
        %v3323 = vsel %vm390, %v3231, 0.0
        %3324 = vadd.xlane.f32.xlu0 %v3323
        %v3325 = vpop.xlane.xlu0 %3324
        %v3326 = vsel %vm390, %v3232, 0.0
        %3327 = vadd.xlane.f32.xlu0 %v3326
        %v3328 = vpop.xlane.xlu0 %3327
        %v3329 = vxor.u32 %v3235, 2147483648
        %v3330 = vxor.u32 %v3238, 2147483648
        %v3331 = vxor.u32 %v3241, 2147483648
        %v3332 = vxor.u32 %v3244, 2147483648
        %v3333 = vxor.u32 %v3247, 2147483648
        %v3334 = vxor.u32 %v3250, 2147483648
        %v3335 = vxor.u32 %v3253, 2147483648
        %v3336 = vxor.u32 %v3256, 2147483648
        %v3337 = vxor.u32 %v3259, 2147483648
        %v3338 = vxor.u32 %v3262, 2147483648
        %v3339 = vxor.u32 %v3265, 2147483648
        %v3340 = vxor.u32 %v3268, 2147483648
        %v3341 = vxor.u32 %v3271, 2147483648
        %v3342 = vxor.u32 %v3274, 2147483648
        %v3343 = vxor.u32 %v3277, 2147483648
        %v3344 = vxor.u32 %v3280, 2147483648
        %v3345 = vxor.u32 %v3283, 2147483648
        %v3346 = vxor.u32 %v3286, 2147483648
        %v3347 = vxor.u32 %v3289, 2147483648
        %v3348 = vxor.u32 %v3292, 2147483648
        %v3349 = vxor.u32 %v3295, 2147483648
        %v3350 = vxor.u32 %v3298, 2147483648
        %v3351 = vxor.u32 %v3301, 2147483648
        %v3352 = vxor.u32 %v3304, 2147483648
        %v3353 = vxor.u32 %v3307, 2147483648
        %v3354 = vxor.u32 %v3310, 2147483648
        %v3355 = vxor.u32 %v3313, 2147483648
        %v3356 = vxor.u32 %v3316, 2147483648
        %v3357 = vxor.u32 %v3319, 2147483648
        %v3358 = vxor.u32 %v3322, 2147483648
        %v3359 = vxor.u32 %v3325, 2147483648
        %v3360 = vxor.u32 %v3328, 2147483648
        %v3361 = vmul.f32 %v3329, 1.442695
        %v3362 = vpow.pop %v3361
        %v3363 = vmul.f32 %v3330, 1.442695
        %v3364 = vpow.pop %v3363
        %v3365 = vmul.f32 %v3331, 1.442695
        %v3366 = vpow.pop %v3365
        %v3367 = vmul.f32 %v3332, 1.442695
        %v3368 = vpow.pop %v3367
        %v3369 = vmul.f32 %v3333, 1.442695
        %v3370 = vpow.pop %v3369
        %v3371 = vmul.f32 %v3334, 1.442695
        %v3372 = vpow.pop %v3371
        %v3373 = vmul.f32 %v3335, 1.442695
        %v3374 = vpow.pop %v3373
        %v3375 = vmul.f32 %v3336, 1.442695
        %v3376 = vpow.pop %v3375
        %v3377 = vmul.f32 %v3337, 1.442695
        %v3378 = vpow.pop %v3377
        %v3379 = vmul.f32 %v3338, 1.442695
        %v3380 = vpow.pop %v3379
        %v3381 = vmul.f32 %v3339, 1.442695
        %v3382 = vpow.pop %v3381
        %v3383 = vmul.f32 %v3340, 1.442695
        %v3384 = vpow.pop %v3383
        %v3385 = vmul.f32 %v3341, 1.442695
        %v3386 = vpow.pop %v3385
        %v3387 = vmul.f32 %v3342, 1.442695
        %v3388 = vpow.pop %v3387
        %v3389 = vmul.f32 %v3343, 1.442695
        %v3390 = vpow.pop %v3389
        %v3391 = vmul.f32 %v3344, 1.442695
        %v3392 = vpow.pop %v3391
        %v3393 = vmul.f32 %v3345, 1.442695
        %v3394 = vpow.pop %v3393
        %v3395 = vmul.f32 %v3346, 1.442695
        %v3396 = vpow.pop %v3395
        %v3397 = vmul.f32 %v3347, 1.442695
        %v3398 = vpow.pop %v3397
        %v3399 = vmul.f32 %v3348, 1.442695
        %v3400 = vpow.pop %v3399
        %v3401 = vmul.f32 %v3349, 1.442695
        %v3402 = vpow.pop %v3401
        %v3403 = vmul.f32 %v3350, 1.442695
        %v3404 = vpow.pop %v3403
        %v3405 = vmul.f32 %v3351, 1.442695
        %v3406 = vpow.pop %v3405
        %v3407 = vmul.f32 %v3352, 1.442695
        %v3408 = vpow.pop %v3407
        %v3409 = vmul.f32 %v3353, 1.442695
        %v3410 = vpow.pop %v3409
        %v3411 = vmul.f32 %v3354, 1.442695
        %v3412 = vpow.pop %v3411
        %v3413 = vmul.f32 %v3355, 1.442695
        %v3414 = vpow.pop %v3413
        %v3415 = vmul.f32 %v3356, 1.442695
        %v3416 = vpow.pop %v3415
        %v3417 = vmul.f32 %v3357, 1.442695
        %v3418 = vpow.pop %v3417
        %v3419 = vmul.f32 %v3358, 1.442695
        %v3420 = vpow.pop %v3419
        %v3421 = vmul.f32 %v3359, 1.442695
        %v3422 = vpow.pop %v3421
        %v3423 = vmul.f32 %v3360, 1.442695
        %v3424 = vpow.pop %v3423
        %v3425 = vadd.f32 %v3362, 1.0
        %v3426 = vadd.f32 %v3364, 1.0
        %v3427 = vadd.f32 %v3366, 1.0
        %v3428 = vadd.f32 %v3368, 1.0
        %v3429 = vadd.f32 %v3370, 1.0
        %v3430 = vadd.f32 %v3372, 1.0
        %v3431 = vadd.f32 %v3374, 1.0
        %v3432 = vadd.f32 %v3376, 1.0
        %v3433 = vadd.f32 %v3378, 1.0
        %v3434 = vadd.f32 %v3380, 1.0
        %v3435 = vadd.f32 %v3382, 1.0
        %v3436 = vadd.f32 %v3384, 1.0
        %v3437 = vadd.f32 %v3386, 1.0
        %v3438 = vadd.f32 %v3388, 1.0
        %v3439 = vadd.f32 %v3390, 1.0
        %v3440 = vadd.f32 %v3392, 1.0
        %v3441 = vadd.f32 %v3394, 1.0
        %v3442 = vadd.f32 %v3396, 1.0
        %v3443 = vadd.f32 %v3398, 1.0
        %v3444 = vadd.f32 %v3400, 1.0
        %v3445 = vadd.f32 %v3402, 1.0
        %v3446 = vadd.f32 %v3404, 1.0
        %v3447 = vadd.f32 %v3406, 1.0
        %v3448 = vadd.f32 %v3408, 1.0
        %v3449 = vadd.f32 %v3410, 1.0
        %v3450 = vadd.f32 %v3412, 1.0
        %v3451 = vadd.f32 %v3414, 1.0
        %v3452 = vadd.f32 %v3416, 1.0
        %v3453 = vadd.f32 %v3418, 1.0
        %v3454 = vadd.f32 %v3420, 1.0
        %v3455 = vadd.f32 %v3422, 1.0
        %v3456 = vadd.f32 %v3424, 1.0
        %v3457 = vrcp.pop %v3425
        %v3458 = vmul.f32 1.0, %v3457
        %v3459 = vrcp.pop %v3426
        %v3460 = vmul.f32 1.0, %v3459
        %v3461 = vrcp.pop %v3427
        %v3462 = vmul.f32 1.0, %v3461
        %v3463 = vrcp.pop %v3428
        %v3464 = vmul.f32 1.0, %v3463
        %v3465 = vrcp.pop %v3429
        %v3466 = vmul.f32 1.0, %v3465
        %v3467 = vrcp.pop %v3430
        %v3468 = vmul.f32 1.0, %v3467
        %v3469 = vrcp.pop %v3431
        %v3470 = vmul.f32 1.0, %v3469
        %v3471 = vrcp.pop %v3432
        %v3472 = vmul.f32 1.0, %v3471
        %v3473 = vrcp.pop %v3433
        %v3474 = vmul.f32 1.0, %v3473
        %v3475 = vrcp.pop %v3434
        %v3476 = vmul.f32 1.0, %v3475
        %v3477 = vrcp.pop %v3435
        %v3478 = vmul.f32 1.0, %v3477
        %v3479 = vrcp.pop %v3436
        %v3480 = vmul.f32 1.0, %v3479
        %v3481 = vrcp.pop %v3437
        %v3482 = vmul.f32 1.0, %v3481
        %v3483 = vrcp.pop %v3438
        %v3484 = vmul.f32 1.0, %v3483
        %v3485 = vrcp.pop %v3439
        %v3486 = vmul.f32 1.0, %v3485
        %v3487 = vrcp.pop %v3440
        %v3488 = vmul.f32 1.0, %v3487
        %v3489 = vrcp.pop %v3441
        %v3490 = vmul.f32 1.0, %v3489
        %v3491 = vrcp.pop %v3442
        %v3492 = vmul.f32 1.0, %v3491
        %v3493 = vrcp.pop %v3443
        %v3494 = vmul.f32 1.0, %v3493
        %v3495 = vrcp.pop %v3444
        %v3496 = vmul.f32 1.0, %v3495
        %v3497 = vrcp.pop %v3445
        %v3498 = vmul.f32 1.0, %v3497
        %v3499 = vrcp.pop %v3446
        %v3500 = vmul.f32 1.0, %v3499
        %v3501 = vrcp.pop %v3447
        %v3502 = vmul.f32 1.0, %v3501
        %v3503 = vrcp.pop %v3448
        %v3504 = vmul.f32 1.0, %v3503
        %v3505 = vrcp.pop %v3449
        %v3506 = vmul.f32 1.0, %v3505
        %v3507 = vrcp.pop %v3450
        %v3508 = vmul.f32 1.0, %v3507
        %v3509 = vrcp.pop %v3451
        %v3510 = vmul.f32 1.0, %v3509
        %v3511 = vrcp.pop %v3452
        %v3512 = vmul.f32 1.0, %v3511
        %v3513 = vrcp.pop %v3453
        %v3514 = vmul.f32 1.0, %v3513
        %v3515 = vrcp.pop %v3454
        %v3516 = vmul.f32 1.0, %v3515
        %v3517 = vrcp.pop %v3455
        %v3518 = vmul.f32 1.0, %v3517
        %v3519 = vrcp.pop %v3456
        %v3520 = vmul.f32 1.0, %v3519
        %v3521 = vmul.f32 %v787, %v3458
        %v3522 = vmul.f32 %v788, %v3460
        %v3523 = vmul.f32 %v789, %v3462
        %v3524 = vmul.f32 %v790, %v3464
        %v3525 = vmul.f32 %v791, %v3466
        %v3526 = vmul.f32 %v792, %v3468
        %v3527 = vmul.f32 %v793, %v3470
        %v3528 = vmul.f32 %v794, %v3472
        %v3529 = vmul.f32 %v795, %v3474
        %v3530 = vmul.f32 %v796, %v3476
        %v3531 = vmul.f32 %v797, %v3478
        %v3532 = vmul.f32 %v798, %v3480
        %v3533 = vmul.f32 %v799, %v3482
        %v3534 = vmul.f32 %v800, %v3484
        %v3535 = vmul.f32 %v801, %v3486
        %v3536 = vmul.f32 %v802, %v3488
        %v3537 = vmul.f32 %v803, %v3490
        %v3538 = vmul.f32 %v804, %v3492
        %v3539 = vmul.f32 %v805, %v3494
        %v3540 = vmul.f32 %v806, %v3496
        %v3541 = vmul.f32 %v807, %v3498
        %v3542 = vmul.f32 %v808, %v3500
        %v3543 = vmul.f32 %v809, %v3502
        %v3544 = vmul.f32 %v810, %v3504
        %v3545 = vmul.f32 %v811, %v3506
        %v3546 = vmul.f32 %v812, %v3508
        %v3547 = vmul.f32 %v813, %v3510
        %v3548 = vmul.f32 %v814, %v3512
        %v3549 = vmul.f32 %v815, %v3514
        %v3550 = vmul.f32 %v816, %v3516
        %v3551 = vmul.f32 %v817, %v3518
        %v3552 = vmul.f32 %v818, %v3520
        %v3553 = vpack.c.bf16 %v3522, %v3521
        %v3554 = vpack.c.bf16 %v3524, %v3523
        %v3555 = vpack.c.bf16 %v3526, %v3525
        %v3556 = vpack.c.bf16 %v3528, %v3527
        %v3557 = vpack.c.bf16 %v3530, %v3529
        %v3558 = vpack.c.bf16 %v3532, %v3531
        %v3559 = vpack.c.bf16 %v3534, %v3533
        %v3560 = vpack.c.bf16 %v3536, %v3535
        %v3561 = vpack.c.bf16 %v3538, %v3537
        %v3562 = vpack.c.bf16 %v3540, %v3539
        %v3563 = vpack.c.bf16 %v3542, %v3541
        %v3564 = vpack.c.bf16 %v3544, %v3543
        %v3565 = vpack.c.bf16 %v3546, %v3545
        %v3566 = vpack.c.bf16 %v3548, %v3547
        %v3567 = vpack.c.bf16 %v3550, %v3549
        %v3568 = vpack.c.bf16 %v3552, %v3551
        %v3569 = vld [vmem:[#allocation3] sm:$0xf]
        %v3570 = vld [vmem:[#allocation3 + $0x4] sm:$0xf]
        %v3571 = vld [vmem:[#allocation3 + $0x8] sm:$0xf]
        %v3572 = vld [vmem:[#allocation3 + $0xc] sm:$0xf]
        %v3573 = vld [vmem:[#allocation3 + $0x10] sm:$0xf]
        %v3574 = vld [vmem:[#allocation3 + $0x14] sm:$0xf]
        %v3575 = vld [vmem:[#allocation3 + $0x18] sm:$0xf]
        %v3576 = vld [vmem:[#allocation3 + $0x1c] sm:$0xf]
        %v3577 = vld [vmem:[#allocation3 + $0x20] sm:$0xf]
        %v3578 = vld [vmem:[#allocation3 + $0x24] sm:$0xf]
        %v3579 = vld [vmem:[#allocation3 + $0x28] sm:$0xf]
        %v3580 = vld [vmem:[#allocation3 + $0x2c] sm:$0xf]
        %v3581 = vld [vmem:[#allocation3 + $0x30] sm:$0xf]
        %v3582 = vld [vmem:[#allocation3 + $0x34] sm:$0xf]
        %v3583 = vld [vmem:[#allocation3 + $0x38] sm:$0xf]
        %v3584 = vld [vmem:[#allocation3 + $0x3c] sm:$0xf]
        %v3585 = vld [vmem:[#allocation9] sm:$0x1]
        %v3587 = vlaneseq
        %v3588 = vshrl.u32 %v3587, 7
        %v3589 = vsub.s32 0, %v3588
        %v3590 = vrot.slane %v3585, %v3589
        %v3608 = vunpack.c.l.b16 %v3569
        %v3609 = vunpack.c.l.b16 %v3570
        %v3610 = vunpack.c.l.b16 %v3571
        %v3611 = vunpack.c.l.b16 %v3572
        %v3612 = vunpack.c.l.b16 %v3573
        %v3613 = vunpack.c.l.b16 %v3574
        %v3614 = vunpack.c.l.b16 %v3575
        %v3615 = vunpack.c.l.b16 %v3576
        %v3616 = vunpack.c.l.b16 %v3577
        %v3617 = vunpack.c.l.b16 %v3578
        %v3618 = vunpack.c.l.b16 %v3579
        %v3619 = vunpack.c.l.b16 %v3580
        %v3620 = vunpack.c.l.b16 %v3581
        %v3621 = vunpack.c.l.b16 %v3582
        %v3622 = vunpack.c.l.b16 %v3583
        %v3623 = vunpack.c.l.b16 %v3584
        %v3624 = vpack.c.b16 %v3609, %v3608
        %v3625 = vpack.c.b16 %v3611, %v3610
        %v3626 = vpack.c.b16 %v3613, %v3612
        %v3627 = vpack.c.b16 %v3615, %v3614
        %v3628 = vpack.c.b16 %v3617, %v3616
        %v3629 = vpack.c.b16 %v3619, %v3618
        %v3630 = vpack.c.b16 %v3621, %v3620
        %v3631 = vpack.c.b16 %v3623, %v3622
        %3640 = vmatprep.subr.bf16.mxu0 0
        %3641 = vmatpush1.bf16.msra.mxu0 %v3624
        %3642 = vmatprep.subr.bf16.mxu0 0
        %3643 = vmatpush1.bf16.msra.mxu0 %v3625
        %3644 = vmatprep.subr.bf16.mxu0 0
        %3645 = vmatpush1.bf16.msra.mxu0 %v3626
        %3646 = vmatprep.subr.bf16.mxu0 0
        %3647 = vmatpush1.bf16.msra.mxu0 %v3627
        %3648 = vmatprep.subr.bf16.mxu0 0
        %3649 = vmatpush1.bf16.msra.mxu0 %v3628
        %3650 = vmatprep.subr.bf16.mxu0 0
        %3651 = vmatpush1.bf16.msra.mxu0 %v3629
        %3652 = vmatprep.subr.bf16.mxu0 0
        %3653 = vmatpush1.bf16.msra.mxu0 %v3630
        %3654 = vmatprep.subr.bf16.mxu0 0
        %3655 = vmatpush1.bf16.msra.mxu0 %v3631
        %3656 = vmatprep.subr.bf16.mxu0 0
        %3657 = vmatpush1.bf16.msra.mxu0 0
        %3658 = vmatprep.subr.bf16.mxu0 0
        %3659 = vmatpush1.bf16.msra.mxu0 0
        %3660 = vmatprep.subr.bf16.mxu0 0
        %3661 = vmatpush1.bf16.msra.mxu0 0
        %3662 = vmatprep.subr.bf16.mxu0 0
        %3663 = vmatpush1.bf16.msra.mxu0 0
        %3664 = vmatprep.subr.bf16.mxu0 0
        %3665 = vmatpush1.bf16.msra.mxu0 0
        %3666 = vmatprep.subr.bf16.mxu0 0
        %3667 = vmatpush1.bf16.msra.mxu0 0
        %3668 = vmatprep.subr.bf16.mxu0 0
        %3669 = vmatpush1.bf16.msra.mxu0 0
        %3670 = vmatprep.subr.bf16.mxu0 0
        %3671 = vmatpush1.bf16.msra.mxu0 0
        %3672 = vmatprep.mubr.bf16.mxu0 0
        %3673 = vmatmul.mubr.bf16.gmra.mrb[0].mxu0 %v3553
        %v3674 = vpop.f32.mrb[0].mxu0
        %v3675 = vadd.f32 %v3590, %v3674
        %v3676 = vpop.f32.mrb[0].mxu0
        %v3677 = vpop.f32.mrb[0].mxu0
        %v3678 = vadd.f32 %v3590, %v3677
        %v3679 = vpop.f32.mrb[0].mxu0
        %3680 = vmatprep.mubr.bf16.mxu0 0
        %3681 = vmatmul.mubr.bf16.gmra.mrb[0].mxu0 %v3554
        %v3682 = vpop.f32.mrb[0].mxu0
        %v3683 = vadd.f32 %v3590, %v3682
        %v3684 = vpop.f32.mrb[0].mxu0
        %v3685 = vpop.f32.mrb[0].mxu0
        %v3686 = vadd.f32 %v3590, %v3685
        %v3687 = vpop.f32.mrb[0].mxu0
        %3688 = vmatprep.mubr.bf16.mxu0 0
        %3689 = vmatmul.mubr.bf16.gmra.mrb[0].mxu0 %v3555
        %v3690 = vpop.f32.mrb[0].mxu0
        %v3691 = vadd.f32 %v3590, %v3690
        %v3692 = vpop.f32.mrb[0].mxu0
        %v3693 = vpop.f32.mrb[0].mxu0
        %v3694 = vadd.f32 %v3590, %v3693
        %v3695 = vpop.f32.mrb[0].mxu0
        %3696 = vmatprep.mubr.bf16.mxu0 0
        %3697 = vmatmul.mubr.bf16.gmra.mrb[0].mxu0 %v3556
        %v3698 = vpop.f32.mrb[0].mxu0
        %v3699 = vadd.f32 %v3590, %v3698
        %v3700 = vpop.f32.mrb[0].mxu0
        %v3701 = vpop.f32.mrb[0].mxu0
        %v3702 = vadd.f32 %v3590, %v3701
        %v3703 = vpop.f32.mrb[0].mxu0
        %3704 = vmatprep.mubr.bf16.mxu0 0
        %3705 = vmatmul.mubr.bf16.gmra.mrb[0].mxu0 %v3557
        %v3706 = vpop.f32.mrb[0].mxu0
        %v3707 = vadd.f32 %v3590, %v3706
        %v3708 = vpop.f32.mrb[0].mxu0
        %v3709 = vpop.f32.mrb[0].mxu0
        %v3710 = vadd.f32 %v3590, %v3709
        %v3711 = vpop.f32.mrb[0].mxu0
        %3712 = vmatprep.mubr.bf16.mxu0 0
        %3713 = vmatmul.mubr.bf16.gmra.mrb[0].mxu0 %v3558
        %v3714 = vpop.f32.mrb[0].mxu0
        %v3715 = vadd.f32 %v3590, %v3714
        %v3716 = vpop.f32.mrb[0].mxu0
        %v3717 = vpop.f32.mrb[0].mxu0
        %v3718 = vadd.f32 %v3590, %v3717
        %v3719 = vpop.f32.mrb[0].mxu0
        %3720 = vmatprep.mubr.bf16.mxu0 0
        %3721 = vmatmul.mubr.bf16.gmra.mrb[0].mxu0 %v3559
        %v3722 = vpop.f32.mrb[0].mxu0
        %v3723 = vadd.f32 %v3590, %v3722
        %v3724 = vpop.f32.mrb[0].mxu0
        %v3725 = vpop.f32.mrb[0].mxu0
        %v3726 = vadd.f32 %v3590, %v3725
        %v3727 = vpop.f32.mrb[0].mxu0
        %3728 = vmatprep.mubr.bf16.mxu0 0
        %3729 = vmatmul.mubr.bf16.gmra.mrb[0].mxu0 %v3560
        %v3730 = vpop.f32.mrb[0].mxu0
        %v3731 = vadd.f32 %v3590, %v3730
        %v3732 = vpop.f32.mrb[0].mxu0
        %v3733 = vpop.f32.mrb[0].mxu0
        %v3734 = vadd.f32 %v3590, %v3733
        %v3735 = vpop.f32.mrb[0].mxu0
        %3736 = vmatprep.mubr.bf16.mxu0 0
        %3737 = vmatmul.mubr.bf16.gmra.mrb[0].mxu0 %v3561
        %v3738 = vpop.f32.mrb[0].mxu0
        %v3739 = vadd.f32 %v3590, %v3738
        %v3740 = vpop.f32.mrb[0].mxu0
        %v3741 = vpop.f32.mrb[0].mxu0
        %v3742 = vadd.f32 %v3590, %v3741
        %v3743 = vpop.f32.mrb[0].mxu0
        %3744 = vmatprep.mubr.bf16.mxu0 0
        %3745 = vmatmul.mubr.bf16.gmra.mrb[0].mxu0 %v3562
        %v3746 = vpop.f32.mrb[0].mxu0
        %v3747 = vadd.f32 %v3590, %v3746
        %v3748 = vpop.f32.mrb[0].mxu0
        %v3749 = vpop.f32.mrb[0].mxu0
        %v3750 = vadd.f32 %v3590, %v3749
        %v3751 = vpop.f32.mrb[0].mxu0
        %3752 = vmatprep.mubr.bf16.mxu0 0
        %3753 = vmatmul.mubr.bf16.gmra.mrb[0].mxu0 %v3563
        %v3754 = vpop.f32.mrb[0].mxu0
        %v3755 = vadd.f32 %v3590, %v3754
        %v3756 = vpop.f32.mrb[0].mxu0
        %v3757 = vpop.f32.mrb[0].mxu0
        %v3758 = vadd.f32 %v3590, %v3757
        %v3759 = vpop.f32.mrb[0].mxu0
        %3760 = vmatprep.mubr.bf16.mxu0 0
        %3761 = vmatmul.mubr.bf16.gmra.mrb[0].mxu0 %v3564
        %v3762 = vpop.f32.mrb[0].mxu0
        %v3763 = vadd.f32 %v3590, %v3762
        %v3764 = vpop.f32.mrb[0].mxu0
        %v3765 = vpop.f32.mrb[0].mxu0
        %v3766 = vadd.f32 %v3590, %v3765
        %v3767 = vpop.f32.mrb[0].mxu0
        %3768 = vmatprep.mubr.bf16.mxu0 0
        %3769 = vmatmul.mubr.bf16.gmra.mrb[0].mxu0 %v3565
        %v3770 = vpop.f32.mrb[0].mxu0
        %v3771 = vadd.f32 %v3590, %v3770
        %v3772 = vpop.f32.mrb[0].mxu0
        %v3773 = vpop.f32.mrb[0].mxu0
        %v3774 = vadd.f32 %v3590, %v3773
        %v3775 = vpop.f32.mrb[0].mxu0
        %3776 = vmatprep.mubr.bf16.mxu0 0
        %3777 = vmatmul.mubr.bf16.gmra.mrb[0].mxu0 %v3566
        %v3778 = vpop.f32.mrb[0].mxu0
        %v3779 = vadd.f32 %v3590, %v3778
        %v3780 = vpop.f32.mrb[0].mxu0
        %v3781 = vpop.f32.mrb[0].mxu0
        %v3782 = vadd.f32 %v3590, %v3781
        %v3783 = vpop.f32.mrb[0].mxu0
        %3784 = vmatprep.mubr.bf16.mxu0 0
        %3785 = vmatmul.mubr.bf16.gmra.mrb[0].mxu0 %v3567
        %v3786 = vpop.f32.mrb[0].mxu0
        %v3787 = vadd.f32 %v3590, %v3786
        %v3788 = vpop.f32.mrb[0].mxu0
        %v3789 = vpop.f32.mrb[0].mxu0
        %v3790 = vadd.f32 %v3590, %v3789
        %v3791 = vpop.f32.mrb[0].mxu0
        %3792 = vmatprep.mubr.bf16.mxu0 0
        %3793 = vmatmul.mubr.bf16.gmra.mrb[0].mxu0 %v3568
        %v3794 = vpop.f32.mrb[0].mxu0
        %v3795 = vadd.f32 %v3590, %v3794
        %v3796 = vpop.f32.mrb[0].mxu0
        %v3797 = vpop.f32.mrb[0].mxu0
        %v3798 = vadd.f32 %v3590, %v3797
        %v3799 = vpop.f32.mrb[0].mxu0
        %3800 = vdwg.mxu0
        %v3801 = vmax.f32 %v3675, 0.0
        %v3802 = vmax.f32 %v3678, 0.0
        %v3803 = vmax.f32 %v3683, 0.0
        %v3804 = vmax.f32 %v3686, 0.0
        %v3805 = vmax.f32 %v3691, 0.0
        %v3806 = vmax.f32 %v3694, 0.0
        %v3807 = vmax.f32 %v3699, 0.0
        %v3808 = vmax.f32 %v3702, 0.0
        %v3809 = vmax.f32 %v3707, 0.0
        %v3810 = vmax.f32 %v3710, 0.0
        %v3811 = vmax.f32 %v3715, 0.0
        %v3812 = vmax.f32 %v3718, 0.0
        %v3813 = vmax.f32 %v3723, 0.0
        %v3814 = vmax.f32 %v3726, 0.0
        %v3815 = vmax.f32 %v3731, 0.0
        %v3816 = vmax.f32 %v3734, 0.0
        %v3817 = vmax.f32 %v3739, 0.0
        %v3818 = vmax.f32 %v3742, 0.0
        %v3819 = vmax.f32 %v3747, 0.0
        %v3820 = vmax.f32 %v3750, 0.0
        %v3821 = vmax.f32 %v3755, 0.0
        %v3822 = vmax.f32 %v3758, 0.0
        %v3823 = vmax.f32 %v3763, 0.0
        %v3824 = vmax.f32 %v3766, 0.0
        %v3825 = vmax.f32 %v3771, 0.0
        %v3826 = vmax.f32 %v3774, 0.0
        %v3827 = vmax.f32 %v3779, 0.0
        %v3828 = vmax.f32 %v3782, 0.0
        %v3829 = vmax.f32 %v3787, 0.0
        %v3830 = vmax.f32 %v3790, 0.0
        %v3831 = vmax.f32 %v3795, 0.0
        %v3832 = vmax.f32 %v3798, 0.0
        %3833 = vadd.xlane.f32.xlu0 %v3801
        %v3834 = vpop.xlane.xlu0 %3833
        %3835 = vadd.xlane.f32.xlu0 %v3802
        %v3836 = vpop.xlane.xlu0 %3835
        %3837 = vadd.xlane.f32.xlu0 %v3803
        %v3838 = vpop.xlane.xlu0 %3837
        %3839 = vadd.xlane.f32.xlu0 %v3804
        %v3840 = vpop.xlane.xlu0 %3839
        %3841 = vadd.xlane.f32.xlu0 %v3805
        %v3842 = vpop.xlane.xlu0 %3841
        %3843 = vadd.xlane.f32.xlu0 %v3806
        %v3844 = vpop.xlane.xlu0 %3843
        %3845 = vadd.xlane.f32.xlu0 %v3807
        %v3846 = vpop.xlane.xlu0 %3845
        %3847 = vadd.xlane.f32.xlu0 %v3808
        %v3848 = vpop.xlane.xlu0 %3847
        %3849 = vadd.xlane.f32.xlu0 %v3809
        %v3850 = vpop.xlane.xlu0 %3849
        %3851 = vadd.xlane.f32.xlu0 %v3810
        %v3852 = vpop.xlane.xlu0 %3851
        %3853 = vadd.xlane.f32.xlu0 %v3811
        %v3854 = vpop.xlane.xlu0 %3853
        %3855 = vadd.xlane.f32.xlu0 %v3812
        %v3856 = vpop.xlane.xlu0 %3855
        %3857 = vadd.xlane.f32.xlu0 %v3813
        %v3858 = vpop.xlane.xlu0 %3857
        %3859 = vadd.xlane.f32.xlu0 %v3814
        %v3860 = vpop.xlane.xlu0 %3859
        %3861 = vadd.xlane.f32.xlu0 %v3815
        %v3862 = vpop.xlane.xlu0 %3861
        %3863 = vadd.xlane.f32.xlu0 %v3816
        %v3864 = vpop.xlane.xlu0 %3863
        %3865 = vadd.xlane.f32.xlu0 %v3817
        %v3866 = vpop.xlane.xlu0 %3865
        %3867 = vadd.xlane.f32.xlu0 %v3818
        %v3868 = vpop.xlane.xlu0 %3867
        %3869 = vadd.xlane.f32.xlu0 %v3819
        %v3870 = vpop.xlane.xlu0 %3869
        %3871 = vadd.xlane.f32.xlu0 %v3820
        %v3872 = vpop.xlane.xlu0 %3871
        %3873 = vadd.xlane.f32.xlu0 %v3821
        %v3874 = vpop.xlane.xlu0 %3873
        %3875 = vadd.xlane.f32.xlu0 %v3822
        %v3876 = vpop.xlane.xlu0 %3875
        %3877 = vadd.xlane.f32.xlu0 %v3823
        %v3878 = vpop.xlane.xlu0 %3877
        %3879 = vadd.xlane.f32.xlu0 %v3824
        %v3880 = vpop.xlane.xlu0 %3879
        %3881 = vadd.xlane.f32.xlu0 %v3825
        %v3882 = vpop.xlane.xlu0 %3881
        %3883 = vadd.xlane.f32.xlu0 %v3826
        %v3884 = vpop.xlane.xlu0 %3883
        %3885 = vadd.xlane.f32.xlu0 %v3827
        %v3886 = vpop.xlane.xlu0 %3885
        %3887 = vadd.xlane.f32.xlu0 %v3828
        %v3888 = vpop.xlane.xlu0 %3887
        %3889 = vadd.xlane.f32.xlu0 %v3829
        %v3890 = vpop.xlane.xlu0 %3889
        %3891 = vadd.xlane.f32.xlu0 %v3830
        %v3892 = vpop.xlane.xlu0 %3891
        %3893 = vadd.xlane.f32.xlu0 %v3831
        %v3894 = vpop.xlane.xlu0 %3893
        %3895 = vadd.xlane.f32.xlu0 %v3832
        %v3896 = vpop.xlane.xlu0 %3895
        %3897 = vmax.xlane.f32.xlu0 %v3801
        %v3898 = vpop.xlane.xlu0 %3897
        %3899 = vmax.xlane.f32.xlu0 %v3802
        %v3900 = vpop.xlane.xlu0 %3899
        %3901 = vmax.xlane.f32.xlu0 %v3803
        %v3902 = vpop.xlane.xlu0 %3901
        %3903 = vmax.xlane.f32.xlu0 %v3804
        %v3904 = vpop.xlane.xlu0 %3903
        %3905 = vmax.xlane.f32.xlu0 %v3805
        %v3906 = vpop.xlane.xlu0 %3905
        %3907 = vmax.xlane.f32.xlu0 %v3806
        %v3908 = vpop.xlane.xlu0 %3907
        %3909 = vmax.xlane.f32.xlu0 %v3807
        %v3910 = vpop.xlane.xlu0 %3909
        %3911 = vmax.xlane.f32.xlu0 %v3808
        %v3912 = vpop.xlane.xlu0 %3911
        %3913 = vmax.xlane.f32.xlu0 %v3809
        %v3914 = vpop.xlane.xlu0 %3913
        %3915 = vmax.xlane.f32.xlu0 %v3810
        %v3916 = vpop.xlane.xlu0 %3915
        %3917 = vmax.xlane.f32.xlu0 %v3811
        %v3918 = vpop.xlane.xlu0 %3917
        %3919 = vmax.xlane.f32.xlu0 %v3812
        %v3920 = vpop.xlane.xlu0 %3919
        %3921 = vmax.xlane.f32.xlu0 %v3813
        %v3922 = vpop.xlane.xlu0 %3921
        %3923 = vmax.xlane.f32.xlu0 %v3814
        %v3924 = vpop.xlane.xlu0 %3923
        %3925 = vmax.xlane.f32.xlu0 %v3815
        %v3926 = vpop.xlane.xlu0 %3925
        %3927 = vmax.xlane.f32.xlu0 %v3816
        %v3928 = vpop.xlane.xlu0 %3927
        %3929 = vmax.xlane.f32.xlu0 %v3817
        %v3930 = vpop.xlane.xlu0 %3929
        %3931 = vmax.xlane.f32.xlu0 %v3818
        %v3932 = vpop.xlane.xlu0 %3931
        %3933 = vmax.xlane.f32.xlu0 %v3819
        %v3934 = vpop.xlane.xlu0 %3933
        %3935 = vmax.xlane.f32.xlu0 %v3820
        %v3936 = vpop.xlane.xlu0 %3935
        %3937 = vmax.xlane.f32.xlu0 %v3821
        %v3938 = vpop.xlane.xlu0 %3937
        %3939 = vmax.xlane.f32.xlu0 %v3822
        %v3940 = vpop.xlane.xlu0 %3939
        %3941 = vmax.xlane.f32.xlu0 %v3823
        %v3942 = vpop.xlane.xlu0 %3941
        %3943 = vmax.xlane.f32.xlu0 %v3824
        %v3944 = vpop.xlane.xlu0 %3943
        %3945 = vmax.xlane.f32.xlu0 %v3825
        %v3946 = vpop.xlane.xlu0 %3945
        %3947 = vmax.xlane.f32.xlu0 %v3826
        %v3948 = vpop.xlane.xlu0 %3947
        %3949 = vmax.xlane.f32.xlu0 %v3827
        %v3950 = vpop.xlane.xlu0 %3949
        %3951 = vmax.xlane.f32.xlu0 %v3828
        %v3952 = vpop.xlane.xlu0 %3951
        %3953 = vmax.xlane.f32.xlu0 %v3829
        %v3954 = vpop.xlane.xlu0 %3953
        %3955 = vmax.xlane.f32.xlu0 %v3830
        %v3956 = vpop.xlane.xlu0 %3955
        %3957 = vmax.xlane.f32.xlu0 %v3831
        %v3958 = vpop.xlane.xlu0 %3957
        %3959 = vmax.xlane.f32.xlu0 %v3832
        %v3960 = vpop.xlane.xlu0 %3959
        %v3961 = vsel %vm947, %v3834, %v3898
        %v3962 = vsel %vm947, %v3836, %v3900
        %v3963 = vsel %vm947, %v3838, %v3902
        %v3964 = vsel %vm947, %v3840, %v3904
        %v3965 = vsel %vm947, %v3842, %v3906
        %v3966 = vsel %vm947, %v3844, %v3908
        %v3967 = vsel %vm947, %v3846, %v3910
        %v3968 = vsel %vm947, %v3848, %v3912
        %v3969 = vsel %vm947, %v3850, %v3914
        %v3970 = vsel %vm947, %v3852, %v3916
        %v3971 = vsel %vm947, %v3854, %v3918
        %v3972 = vsel %vm947, %v3856, %v3920
        %v3973 = vsel %vm947, %v3858, %v3922
        %v3974 = vsel %vm947, %v3860, %v3924
        %v3975 = vsel %vm947, %v3862, %v3926
        %v3976 = vsel %vm947, %v3864, %v3928
        %v3977 = vsel %vm947, %v3866, %v3930
        %v3978 = vsel %vm947, %v3868, %v3932
        %v3979 = vsel %vm947, %v3870, %v3934
        %v3980 = vsel %vm947, %v3872, %v3936
        %v3981 = vsel %vm947, %v3874, %v3938
        %v3982 = vsel %vm947, %v3876, %v3940
        %v3983 = vsel %vm947, %v3878, %v3942
        %v3984 = vsel %vm947, %v3880, %v3944
        %v3985 = vsel %vm947, %v3882, %v3946
        %v3986 = vsel %vm947, %v3884, %v3948
        %v3987 = vsel %vm947, %v3886, %v3950
        %v3988 = vsel %vm947, %v3888, %v3952
        %v3989 = vsel %vm947, %v3890, %v3954
        %v3990 = vsel %vm947, %v3892, %v3956
        %v3991 = vsel %vm947, %v3894, %v3958
        %v3992 = vsel %vm947, %v3896, %v3960
        %3993 = vst.msk [vmem:[#allocation2 + $0x10] sm:$0xff] %vm390, %v3961
        %3994 = vst.msk [vmem:[#allocation2 + $0x18] sm:$0xff] %vm390, %v3962
        %3995 = vst.msk [vmem:[#allocation2 + $0x20] sm:$0xff] %vm390, %v3963
        %3996 = vst.msk [vmem:[#allocation2 + $0x28] sm:$0xff] %vm390, %v3964
        %3997 = vst.msk [vmem:[#allocation2 + $0x30] sm:$0xff] %vm390, %v3965
        %3998 = vst.msk [vmem:[#allocation2 + $0x38] sm:$0xff] %vm390, %v3966
        %3999 = vst.msk [vmem:[#allocation2 + $0x40] sm:$0xff] %vm390, %v3967
        %4000 = vst.msk [vmem:[#allocation2 + $0x48] sm:$0xff] %vm390, %v3968
        %4001 = vst.msk [vmem:[#allocation2 + $0x50] sm:$0xff] %vm390, %v3969
        %4002 = vst.msk [vmem:[#allocation2 + $0x58] sm:$0xff] %vm390, %v3970
        %4003 = vst.msk [vmem:[#allocation2 + $0x60] sm:$0xff] %vm390, %v3971
        %4004 = vst.msk [vmem:[#allocation2 + $0x68] sm:$0xff] %vm390, %v3972
        %4005 = vst.msk [vmem:[#allocation2 + $0x70] sm:$0xff] %vm390, %v3973
        %4006 = vst.msk [vmem:[#allocation2 + $0x78] sm:$0xff] %vm390, %v3974
        %4007 = vst.msk [vmem:[#allocation2 + $0x80] sm:$0xff] %vm390, %v3975
        %4008 = vst.msk [vmem:[#allocation2 + $0x88] sm:$0xff] %vm390, %v3976
        %4009 = vst.msk [vmem:[#allocation2 + $0x90] sm:$0xff] %vm390, %v3977
        %4010 = vst.msk [vmem:[#allocation2 + $0x98] sm:$0xff] %vm390, %v3978
        %4011 = vst.msk [vmem:[#allocation2 + $0xa0] sm:$0xff] %vm390, %v3979
        %4012 = vst.msk [vmem:[#allocation2 + $0xa8] sm:$0xff] %vm390, %v3980
        %4013 = vst.msk [vmem:[#allocation2 + $0xb0] sm:$0xff] %vm390, %v3981
        %4014 = vst.msk [vmem:[#allocation2 + $0xb8] sm:$0xff] %vm390, %v3982
        %4015 = vst.msk [vmem:[#allocation2 + $0xc0] sm:$0xff] %vm390, %v3983
        %4016 = vst.msk [vmem:[#allocation2 + $0xc8] sm:$0xff] %vm390, %v3984
        %4017 = vst.msk [vmem:[#allocation2 + $0xd0] sm:$0xff] %vm390, %v3985
        %4018 = vst.msk [vmem:[#allocation2 + $0xd8] sm:$0xff] %vm390, %v3986
        %4019 = vst.msk [vmem:[#allocation2 + $0xe0] sm:$0xff] %vm390, %v3987
        %4020 = vst.msk [vmem:[#allocation2 + $0xe8] sm:$0xff] %vm390, %v3988
        %4021 = vst.msk [vmem:[#allocation2 + $0xf0] sm:$0xff] %vm390, %v3989
        %4022 = vst.msk [vmem:[#allocation2 + $0xf8] sm:$0xff] %vm390, %v3990
        %4023 = vst.msk [vmem:[#allocation2 + $0x100] sm:$0xff] %vm390, %v3991
        %4024 = vst.msk [vmem:[#allocation2 + $0x108] sm:$0xff] %vm390, %v3992
        %v4025 = vld [vmem:[#allocation2 + $0x7] sm:$0xff]
        %v4026 = vld [vmem:[#allocation2 + $0xf] sm:$0xff]
        %v4027 = vld [vmem:[#allocation2 + $0x17] sm:$0xff]
        %v4028 = vld [vmem:[#allocation2 + $0x1f] sm:$0xff]
        %v4029 = vld [vmem:[#allocation2 + $0x27] sm:$0xff]
        %v4030 = vld [vmem:[#allocation2 + $0x2f] sm:$0xff]
        %v4031 = vld [vmem:[#allocation2 + $0x37] sm:$0xff]
        %v4032 = vld [vmem:[#allocation2 + $0x3f] sm:$0xff]
        %v4033 = vld [vmem:[#allocation2 + $0x47] sm:$0xff]
        %v4034 = vld [vmem:[#allocation2 + $0x4f] sm:$0xff]
        %v4035 = vld [vmem:[#allocation2 + $0x57] sm:$0xff]
        %v4036 = vld [vmem:[#allocation2 + $0x5f] sm:$0xff]
        %v4037 = vld [vmem:[#allocation2 + $0x67] sm:$0xff]
        %v4038 = vld [vmem:[#allocation2 + $0x6f] sm:$0xff]
        %v4039 = vld [vmem:[#allocation2 + $0x77] sm:$0xff]
        %v4040 = vld [vmem:[#allocation2 + $0x7f] sm:$0xff]
        %v4041 = vld [vmem:[#allocation2 + $0x87] sm:$0xff]
        %v4042 = vld [vmem:[#allocation2 + $0x8f] sm:$0xff]
        %v4043 = vld [vmem:[#allocation2 + $0x97] sm:$0xff]
        %v4044 = vld [vmem:[#allocation2 + $0x9f] sm:$0xff]
        %v4045 = vld [vmem:[#allocation2 + $0xa7] sm:$0xff]
        %v4046 = vld [vmem:[#allocation2 + $0xaf] sm:$0xff]
        %v4047 = vld [vmem:[#allocation2 + $0xb7] sm:$0xff]
        %v4048 = vld [vmem:[#allocation2 + $0xbf] sm:$0xff]
        %v4049 = vld [vmem:[#allocation2 + $0xc7] sm:$0xff]
        %v4050 = vld [vmem:[#allocation2 + $0xcf] sm:$0xff]
        %v4051 = vld [vmem:[#allocation2 + $0xd7] sm:$0xff]
        %v4052 = vld [vmem:[#allocation2 + $0xdf] sm:$0xff]
        %v4053 = vld [vmem:[#allocation2 + $0xe7] sm:$0xff]
        %v4054 = vld [vmem:[#allocation2 + $0xef] sm:$0xff]
        %v4055 = vld [vmem:[#allocation2 + $0xf7] sm:$0xff]
        %v4056 = vld [vmem:[#allocation2 + $0xff] sm:$0xff]
        %v4057 = vld [vmem:[%s7] sm:$0x1]
        %v4058 = vlaneseq
        %v4059 = vshrl.u32 %v4058, 7
        %v4060 = vsub.s32 0, %v4059
        %v4061 = vrot.slane %v4057, %v4060
        %v4062 = vmul.f32 %v4025, %v4061
        %v4063 = vmul.f32 %v4026, %v4061
        %v4064 = vmul.f32 %v4027, %v4061
        %v4065 = vmul.f32 %v4028, %v4061
        %v4066 = vmul.f32 %v4029, %v4061
        %v4067 = vmul.f32 %v4030, %v4061
        %v4068 = vmul.f32 %v4031, %v4061
        %v4069 = vmul.f32 %v4032, %v4061
        %v4070 = vmul.f32 %v4033, %v4061
        %v4071 = vmul.f32 %v4034, %v4061
        %v4072 = vmul.f32 %v4035, %v4061
        %v4073 = vmul.f32 %v4036, %v4061
        %v4074 = vmul.f32 %v4037, %v4061
        %v4075 = vmul.f32 %v4038, %v4061
        %v4076 = vmul.f32 %v4039, %v4061
        %v4077 = vmul.f32 %v4040, %v4061
        %v4078 = vmul.f32 %v4041, %v4061
        %v4079 = vmul.f32 %v4042, %v4061
        %v4080 = vmul.f32 %v4043, %v4061
        %v4081 = vmul.f32 %v4044, %v4061
        %v4082 = vmul.f32 %v4045, %v4061
        %v4083 = vmul.f32 %v4046, %v4061
        %v4084 = vmul.f32 %v4047, %v4061
        %v4085 = vmul.f32 %v4048, %v4061
        %v4086 = vmul.f32 %v4049, %v4061
        %v4087 = vmul.f32 %v4050, %v4061
        %v4088 = vmul.f32 %v4051, %v4061
        %v4089 = vmul.f32 %v4052, %v4061
        %v4090 = vmul.f32 %v4053, %v4061
        %v4091 = vmul.f32 %v4054, %v4061
        %v4092 = vmul.f32 %v4055, %v4061
        %v4093 = vmul.f32 %v4056, %v4061
        %v4094 = vmul.f32 %v4062, %v1084
        %v4095 = vmul.f32 %v4063, %v1089
        %v4096 = vmul.f32 %v4064, %v1094
        %v4097 = vmul.f32 %v4065, %v1099
        %v4098 = vmul.f32 %v4066, %v1104
        %v4099 = vmul.f32 %v4067, %v1109
        %v4100 = vmul.f32 %v4068, %v1114
        %v4101 = vmul.f32 %v4069, %v1119
        %v4102 = vmul.f32 %v4070, %v1124
        %v4103 = vmul.f32 %v4071, %v1129
        %v4104 = vmul.f32 %v4072, %v1134
        %v4105 = vmul.f32 %v4073, %v1139
        %v4106 = vmul.f32 %v4074, %v1144
        %v4107 = vmul.f32 %v4075, %v1149
        %v4108 = vmul.f32 %v4076, %v1154
        %v4109 = vmul.f32 %v4077, %v1159
        %v4110 = vmul.f32 %v4078, %v1164
        %v4111 = vmul.f32 %v4079, %v1169
        %v4112 = vmul.f32 %v4080, %v1174
        %v4113 = vmul.f32 %v4081, %v1179
        %v4114 = vmul.f32 %v4082, %v1184
        %v4115 = vmul.f32 %v4083, %v1189
        %v4116 = vmul.f32 %v4084, %v1194
        %v4117 = vmul.f32 %v4085, %v1199
        %v4118 = vmul.f32 %v4086, %v1204
        %v4119 = vmul.f32 %v4087, %v1209
        %v4120 = vmul.f32 %v4088, %v1214
        %v4121 = vmul.f32 %v4089, %v1219
        %v4122 = vmul.f32 %v4090, %v1224
        %v4123 = vmul.f32 %v4091, %v1229
        %v4124 = vmul.f32 %v4092, %v1234
        %v4125 = vmul.f32 %v4093, %v1239
        %v4126 = vadd.f32 %v4094, 0.0
        %v4127 = vadd.f32 %v4095, 0.0
        %v4128 = vadd.f32 %v4096, 0.0
        %v4129 = vadd.f32 %v4097, 0.0
        %v4130 = vadd.f32 %v4098, 0.0
        %v4131 = vadd.f32 %v4099, 0.0
        %v4132 = vadd.f32 %v4100, 0.0
        %v4133 = vadd.f32 %v4101, 0.0
        %v4134 = vadd.f32 %v4102, 0.0
        %v4135 = vadd.f32 %v4103, 0.0
        %v4136 = vadd.f32 %v4104, 0.0
        %v4137 = vadd.f32 %v4105, 0.0
        %v4138 = vadd.f32 %v4106, 0.0
        %v4139 = vadd.f32 %v4107, 0.0
        %v4140 = vadd.f32 %v4108, 0.0
        %v4141 = vadd.f32 %v4109, 0.0
        %v4142 = vadd.f32 %v4110, 0.0
        %v4143 = vadd.f32 %v4111, 0.0
        %v4144 = vadd.f32 %v4112, 0.0
        %v4145 = vadd.f32 %v4113, 0.0
        %v4146 = vadd.f32 %v4114, 0.0
        %v4147 = vadd.f32 %v4115, 0.0
        %v4148 = vadd.f32 %v4116, 0.0
        %v4149 = vadd.f32 %v4117, 0.0
        %v4150 = vadd.f32 %v4118, 0.0
        %v4151 = vadd.f32 %v4119, 0.0
        %v4152 = vadd.f32 %v4120, 0.0
        %v4153 = vadd.f32 %v4121, 0.0
        %v4154 = vadd.f32 %v4122, 0.0
        %v4155 = vadd.f32 %v4123, 0.0
        %v4156 = vadd.f32 %v4124, 0.0
        %v4157 = vadd.f32 %v4125, 0.0
        %v4158 = vld [vmem:[#allocation2 + $0x8] sm:$0xff]
        %v4159 = vld [vmem:[#allocation2 + $0x10] sm:$0xff]
        %v4160 = vld [vmem:[#allocation2 + $0x18] sm:$0xff]
        %v4161 = vld [vmem:[#allocation2 + $0x20] sm:$0xff]
        %v4162 = vld [vmem:[#allocation2 + $0x28] sm:$0xff]
        %v4163 = vld [vmem:[#allocation2 + $0x30] sm:$0xff]
        %v4164 = vld [vmem:[#allocation2 + $0x38] sm:$0xff]
        %v4165 = vld [vmem:[#allocation2 + $0x40] sm:$0xff]
        %v4166 = vld [vmem:[#allocation2 + $0x48] sm:$0xff]
        %v4167 = vld [vmem:[#allocation2 + $0x50] sm:$0xff]
        %v4168 = vld [vmem:[#allocation2 + $0x58] sm:$0xff]
        %v4169 = vld [vmem:[#allocation2 + $0x60] sm:$0xff]
        %v4170 = vld [vmem:[#allocation2 + $0x68] sm:$0xff]
        %v4171 = vld [vmem:[#allocation2 + $0x70] sm:$0xff]
        %v4172 = vld [vmem:[#allocation2 + $0x78] sm:$0xff]
        %v4173 = vld [vmem:[#allocation2 + $0x80] sm:$0xff]
        %v4174 = vld [vmem:[#allocation2 + $0x88] sm:$0xff]
        %v4175 = vld [vmem:[#allocation2 + $0x90] sm:$0xff]
        %v4176 = vld [vmem:[#allocation2 + $0x98] sm:$0xff]
        %v4177 = vld [vmem:[#allocation2 + $0xa0] sm:$0xff]
        %v4178 = vld [vmem:[#allocation2 + $0xa8] sm:$0xff]
        %v4179 = vld [vmem:[#allocation2 + $0xb0] sm:$0xff]
        %v4180 = vld [vmem:[#allocation2 + $0xb8] sm:$0xff]
        %v4181 = vld [vmem:[#allocation2 + $0xc0] sm:$0xff]
        %v4182 = vld [vmem:[#allocation2 + $0xc8] sm:$0xff]
        %v4183 = vld [vmem:[#allocation2 + $0xd0] sm:$0xff]
        %v4184 = vld [vmem:[#allocation2 + $0xd8] sm:$0xff]
        %v4185 = vld [vmem:[#allocation2 + $0xe0] sm:$0xff]
        %v4186 = vld [vmem:[#allocation2 + $0xe8] sm:$0xff]
        %v4187 = vld [vmem:[#allocation2 + $0xf0] sm:$0xff]
        %v4188 = vld [vmem:[#allocation2 + $0xf8] sm:$0xff]
        %v4189 = vld [vmem:[#allocation2 + $0x100] sm:$0xff]
        %v4190 = vld [vmem:[%s7 + $0x1] sm:$0x1]
        %v4191 = vlaneseq
        %v4192 = vshrl.u32 %v4191, 7
        %v4193 = vsub.s32 0, %v4192
        %v4194 = vrot.slane %v4190, %v4193
        %v4195 = vmul.f32 %v4158, %v4194
        %v4196 = vmul.f32 %v4159, %v4194
        %v4197 = vmul.f32 %v4160, %v4194
        %v4198 = vmul.f32 %v4161, %v4194
        %v4199 = vmul.f32 %v4162, %v4194
        %v4200 = vmul.f32 %v4163, %v4194
        %v4201 = vmul.f32 %v4164, %v4194
        %v4202 = vmul.f32 %v4165, %v4194
        %v4203 = vmul.f32 %v4166, %v4194
        %v4204 = vmul.f32 %v4167, %v4194
        %v4205 = vmul.f32 %v4168, %v4194
        %v4206 = vmul.f32 %v4169, %v4194
        %v4207 = vmul.f32 %v4170, %v4194
        %v4208 = vmul.f32 %v4171, %v4194
        %v4209 = vmul.f32 %v4172, %v4194
        %v4210 = vmul.f32 %v4173, %v4194
        %v4211 = vmul.f32 %v4174, %v4194
        %v4212 = vmul.f32 %v4175, %v4194
        %v4213 = vmul.f32 %v4176, %v4194
        %v4214 = vmul.f32 %v4177, %v4194
        %v4215 = vmul.f32 %v4178, %v4194
        %v4216 = vmul.f32 %v4179, %v4194
        %v4217 = vmul.f32 %v4180, %v4194
        %v4218 = vmul.f32 %v4181, %v4194
        %v4219 = vmul.f32 %v4182, %v4194
        %v4220 = vmul.f32 %v4183, %v4194
        %v4221 = vmul.f32 %v4184, %v4194
        %v4222 = vmul.f32 %v4185, %v4194
        %v4223 = vmul.f32 %v4186, %v4194
        %v4224 = vmul.f32 %v4187, %v4194
        %v4225 = vmul.f32 %v4188, %v4194
        %v4226 = vmul.f32 %v4189, %v4194
        %v4227 = vmul.f32 %v4195, %v1376
        %v4228 = vmul.f32 %v4196, %v1380
        %v4229 = vmul.f32 %v4197, %v1384
        %v4230 = vmul.f32 %v4198, %v1388
        %v4231 = vmul.f32 %v4199, %v1392
        %v4232 = vmul.f32 %v4200, %v1396
        %v4233 = vmul.f32 %v4201, %v1400
        %v4234 = vmul.f32 %v4202, %v1404
        %v4235 = vmul.f32 %v4203, %v1408
        %v4236 = vmul.f32 %v4204, %v1412
        %v4237 = vmul.f32 %v4205, %v1416
        %v4238 = vmul.f32 %v4206, %v1420
        %v4239 = vmul.f32 %v4207, %v1424
        %v4240 = vmul.f32 %v4208, %v1428
        %v4241 = vmul.f32 %v4209, %v1432
        %v4242 = vmul.f32 %v4210, %v1436
        %v4243 = vmul.f32 %v4211, %v1440
        %v4244 = vmul.f32 %v4212, %v1444
        %v4245 = vmul.f32 %v4213, %v1448
        %v4246 = vmul.f32 %v4214, %v1452
        %v4247 = vmul.f32 %v4215, %v1456
        %v4248 = vmul.f32 %v4216, %v1460
        %v4249 = vmul.f32 %v4217, %v1464
        %v4250 = vmul.f32 %v4218, %v1468
        %v4251 = vmul.f32 %v4219, %v1472
        %v4252 = vmul.f32 %v4220, %v1476
        %v4253 = vmul.f32 %v4221, %v1480
        %v4254 = vmul.f32 %v4222, %v1484
        %v4255 = vmul.f32 %v4223, %v1488
        %v4256 = vmul.f32 %v4224, %v1492
        %v4257 = vmul.f32 %v4225, %v1496
        %v4258 = vmul.f32 %v4226, %v1500
        %v4259 = vadd.f32 %v4126, %v4227
        %v4260 = vadd.f32 %v4127, %v4228
        %v4261 = vadd.f32 %v4128, %v4229
        %v4262 = vadd.f32 %v4129, %v4230
        %v4263 = vadd.f32 %v4130, %v4231
        %v4264 = vadd.f32 %v4131, %v4232
        %v4265 = vadd.f32 %v4132, %v4233
        %v4266 = vadd.f32 %v4133, %v4234
        %v4267 = vadd.f32 %v4134, %v4235
        %v4268 = vadd.f32 %v4135, %v4236
        %v4269 = vadd.f32 %v4136, %v4237
        %v4270 = vadd.f32 %v4137, %v4238
        %v4271 = vadd.f32 %v4138, %v4239
        %v4272 = vadd.f32 %v4139, %v4240
        %v4273 = vadd.f32 %v4140, %v4241
        %v4274 = vadd.f32 %v4141, %v4242
        %v4275 = vadd.f32 %v4142, %v4243
        %v4276 = vadd.f32 %v4143, %v4244
        %v4277 = vadd.f32 %v4144, %v4245
        %v4278 = vadd.f32 %v4145, %v4246
        %v4279 = vadd.f32 %v4146, %v4247
        %v4280 = vadd.f32 %v4147, %v4248
        %v4281 = vadd.f32 %v4148, %v4249
        %v4282 = vadd.f32 %v4149, %v4250
        %v4283 = vadd.f32 %v4150, %v4251
        %v4284 = vadd.f32 %v4151, %v4252
        %v4285 = vadd.f32 %v4152, %v4253
        %v4286 = vadd.f32 %v4153, %v4254
        %v4287 = vadd.f32 %v4154, %v4255
        %v4288 = vadd.f32 %v4155, %v4256
        %v4289 = vadd.f32 %v4156, %v4257
        %v4290 = vadd.f32 %v4157, %v4258
        %v4291 = vld [vmem:[#allocation2 + $0x9] sm:$0xff]
        %v4292 = vld [vmem:[#allocation2 + $0x11] sm:$0xff]
        %v4293 = vld [vmem:[#allocation2 + $0x19] sm:$0xff]
        %v4294 = vld [vmem:[#allocation2 + $0x21] sm:$0xff]
        %v4295 = vld [vmem:[#allocation2 + $0x29] sm:$0xff]
        %v4296 = vld [vmem:[#allocation2 + $0x31] sm:$0xff]
        %v4297 = vld [vmem:[#allocation2 + $0x39] sm:$0xff]
        %v4298 = vld [vmem:[#allocation2 + $0x41] sm:$0xff]
        %v4299 = vld [vmem:[#allocation2 + $0x49] sm:$0xff]
        %v4300 = vld [vmem:[#allocation2 + $0x51] sm:$0xff]
        %v4301 = vld [vmem:[#allocation2 + $0x59] sm:$0xff]
        %v4302 = vld [vmem:[#allocation2 + $0x61] sm:$0xff]
        %v4303 = vld [vmem:[#allocation2 + $0x69] sm:$0xff]
        %v4304 = vld [vmem:[#allocation2 + $0x71] sm:$0xff]
        %v4305 = vld [vmem:[#allocation2 + $0x79] sm:$0xff]
        %v4306 = vld [vmem:[#allocation2 + $0x81] sm:$0xff]
        %v4307 = vld [vmem:[#allocation2 + $0x89] sm:$0xff]
        %v4308 = vld [vmem:[#allocation2 + $0x91] sm:$0xff]
        %v4309 = vld [vmem:[#allocation2 + $0x99] sm:$0xff]
        %v4310 = vld [vmem:[#allocation2 + $0xa1] sm:$0xff]
        %v4311 = vld [vmem:[#allocation2 + $0xa9] sm:$0xff]
        %v4312 = vld [vmem:[#allocation2 + $0xb1] sm:$0xff]
        %v4313 = vld [vmem:[#allocation2 + $0xb9] sm:$0xff]
        %v4314 = vld [vmem:[#allocation2 + $0xc1] sm:$0xff]
        %v4315 = vld [vmem:[#allocation2 + $0xc9] sm:$0xff]
        %v4316 = vld [vmem:[#allocation2 + $0xd1] sm:$0xff]
        %v4317 = vld [vmem:[#allocation2 + $0xd9] sm:$0xff]
        %v4318 = vld [vmem:[#allocation2 + $0xe1] sm:$0xff]
        %v4319 = vld [vmem:[#allocation2 + $0xe9] sm:$0xff]
        %v4320 = vld [vmem:[#allocation2 + $0xf1] sm:$0xff]
        %v4321 = vld [vmem:[#allocation2 + $0xf9] sm:$0xff]
        %v4322 = vld [vmem:[#allocation2 + $0x101] sm:$0xff]
        %v4323 = vld [vmem:[%s7 + $0x2] sm:$0x1]
        %v4324 = vlaneseq
        %v4325 = vshrl.u32 %v4324, 7
        %v4326 = vsub.s32 0, %v4325
        %v4327 = vrot.slane %v4323, %v4326
        %v4328 = vmul.f32 %v4291, %v4327
        %v4329 = vmul.f32 %v4292, %v4327
        %v4330 = vmul.f32 %v4293, %v4327
        %v4331 = vmul.f32 %v4294, %v4327
        %v4332 = vmul.f32 %v4295, %v4327
        %v4333 = vmul.f32 %v4296, %v4327
        %v4334 = vmul.f32 %v4297, %v4327
        %v4335 = vmul.f32 %v4298, %v4327
        %v4336 = vmul.f32 %v4299, %v4327
        %v4337 = vmul.f32 %v4300, %v4327
        %v4338 = vmul.f32 %v4301, %v4327
        %v4339 = vmul.f32 %v4302, %v4327
        %v4340 = vmul.f32 %v4303, %v4327
        %v4341 = vmul.f32 %v4304, %v4327
        %v4342 = vmul.f32 %v4305, %v4327
        %v4343 = vmul.f32 %v4306, %v4327
        %v4344 = vmul.f32 %v4307, %v4327
        %v4345 = vmul.f32 %v4308, %v4327
        %v4346 = vmul.f32 %v4309, %v4327
        %v4347 = vmul.f32 %v4310, %v4327
        %v4348 = vmul.f32 %v4311, %v4327
        %v4349 = vmul.f32 %v4312, %v4327
        %v4350 = vmul.f32 %v4313, %v4327
        %v4351 = vmul.f32 %v4314, %v4327
        %v4352 = vmul.f32 %v4315, %v4327
        %v4353 = vmul.f32 %v4316, %v4327
        %v4354 = vmul.f32 %v4317, %v4327
        %v4355 = vmul.f32 %v4318, %v4327
        %v4356 = vmul.f32 %v4319, %v4327
        %v4357 = vmul.f32 %v4320, %v4327
        %v4358 = vmul.f32 %v4321, %v4327
        %v4359 = vmul.f32 %v4322, %v4327
        %v4360 = vmul.f32 %v4328, %v1637
        %v4361 = vmul.f32 %v4329, %v1641
        %v4362 = vmul.f32 %v4330, %v1645
        %v4363 = vmul.f32 %v4331, %v1649
        %v4364 = vmul.f32 %v4332, %v1653
        %v4365 = vmul.f32 %v4333, %v1657
        %v4366 = vmul.f32 %v4334, %v1661
        %v4367 = vmul.f32 %v4335, %v1665
        %v4368 = vmul.f32 %v4336, %v1669
        %v4369 = vmul.f32 %v4337, %v1673
        %v4370 = vmul.f32 %v4338, %v1677
        %v4371 = vmul.f32 %v4339, %v1681
        %v4372 = vmul.f32 %v4340, %v1685
        %v4373 = vmul.f32 %v4341, %v1689
        %v4374 = vmul.f32 %v4342, %v1693
        %v4375 = vmul.f32 %v4343, %v1697
        %v4376 = vmul.f32 %v4344, %v1701
        %v4377 = vmul.f32 %v4345, %v1705
        %v4378 = vmul.f32 %v4346, %v1709
        %v4379 = vmul.f32 %v4347, %v1713
        %v4380 = vmul.f32 %v4348, %v1717
        %v4381 = vmul.f32 %v4349, %v1721
        %v4382 = vmul.f32 %v4350, %v1725
        %v4383 = vmul.f32 %v4351, %v1729
        %v4384 = vmul.f32 %v4352, %v1733
        %v4385 = vmul.f32 %v4353, %v1737
        %v4386 = vmul.f32 %v4354, %v1741
        %v4387 = vmul.f32 %v4355, %v1745
        %v4388 = vmul.f32 %v4356, %v1749
        %v4389 = vmul.f32 %v4357, %v1753
        %v4390 = vmul.f32 %v4358, %v1757
        %v4391 = vmul.f32 %v4359, %v1761
        %v4392 = vadd.f32 %v4259, %v4360
        %v4393 = vadd.f32 %v4260, %v4361
        %v4394 = vadd.f32 %v4261, %v4362
        %v4395 = vadd.f32 %v4262, %v4363
        %v4396 = vadd.f32 %v4263, %v4364
        %v4397 = vadd.f32 %v4264, %v4365
        %v4398 = vadd.f32 %v4265, %v4366
        %v4399 = vadd.f32 %v4266, %v4367
        %v4400 = vadd.f32 %v4267, %v4368
        %v4401 = vadd.f32 %v4268, %v4369
        %v4402 = vadd.f32 %v4269, %v4370
        %v4403 = vadd.f32 %v4270, %v4371
        %v4404 = vadd.f32 %v4271, %v4372
        %v4405 = vadd.f32 %v4272, %v4373
        %v4406 = vadd.f32 %v4273, %v4374
        %v4407 = vadd.f32 %v4274, %v4375
        %v4408 = vadd.f32 %v4275, %v4376
        %v4409 = vadd.f32 %v4276, %v4377
        %v4410 = vadd.f32 %v4277, %v4378
        %v4411 = vadd.f32 %v4278, %v4379
        %v4412 = vadd.f32 %v4279, %v4380
        %v4413 = vadd.f32 %v4280, %v4381
        %v4414 = vadd.f32 %v4281, %v4382
        %v4415 = vadd.f32 %v4282, %v4383
        %v4416 = vadd.f32 %v4283, %v4384
        %v4417 = vadd.f32 %v4284, %v4385
        %v4418 = vadd.f32 %v4285, %v4386
        %v4419 = vadd.f32 %v4286, %v4387
        %v4420 = vadd.f32 %v4287, %v4388
        %v4421 = vadd.f32 %v4288, %v4389
        %v4422 = vadd.f32 %v4289, %v4390
        %v4423 = vadd.f32 %v4290, %v4391
        %v4424 = vld [vmem:[#allocation2 + $0x107] sm:$0xff]
        %v4425 = vld [vmem:[%s7 + $0x3] sm:$0x1]
        %v4426 = vlaneseq
        %v4427 = vshrl.u32 %v4426, 7
        %v4428 = vsub.s32 0, %v4427
        %v4429 = vrot.slane %v4425, %v4428
        %v4430 = vmul.f32 %v4026, %v4429
        %v4431 = vmul.f32 %v4027, %v4429
        %v4432 = vmul.f32 %v4028, %v4429
        %v4433 = vmul.f32 %v4029, %v4429
        %v4434 = vmul.f32 %v4030, %v4429
        %v4435 = vmul.f32 %v4031, %v4429
        %v4436 = vmul.f32 %v4032, %v4429
        %v4437 = vmul.f32 %v4033, %v4429
        %v4438 = vmul.f32 %v4034, %v4429
        %v4439 = vmul.f32 %v4035, %v4429
        %v4440 = vmul.f32 %v4036, %v4429
        %v4441 = vmul.f32 %v4037, %v4429
        %v4442 = vmul.f32 %v4038, %v4429
        %v4443 = vmul.f32 %v4039, %v4429
        %v4444 = vmul.f32 %v4040, %v4429
        %v4445 = vmul.f32 %v4041, %v4429
        %v4446 = vmul.f32 %v4042, %v4429
        %v4447 = vmul.f32 %v4043, %v4429
        %v4448 = vmul.f32 %v4044, %v4429
        %v4449 = vmul.f32 %v4045, %v4429
        %v4450 = vmul.f32 %v4046, %v4429
        %v4451 = vmul.f32 %v4047, %v4429
        %v4452 = vmul.f32 %v4048, %v4429
        %v4453 = vmul.f32 %v4049, %v4429
        %v4454 = vmul.f32 %v4050, %v4429
        %v4455 = vmul.f32 %v4051, %v4429
        %v4456 = vmul.f32 %v4052, %v4429
        %v4457 = vmul.f32 %v4053, %v4429
        %v4458 = vmul.f32 %v4054, %v4429
        %v4459 = vmul.f32 %v4055, %v4429
        %v4460 = vmul.f32 %v4056, %v4429
        %v4461 = vmul.f32 %v4424, %v4429
        %v4462 = vmul.f32 %v4430, %v1898
        %v4463 = vmul.f32 %v4431, %v1902
        %v4464 = vmul.f32 %v4432, %v1906
        %v4465 = vmul.f32 %v4433, %v1910
        %v4466 = vmul.f32 %v4434, %v1914
        %v4467 = vmul.f32 %v4435, %v1918
        %v4468 = vmul.f32 %v4436, %v1922
        %v4469 = vmul.f32 %v4437, %v1926
        %v4470 = vmul.f32 %v4438, %v1930
        %v4471 = vmul.f32 %v4439, %v1934
        %v4472 = vmul.f32 %v4440, %v1938
        %v4473 = vmul.f32 %v4441, %v1942
        %v4474 = vmul.f32 %v4442, %v1946
        %v4475 = vmul.f32 %v4443, %v1950
        %v4476 = vmul.f32 %v4444, %v1954
        %v4477 = vmul.f32 %v4445, %v1958
        %v4478 = vmul.f32 %v4446, %v1962
        %v4479 = vmul.f32 %v4447, %v1966
        %v4480 = vmul.f32 %v4448, %v1970
        %v4481 = vmul.f32 %v4449, %v1974
        %v4482 = vmul.f32 %v4450, %v1978
        %v4483 = vmul.f32 %v4451, %v1982
        %v4484 = vmul.f32 %v4452, %v1986
        %v4485 = vmul.f32 %v4453, %v1990
        %v4486 = vmul.f32 %v4454, %v1994
        %v4487 = vmul.f32 %v4455, %v1998
        %v4488 = vmul.f32 %v4456, %v2002
        %v4489 = vmul.f32 %v4457, %v2006
        %v4490 = vmul.f32 %v4458, %v2010
        %v4491 = vmul.f32 %v4459, %v2014
        %v4492 = vmul.f32 %v4460, %v2018
        %v4493 = vmul.f32 %v4461, %v2022
        %v4494 = vadd.f32 %v4392, %v4462
        %v4495 = vadd.f32 %v4393, %v4463
        %v4496 = vadd.f32 %v4394, %v4464
        %v4497 = vadd.f32 %v4395, %v4465
        %v4498 = vadd.f32 %v4396, %v4466
        %v4499 = vadd.f32 %v4397, %v4467
        %v4500 = vadd.f32 %v4398, %v4468
        %v4501 = vadd.f32 %v4399, %v4469
        %v4502 = vadd.f32 %v4400, %v4470
        %v4503 = vadd.f32 %v4401, %v4471
        %v4504 = vadd.f32 %v4402, %v4472
        %v4505 = vadd.f32 %v4403, %v4473
        %v4506 = vadd.f32 %v4404, %v4474
        %v4507 = vadd.f32 %v4405, %v4475
        %v4508 = vadd.f32 %v4406, %v4476
        %v4509 = vadd.f32 %v4407, %v4477
        %v4510 = vadd.f32 %v4408, %v4478
        %v4511 = vadd.f32 %v4409, %v4479
        %v4512 = vadd.f32 %v4410, %v4480
        %v4513 = vadd.f32 %v4411, %v4481
        %v4514 = vadd.f32 %v4412, %v4482
        %v4515 = vadd.f32 %v4413, %v4483
        %v4516 = vadd.f32 %v4414, %v4484
        %v4517 = vadd.f32 %v4415, %v4485
        %v4518 = vadd.f32 %v4416, %v4486
        %v4519 = vadd.f32 %v4417, %v4487
        %v4520 = vadd.f32 %v4418, %v4488
        %v4521 = vadd.f32 %v4419, %v4489
        %v4522 = vadd.f32 %v4420, %v4490
        %v4523 = vadd.f32 %v4421, %v4491
        %v4524 = vadd.f32 %v4422, %v4492
        %v4525 = vadd.f32 %v4423, %v4493
        %v4526 = vld [vmem:[#allocation2 + $0x108] sm:$0xff]
        %v4527 = vld [vmem:[%s7 + $0x4] sm:$0x1]
        %v4528 = vlaneseq
        %v4529 = vshrl.u32 %v4528, 7
        %v4530 = vsub.s32 0, %v4529
        %v4531 = vrot.slane %v4527, %v4530
        %v4532 = vmul.f32 %v4159, %v4531
        %v4533 = vmul.f32 %v4160, %v4531
        %v4534 = vmul.f32 %v4161, %v4531
        %v4535 = vmul.f32 %v4162, %v4531
        %v4536 = vmul.f32 %v4163, %v4531
        %v4537 = vmul.f32 %v4164, %v4531
        %v4538 = vmul.f32 %v4165, %v4531
        %v4539 = vmul.f32 %v4166, %v4531
        %v4540 = vmul.f32 %v4167, %v4531
        %v4541 = vmul.f32 %v4168, %v4531
        %v4542 = vmul.f32 %v4169, %v4531
        %v4543 = vmul.f32 %v4170, %v4531
        %v4544 = vmul.f32 %v4171, %v4531
        %v4545 = vmul.f32 %v4172, %v4531
        %v4546 = vmul.f32 %v4173, %v4531
        %v4547 = vmul.f32 %v4174, %v4531
        %v4548 = vmul.f32 %v4175, %v4531
        %v4549 = vmul.f32 %v4176, %v4531
        %v4550 = vmul.f32 %v4177, %v4531
        %v4551 = vmul.f32 %v4178, %v4531
        %v4552 = vmul.f32 %v4179, %v4531
        %v4553 = vmul.f32 %v4180, %v4531
        %v4554 = vmul.f32 %v4181, %v4531
        %v4555 = vmul.f32 %v4182, %v4531
        %v4556 = vmul.f32 %v4183, %v4531
        %v4557 = vmul.f32 %v4184, %v4531
        %v4558 = vmul.f32 %v4185, %v4531
        %v4559 = vmul.f32 %v4186, %v4531
        %v4560 = vmul.f32 %v4187, %v4531
        %v4561 = vmul.f32 %v4188, %v4531
        %v4562 = vmul.f32 %v4189, %v4531
        %v4563 = vmul.f32 %v4526, %v4531
        %v4564 = vadd.f32 %v4494, %v4532
        %v4565 = vadd.f32 %v4495, %v4533
        %v4566 = vadd.f32 %v4496, %v4534
        %v4567 = vadd.f32 %v4497, %v4535
        %v4568 = vadd.f32 %v4498, %v4536
        %v4569 = vadd.f32 %v4499, %v4537
        %v4570 = vadd.f32 %v4500, %v4538
        %v4571 = vadd.f32 %v4501, %v4539
        %v4572 = vadd.f32 %v4502, %v4540
        %v4573 = vadd.f32 %v4503, %v4541
        %v4574 = vadd.f32 %v4504, %v4542
        %v4575 = vadd.f32 %v4505, %v4543
        %v4576 = vadd.f32 %v4506, %v4544
        %v4577 = vadd.f32 %v4507, %v4545
        %v4578 = vadd.f32 %v4508, %v4546
        %v4579 = vadd.f32 %v4509, %v4547
        %v4580 = vadd.f32 %v4510, %v4548
        %v4581 = vadd.f32 %v4511, %v4549
        %v4582 = vadd.f32 %v4512, %v4550
        %v4583 = vadd.f32 %v4513, %v4551
        %v4584 = vadd.f32 %v4514, %v4552
        %v4585 = vadd.f32 %v4515, %v4553
        %v4586 = vadd.f32 %v4516, %v4554
        %v4587 = vadd.f32 %v4517, %v4555
        %v4588 = vadd.f32 %v4518, %v4556
        %v4589 = vadd.f32 %v4519, %v4557
        %v4590 = vadd.f32 %v4520, %v4558
        %v4591 = vadd.f32 %v4521, %v4559
        %v4592 = vadd.f32 %v4522, %v4560
        %v4593 = vadd.f32 %v4523, %v4561
        %v4594 = vadd.f32 %v4524, %v4562
        %v4595 = vadd.f32 %v4525, %v4563
        %v4596 = vld [vmem:[#allocation2 + $0x109] sm:$0xff]
        %v4597 = vld [vmem:[%s7 + $0x5] sm:$0x1]
        %v4598 = vlaneseq
        %v4599 = vshrl.u32 %v4598, 7
        %v4600 = vsub.s32 0, %v4599
        %v4601 = vrot.slane %v4597, %v4600
        %v4602 = vmul.f32 %v4292, %v4601
        %v4603 = vmul.f32 %v4293, %v4601
        %v4604 = vmul.f32 %v4294, %v4601
        %v4605 = vmul.f32 %v4295, %v4601
        %v4606 = vmul.f32 %v4296, %v4601
        %v4607 = vmul.f32 %v4297, %v4601
        %v4608 = vmul.f32 %v4298, %v4601
        %v4609 = vmul.f32 %v4299, %v4601
        %v4610 = vmul.f32 %v4300, %v4601
        %v4611 = vmul.f32 %v4301, %v4601
        %v4612 = vmul.f32 %v4302, %v4601
        %v4613 = vmul.f32 %v4303, %v4601
        %v4614 = vmul.f32 %v4304, %v4601
        %v4615 = vmul.f32 %v4305, %v4601
        %v4616 = vmul.f32 %v4306, %v4601
        %v4617 = vmul.f32 %v4307, %v4601
        %v4618 = vmul.f32 %v4308, %v4601
        %v4619 = vmul.f32 %v4309, %v4601
        %v4620 = vmul.f32 %v4310, %v4601
        %v4621 = vmul.f32 %v4311, %v4601
        %v4622 = vmul.f32 %v4312, %v4601
        %v4623 = vmul.f32 %v4313, %v4601
        %v4624 = vmul.f32 %v4314, %v4601
        %v4625 = vmul.f32 %v4315, %v4601
        %v4626 = vmul.f32 %v4316, %v4601
        %v4627 = vmul.f32 %v4317, %v4601
        %v4628 = vmul.f32 %v4318, %v4601
        %v4629 = vmul.f32 %v4319, %v4601
        %v4630 = vmul.f32 %v4320, %v4601
        %v4631 = vmul.f32 %v4321, %v4601
        %v4632 = vmul.f32 %v4322, %v4601
        %v4633 = vmul.f32 %v4596, %v4601
        %v4634 = vmul.f32 %v4602, %v2260
        %v4635 = vmul.f32 %v4603, %v2264
        %v4636 = vmul.f32 %v4604, %v2268
        %v4637 = vmul.f32 %v4605, %v2272
        %v4638 = vmul.f32 %v4606, %v2276
        %v4639 = vmul.f32 %v4607, %v2280
        %v4640 = vmul.f32 %v4608, %v2284
        %v4641 = vmul.f32 %v4609, %v2288
        %v4642 = vmul.f32 %v4610, %v2292
        %v4643 = vmul.f32 %v4611, %v2296
        %v4644 = vmul.f32 %v4612, %v2300
        %v4645 = vmul.f32 %v4613, %v2304
        %v4646 = vmul.f32 %v4614, %v2308
        %v4647 = vmul.f32 %v4615, %v2312
        %v4648 = vmul.f32 %v4616, %v2316
        %v4649 = vmul.f32 %v4617, %v2320
        %v4650 = vmul.f32 %v4618, %v2324
        %v4651 = vmul.f32 %v4619, %v2328
        %v4652 = vmul.f32 %v4620, %v2332
        %v4653 = vmul.f32 %v4621, %v2336
        %v4654 = vmul.f32 %v4622, %v2340
        %v4655 = vmul.f32 %v4623, %v2344
        %v4656 = vmul.f32 %v4624, %v2348
        %v4657 = vmul.f32 %v4625, %v2352
        %v4658 = vmul.f32 %v4626, %v2356
        %v4659 = vmul.f32 %v4627, %v2360
        %v4660 = vmul.f32 %v4628, %v2364
        %v4661 = vmul.f32 %v4629, %v2368
        %v4662 = vmul.f32 %v4630, %v2372
        %v4663 = vmul.f32 %v4631, %v2376
        %v4664 = vmul.f32 %v4632, %v2380
        %v4665 = vmul.f32 %v4633, %v2384
        %v4666 = vadd.f32 %v4564, %v4634
        %v4667 = vadd.f32 %v4565, %v4635
        %v4668 = vadd.f32 %v4566, %v4636
        %v4669 = vadd.f32 %v4567, %v4637
        %v4670 = vadd.f32 %v4568, %v4638
        %v4671 = vadd.f32 %v4569, %v4639
        %v4672 = vadd.f32 %v4570, %v4640
        %v4673 = vadd.f32 %v4571, %v4641
        %v4674 = vadd.f32 %v4572, %v4642
        %v4675 = vadd.f32 %v4573, %v4643
        %v4676 = vadd.f32 %v4574, %v4644
        %v4677 = vadd.f32 %v4575, %v4645
        %v4678 = vadd.f32 %v4576, %v4646
        %v4679 = vadd.f32 %v4577, %v4647
        %v4680 = vadd.f32 %v4578, %v4648
        %v4681 = vadd.f32 %v4579, %v4649
        %v4682 = vadd.f32 %v4580, %v4650
        %v4683 = vadd.f32 %v4581, %v4651
        %v4684 = vadd.f32 %v4582, %v4652
        %v4685 = vadd.f32 %v4583, %v4653
        %v4686 = vadd.f32 %v4584, %v4654
        %v4687 = vadd.f32 %v4585, %v4655
        %v4688 = vadd.f32 %v4586, %v4656
        %v4689 = vadd.f32 %v4587, %v4657
        %v4690 = vadd.f32 %v4588, %v4658
        %v4691 = vadd.f32 %v4589, %v4659
        %v4692 = vadd.f32 %v4590, %v4660
        %v4693 = vadd.f32 %v4591, %v4661
        %v4694 = vadd.f32 %v4592, %v4662
        %v4695 = vadd.f32 %v4593, %v4663
        %v4696 = vadd.f32 %v4594, %v4664
        %v4697 = vadd.f32 %v4595, %v4665
        %v4698 = vld [vmem:[#allocation2 + $0x10f] sm:$0xff]
        %v4699 = vld [vmem:[%s7 + $0x6] sm:$0x1]
        %v4700 = vlaneseq
        %v4701 = vshrl.u32 %v4700, 7
        %v4702 = vsub.s32 0, %v4701
        %v4703 = vrot.slane %v4699, %v4702
        %v4704 = vmul.f32 %v4027, %v4703
        %v4705 = vmul.f32 %v4028, %v4703
        %v4706 = vmul.f32 %v4029, %v4703
        %v4707 = vmul.f32 %v4030, %v4703
        %v4708 = vmul.f32 %v4031, %v4703
        %v4709 = vmul.f32 %v4032, %v4703
        %v4710 = vmul.f32 %v4033, %v4703
        %v4711 = vmul.f32 %v4034, %v4703
        %v4712 = vmul.f32 %v4035, %v4703
        %v4713 = vmul.f32 %v4036, %v4703
        %v4714 = vmul.f32 %v4037, %v4703
        %v4715 = vmul.f32 %v4038, %v4703
        %v4716 = vmul.f32 %v4039, %v4703
        %v4717 = vmul.f32 %v4040, %v4703
        %v4718 = vmul.f32 %v4041, %v4703
        %v4719 = vmul.f32 %v4042, %v4703
        %v4720 = vmul.f32 %v4043, %v4703
        %v4721 = vmul.f32 %v4044, %v4703
        %v4722 = vmul.f32 %v4045, %v4703
        %v4723 = vmul.f32 %v4046, %v4703
        %v4724 = vmul.f32 %v4047, %v4703
        %v4725 = vmul.f32 %v4048, %v4703
        %v4726 = vmul.f32 %v4049, %v4703
        %v4727 = vmul.f32 %v4050, %v4703
        %v4728 = vmul.f32 %v4051, %v4703
        %v4729 = vmul.f32 %v4052, %v4703
        %v4730 = vmul.f32 %v4053, %v4703
        %v4731 = vmul.f32 %v4054, %v4703
        %v4732 = vmul.f32 %v4055, %v4703
        %v4733 = vmul.f32 %v4056, %v4703
        %v4734 = vmul.f32 %v4424, %v4703
        %v4735 = vmul.f32 %v4698, %v4703
        %v4736 = vmul.f32 %v4704, %v2521
        %v4737 = vmul.f32 %v4705, %v2525
        %v4738 = vmul.f32 %v4706, %v2529
        %v4739 = vmul.f32 %v4707, %v2533
        %v4740 = vmul.f32 %v4708, %v2537
        %v4741 = vmul.f32 %v4709, %v2541
        %v4742 = vmul.f32 %v4710, %v2545
        %v4743 = vmul.f32 %v4711, %v2549
        %v4744 = vmul.f32 %v4712, %v2553
        %v4745 = vmul.f32 %v4713, %v2557
        %v4746 = vmul.f32 %v4714, %v2561
        %v4747 = vmul.f32 %v4715, %v2565
        %v4748 = vmul.f32 %v4716, %v2569
        %v4749 = vmul.f32 %v4717, %v2573
        %v4750 = vmul.f32 %v4718, %v2577
        %v4751 = vmul.f32 %v4719, %v2581
        %v4752 = vmul.f32 %v4720, %v2585
        %v4753 = vmul.f32 %v4721, %v2589
        %v4754 = vmul.f32 %v4722, %v2593
        %v4755 = vmul.f32 %v4723, %v2597
        %v4756 = vmul.f32 %v4724, %v2601
        %v4757 = vmul.f32 %v4725, %v2605
        %v4758 = vmul.f32 %v4726, %v2609
        %v4759 = vmul.f32 %v4727, %v2613
        %v4760 = vmul.f32 %v4728, %v2617
        %v4761 = vmul.f32 %v4729, %v2621
        %v4762 = vmul.f32 %v4730, %v2625
        %v4763 = vmul.f32 %v4731, %v2629
        %v4764 = vmul.f32 %v4732, %v2633
        %v4765 = vmul.f32 %v4733, %v2637
        %v4766 = vmul.f32 %v4734, %v2641
        %v4767 = vmul.f32 %v4735, %v2645
        %v4768 = vadd.f32 %v4666, %v4736
        %v4769 = vadd.f32 %v4667, %v4737
        %v4770 = vadd.f32 %v4668, %v4738
        %v4771 = vadd.f32 %v4669, %v4739
        %v4772 = vadd.f32 %v4670, %v4740
        %v4773 = vadd.f32 %v4671, %v4741
        %v4774 = vadd.f32 %v4672, %v4742
        %v4775 = vadd.f32 %v4673, %v4743
        %v4776 = vadd.f32 %v4674, %v4744
        %v4777 = vadd.f32 %v4675, %v4745
        %v4778 = vadd.f32 %v4676, %v4746
        %v4779 = vadd.f32 %v4677, %v4747
        %v4780 = vadd.f32 %v4678, %v4748
        %v4781 = vadd.f32 %v4679, %v4749
        %v4782 = vadd.f32 %v4680, %v4750
        %v4783 = vadd.f32 %v4681, %v4751
        %v4784 = vadd.f32 %v4682, %v4752
        %v4785 = vadd.f32 %v4683, %v4753
        %v4786 = vadd.f32 %v4684, %v4754
        %v4787 = vadd.f32 %v4685, %v4755
        %v4788 = vadd.f32 %v4686, %v4756
        %v4789 = vadd.f32 %v4687, %v4757
        %v4790 = vadd.f32 %v4688, %v4758
        %v4791 = vadd.f32 %v4689, %v4759
        %v4792 = vadd.f32 %v4690, %v4760
        %v4793 = vadd.f32 %v4691, %v4761
        %v4794 = vadd.f32 %v4692, %v4762
        %v4795 = vadd.f32 %v4693, %v4763
        %v4796 = vadd.f32 %v4694, %v4764
        %v4797 = vadd.f32 %v4695, %v4765
        %v4798 = vadd.f32 %v4696, %v4766
        %v4799 = vadd.f32 %v4697, %v4767
        %v4800 = vld [vmem:[#allocation2 + $0x110] sm:$0xff]
        %v4801 = vld [vmem:[%s7 + $0x7] sm:$0x1]
        %v4802 = vlaneseq
        %v4803 = vshrl.u32 %v4802, 7
        %v4804 = vsub.s32 0, %v4803
        %v4805 = vrot.slane %v4801, %v4804
        %v4806 = vmul.f32 %v4160, %v4805
        %v4807 = vmul.f32 %v4161, %v4805
        %v4808 = vmul.f32 %v4162, %v4805
        %v4809 = vmul.f32 %v4163, %v4805
        %v4810 = vmul.f32 %v4164, %v4805
        %v4811 = vmul.f32 %v4165, %v4805
        %v4812 = vmul.f32 %v4166, %v4805
        %v4813 = vmul.f32 %v4167, %v4805
        %v4814 = vmul.f32 %v4168, %v4805
        %v4815 = vmul.f32 %v4169, %v4805
        %v4816 = vmul.f32 %v4170, %v4805
        %v4817 = vmul.f32 %v4171, %v4805
        %v4818 = vmul.f32 %v4172, %v4805
        %v4819 = vmul.f32 %v4173, %v4805
        %v4820 = vmul.f32 %v4174, %v4805
        %v4821 = vmul.f32 %v4175, %v4805
        %v4822 = vmul.f32 %v4176, %v4805
        %v4823 = vmul.f32 %v4177, %v4805
        %v4824 = vmul.f32 %v4178, %v4805
        %v4825 = vmul.f32 %v4179, %v4805
        %v4826 = vmul.f32 %v4180, %v4805
        %v4827 = vmul.f32 %v4181, %v4805
        %v4828 = vmul.f32 %v4182, %v4805
        %v4829 = vmul.f32 %v4183, %v4805
        %v4830 = vmul.f32 %v4184, %v4805
        %v4831 = vmul.f32 %v4185, %v4805
        %v4832 = vmul.f32 %v4186, %v4805
        %v4833 = vmul.f32 %v4187, %v4805
        %v4834 = vmul.f32 %v4188, %v4805
        %v4835 = vmul.f32 %v4189, %v4805
        %v4836 = vmul.f32 %v4526, %v4805
        %v4837 = vmul.f32 %v4800, %v4805
        %v4838 = vmul.f32 %v4806, %v2782
        %v4839 = vmul.f32 %v4807, %v2786
        %v4840 = vmul.f32 %v4808, %v2790
        %v4841 = vmul.f32 %v4809, %v2794
        %v4842 = vmul.f32 %v4810, %v2798
        %v4843 = vmul.f32 %v4811, %v2802
        %v4844 = vmul.f32 %v4812, %v2806
        %v4845 = vmul.f32 %v4813, %v2810
        %v4846 = vmul.f32 %v4814, %v2814
        %v4847 = vmul.f32 %v4815, %v2818
        %v4848 = vmul.f32 %v4816, %v2822
        %v4849 = vmul.f32 %v4817, %v2826
        %v4850 = vmul.f32 %v4818, %v2830
        %v4851 = vmul.f32 %v4819, %v2834
        %v4852 = vmul.f32 %v4820, %v2838
        %v4853 = vmul.f32 %v4821, %v2842
        %v4854 = vmul.f32 %v4822, %v2846
        %v4855 = vmul.f32 %v4823, %v2850
        %v4856 = vmul.f32 %v4824, %v2854
        %v4857 = vmul.f32 %v4825, %v2858
        %v4858 = vmul.f32 %v4826, %v2862
        %v4859 = vmul.f32 %v4827, %v2866
        %v4860 = vmul.f32 %v4828, %v2870
        %v4861 = vmul.f32 %v4829, %v2874
        %v4862 = vmul.f32 %v4830, %v2878
        %v4863 = vmul.f32 %v4831, %v2882
        %v4864 = vmul.f32 %v4832, %v2886
        %v4865 = vmul.f32 %v4833, %v2890
        %v4866 = vmul.f32 %v4834, %v2894
        %v4867 = vmul.f32 %v4835, %v2898
        %v4868 = vmul.f32 %v4836, %v2902
        %v4869 = vmul.f32 %v4837, %v2906
        %v4870 = vadd.f32 %v4768, %v4838
        %v4871 = vadd.f32 %v4769, %v4839
        %v4872 = vadd.f32 %v4770, %v4840
        %v4873 = vadd.f32 %v4771, %v4841
        %v4874 = vadd.f32 %v4772, %v4842
        %v4875 = vadd.f32 %v4773, %v4843
        %v4876 = vadd.f32 %v4774, %v4844
        %v4877 = vadd.f32 %v4775, %v4845
        %v4878 = vadd.f32 %v4776, %v4846
        %v4879 = vadd.f32 %v4777, %v4847
        %v4880 = vadd.f32 %v4778, %v4848
        %v4881 = vadd.f32 %v4779, %v4849
        %v4882 = vadd.f32 %v4780, %v4850
        %v4883 = vadd.f32 %v4781, %v4851
        %v4884 = vadd.f32 %v4782, %v4852
        %v4885 = vadd.f32 %v4783, %v4853
        %v4886 = vadd.f32 %v4784, %v4854
        %v4887 = vadd.f32 %v4785, %v4855
        %v4888 = vadd.f32 %v4786, %v4856
        %v4889 = vadd.f32 %v4787, %v4857
        %v4890 = vadd.f32 %v4788, %v4858
        %v4891 = vadd.f32 %v4789, %v4859
        %v4892 = vadd.f32 %v4790, %v4860
        %v4893 = vadd.f32 %v4791, %v4861
        %v4894 = vadd.f32 %v4792, %v4862
        %v4895 = vadd.f32 %v4793, %v4863
        %v4896 = vadd.f32 %v4794, %v4864
        %v4897 = vadd.f32 %v4795, %v4865
        %v4898 = vadd.f32 %v4796, %v4866
        %v4899 = vadd.f32 %v4797, %v4867
        %v4900 = vadd.f32 %v4798, %v4868
        %v4901 = vadd.f32 %v4799, %v4869
        %v4902 = vld [vmem:[#allocation2 + $0x111] sm:$0xff]
        %v4903 = vld [vmem:[%s7 + $0x8] sm:$0x1]
        %v4904 = vlaneseq
        %v4905 = vshrl.u32 %v4904, 7
        %v4906 = vsub.s32 0, %v4905
        %v4907 = vrot.slane %v4903, %v4906
        %v4908 = vmul.f32 %v4293, %v4907
        %v4909 = vmul.f32 %v4294, %v4907
        %v4910 = vmul.f32 %v4295, %v4907
        %v4911 = vmul.f32 %v4296, %v4907
        %v4912 = vmul.f32 %v4297, %v4907
        %v4913 = vmul.f32 %v4298, %v4907
        %v4914 = vmul.f32 %v4299, %v4907
        %v4915 = vmul.f32 %v4300, %v4907
        %v4916 = vmul.f32 %v4301, %v4907
        %v4917 = vmul.f32 %v4302, %v4907
        %v4918 = vmul.f32 %v4303, %v4907
        %v4919 = vmul.f32 %v4304, %v4907
        %v4920 = vmul.f32 %v4305, %v4907
        %v4921 = vmul.f32 %v4306, %v4907
        %v4922 = vmul.f32 %v4307, %v4907
        %v4923 = vmul.f32 %v4308, %v4907
        %v4924 = vmul.f32 %v4309, %v4907
        %v4925 = vmul.f32 %v4310, %v4907
        %v4926 = vmul.f32 %v4311, %v4907
        %v4927 = vmul.f32 %v4312, %v4907
        %v4928 = vmul.f32 %v4313, %v4907
        %v4929 = vmul.f32 %v4314, %v4907
        %v4930 = vmul.f32 %v4315, %v4907
        %v4931 = vmul.f32 %v4316, %v4907
        %v4932 = vmul.f32 %v4317, %v4907
        %v4933 = vmul.f32 %v4318, %v4907
        %v4934 = vmul.f32 %v4319, %v4907
        %v4935 = vmul.f32 %v4320, %v4907
        %v4936 = vmul.f32 %v4321, %v4907
        %v4937 = vmul.f32 %v4322, %v4907
        %v4938 = vmul.f32 %v4596, %v4907
        %v4939 = vmul.f32 %v4902, %v4907
        %v4940 = vmul.f32 %v4908, %v3043
        %v4941 = vmul.f32 %v4909, %v3047
        %v4942 = vmul.f32 %v4910, %v3051
        %v4943 = vmul.f32 %v4911, %v3055
        %v4944 = vmul.f32 %v4912, %v3059
        %v4945 = vmul.f32 %v4913, %v3063
        %v4946 = vmul.f32 %v4914, %v3067
        %v4947 = vmul.f32 %v4915, %v3071
        %v4948 = vmul.f32 %v4916, %v3075
        %v4949 = vmul.f32 %v4917, %v3079
        %v4950 = vmul.f32 %v4918, %v3083
        %v4951 = vmul.f32 %v4919, %v3087
        %v4952 = vmul.f32 %v4920, %v3091
        %v4953 = vmul.f32 %v4921, %v3095
        %v4954 = vmul.f32 %v4922, %v3099
        %v4955 = vmul.f32 %v4923, %v3103
        %v4956 = vmul.f32 %v4924, %v3107
        %v4957 = vmul.f32 %v4925, %v3111
        %v4958 = vmul.f32 %v4926, %v3115
        %v4959 = vmul.f32 %v4927, %v3119
        %v4960 = vmul.f32 %v4928, %v3123
        %v4961 = vmul.f32 %v4929, %v3127
        %v4962 = vmul.f32 %v4930, %v3131
        %v4963 = vmul.f32 %v4931, %v3135
        %v4964 = vmul.f32 %v4932, %v3139
        %v4965 = vmul.f32 %v4933, %v3143
        %v4966 = vmul.f32 %v4934, %v3147
        %v4967 = vmul.f32 %v4935, %v3151
        %v4968 = vmul.f32 %v4936, %v3155
        %v4969 = vmul.f32 %v4937, %v3159
        %v4970 = vmul.f32 %v4938, %v3163
        %v4971 = vmul.f32 %v4939, %v3167
        %v4972 = vadd.f32 %v4870, %v4940
        %v4973 = vadd.f32 %v4871, %v4941
        %v4974 = vadd.f32 %v4872, %v4942
        %v4975 = vadd.f32 %v4873, %v4943
        %v4976 = vadd.f32 %v4874, %v4944
        %v4977 = vadd.f32 %v4875, %v4945
        %v4978 = vadd.f32 %v4876, %v4946
        %v4979 = vadd.f32 %v4877, %v4947
        %v4980 = vadd.f32 %v4878, %v4948
        %v4981 = vadd.f32 %v4879, %v4949
        %v4982 = vadd.f32 %v4880, %v4950
        %v4983 = vadd.f32 %v4881, %v4951
        %v4984 = vadd.f32 %v4882, %v4952
        %v4985 = vadd.f32 %v4883, %v4953
        %v4986 = vadd.f32 %v4884, %v4954
        %v4987 = vadd.f32 %v4885, %v4955
        %v4988 = vadd.f32 %v4886, %v4956
        %v4989 = vadd.f32 %v4887, %v4957
        %v4990 = vadd.f32 %v4888, %v4958
        %v4991 = vadd.f32 %v4889, %v4959
        %v4992 = vadd.f32 %v4890, %v4960
        %v4993 = vadd.f32 %v4891, %v4961
        %v4994 = vadd.f32 %v4892, %v4962
        %v4995 = vadd.f32 %v4893, %v4963
        %v4996 = vadd.f32 %v4894, %v4964
        %v4997 = vadd.f32 %v4895, %v4965
        %v4998 = vadd.f32 %v4896, %v4966
        %v4999 = vadd.f32 %v4897, %v4967
        %v5000 = vadd.f32 %v4898, %v4968
        %v5001 = vadd.f32 %v4899, %v4969
        %v5002 = vadd.f32 %v4900, %v4970
        %v5003 = vadd.f32 %v4901, %v4971
        %v5004 = vsel %vm390, %v4972, 0.0
        %5005 = vadd.xlane.f32.xlu0 %v5004
        %v5006 = vpop.xlane.xlu0 %5005
        %v5007 = vsel %vm390, %v4973, 0.0
        %5008 = vadd.xlane.f32.xlu0 %v5007
        %v5009 = vpop.xlane.xlu0 %5008
        %v5010 = vsel %vm390, %v4974, 0.0
        %5011 = vadd.xlane.f32.xlu0 %v5010
        %v5012 = vpop.xlane.xlu0 %5011
        %v5013 = vsel %vm390, %v4975, 0.0
        %5014 = vadd.xlane.f32.xlu0 %v5013
        %v5015 = vpop.xlane.xlu0 %5014
        %v5016 = vsel %vm390, %v4976, 0.0
        %5017 = vadd.xlane.f32.xlu0 %v5016
        %v5018 = vpop.xlane.xlu0 %5017
        %v5019 = vsel %vm390, %v4977, 0.0
        %5020 = vadd.xlane.f32.xlu0 %v5019
        %v5021 = vpop.xlane.xlu0 %5020
        %v5022 = vsel %vm390, %v4978, 0.0
        %5023 = vadd.xlane.f32.xlu0 %v5022
        %v5024 = vpop.xlane.xlu0 %5023
        %v5025 = vsel %vm390, %v4979, 0.0
        %5026 = vadd.xlane.f32.xlu0 %v5025
        %v5027 = vpop.xlane.xlu0 %5026
        %v5028 = vsel %vm390, %v4980, 0.0
        %5029 = vadd.xlane.f32.xlu0 %v5028
        %v5030 = vpop.xlane.xlu0 %5029
        %v5031 = vsel %vm390, %v4981, 0.0
        %5032 = vadd.xlane.f32.xlu0 %v5031
        %v5033 = vpop.xlane.xlu0 %5032
        %v5034 = vsel %vm390, %v4982, 0.0
        %5035 = vadd.xlane.f32.xlu0 %v5034
        %v5036 = vpop.xlane.xlu0 %5035
        %v5037 = vsel %vm390, %v4983, 0.0
        %5038 = vadd.xlane.f32.xlu0 %v5037
        %v5039 = vpop.xlane.xlu0 %5038
        %v5040 = vsel %vm390, %v4984, 0.0
        %5041 = vadd.xlane.f32.xlu0 %v5040
        %v5042 = vpop.xlane.xlu0 %5041
        %v5043 = vsel %vm390, %v4985, 0.0
        %5044 = vadd.xlane.f32.xlu0 %v5043
        %v5045 = vpop.xlane.xlu0 %5044
        %v5046 = vsel %vm390, %v4986, 0.0
        %5047 = vadd.xlane.f32.xlu0 %v5046
        %v5048 = vpop.xlane.xlu0 %5047
        %v5049 = vsel %vm390, %v4987, 0.0
        %5050 = vadd.xlane.f32.xlu0 %v5049
        %v5051 = vpop.xlane.xlu0 %5050
        %v5052 = vsel %vm390, %v4988, 0.0
        %5053 = vadd.xlane.f32.xlu0 %v5052
        %v5054 = vpop.xlane.xlu0 %5053
        %v5055 = vsel %vm390, %v4989, 0.0
        %5056 = vadd.xlane.f32.xlu0 %v5055
        %v5057 = vpop.xlane.xlu0 %5056
        %v5058 = vsel %vm390, %v4990, 0.0
        %5059 = vadd.xlane.f32.xlu0 %v5058
        %v5060 = vpop.xlane.xlu0 %5059
        %v5061 = vsel %vm390, %v4991, 0.0
        %5062 = vadd.xlane.f32.xlu0 %v5061
        %v5063 = vpop.xlane.xlu0 %5062
        %v5064 = vsel %vm390, %v4992, 0.0
        %5065 = vadd.xlane.f32.xlu0 %v5064
        %v5066 = vpop.xlane.xlu0 %5065
        %v5067 = vsel %vm390, %v4993, 0.0
        %5068 = vadd.xlane.f32.xlu0 %v5067
        %v5069 = vpop.xlane.xlu0 %5068
        %v5070 = vsel %vm390, %v4994, 0.0
        %5071 = vadd.xlane.f32.xlu0 %v5070
        %v5072 = vpop.xlane.xlu0 %5071
        %v5073 = vsel %vm390, %v4995, 0.0
        %5074 = vadd.xlane.f32.xlu0 %v5073
        %v5075 = vpop.xlane.xlu0 %5074
        %v5076 = vsel %vm390, %v4996, 0.0
        %5077 = vadd.xlane.f32.xlu0 %v5076
        %v5078 = vpop.xlane.xlu0 %5077
        %v5079 = vsel %vm390, %v4997, 0.0
        %5080 = vadd.xlane.f32.xlu0 %v5079
        %v5081 = vpop.xlane.xlu0 %5080
        %v5082 = vsel %vm390, %v4998, 0.0
        %5083 = vadd.xlane.f32.xlu0 %v5082
        %v5084 = vpop.xlane.xlu0 %5083
        %v5085 = vsel %vm390, %v4999, 0.0
        %5086 = vadd.xlane.f32.xlu0 %v5085
        %v5087 = vpop.xlane.xlu0 %5086
        %v5088 = vsel %vm390, %v5000, 0.0
        %5089 = vadd.xlane.f32.xlu0 %v5088
        %v5090 = vpop.xlane.xlu0 %5089
        %v5091 = vsel %vm390, %v5001, 0.0
        %5092 = vadd.xlane.f32.xlu0 %v5091
        %v5093 = vpop.xlane.xlu0 %5092
        %v5094 = vsel %vm390, %v5002, 0.0
        %5095 = vadd.xlane.f32.xlu0 %v5094
        %v5096 = vpop.xlane.xlu0 %5095
        %v5097 = vsel %vm390, %v5003, 0.0
        %5098 = vadd.xlane.f32.xlu0 %v5097
        %v5099 = vpop.xlane.xlu0 %5098
        %v5100 = vxor.u32 %v5006, 2147483648
        %v5101 = vxor.u32 %v5009, 2147483648
        %v5102 = vxor.u32 %v5012, 2147483648
        %v5103 = vxor.u32 %v5015, 2147483648
        %v5104 = vxor.u32 %v5018, 2147483648
        %v5105 = vxor.u32 %v5021, 2147483648
        %v5106 = vxor.u32 %v5024, 2147483648
        %v5107 = vxor.u32 %v5027, 2147483648
        %v5108 = vxor.u32 %v5030, 2147483648
        %v5109 = vxor.u32 %v5033, 2147483648
        %v5110 = vxor.u32 %v5036, 2147483648
        %v5111 = vxor.u32 %v5039, 2147483648
        %v5112 = vxor.u32 %v5042, 2147483648
        %v5113 = vxor.u32 %v5045, 2147483648
        %v5114 = vxor.u32 %v5048, 2147483648
        %v5115 = vxor.u32 %v5051, 2147483648
        %v5116 = vxor.u32 %v5054, 2147483648
        %v5117 = vxor.u32 %v5057, 2147483648
        %v5118 = vxor.u32 %v5060, 2147483648
        %v5119 = vxor.u32 %v5063, 2147483648
        %v5120 = vxor.u32 %v5066, 2147483648
        %v5121 = vxor.u32 %v5069, 2147483648
        %v5122 = vxor.u32 %v5072, 2147483648
        %v5123 = vxor.u32 %v5075, 2147483648
        %v5124 = vxor.u32 %v5078, 2147483648
        %v5125 = vxor.u32 %v5081, 2147483648
        %v5126 = vxor.u32 %v5084, 2147483648
        %v5127 = vxor.u32 %v5087, 2147483648
        %v5128 = vxor.u32 %v5090, 2147483648
        %v5129 = vxor.u32 %v5093, 2147483648
        %v5130 = vxor.u32 %v5096, 2147483648
        %v5131 = vxor.u32 %v5099, 2147483648
        %v5132 = vmul.f32 %v5100, 1.442695
        %v5133 = vpow.pop %v5132
        %v5134 = vmul.f32 %v5101, 1.442695
        %v5135 = vpow.pop %v5134
        %v5136 = vmul.f32 %v5102, 1.442695
        %v5137 = vpow.pop %v5136
        %v5138 = vmul.f32 %v5103, 1.442695
        %v5139 = vpow.pop %v5138
        %v5140 = vmul.f32 %v5104, 1.442695
        %v5141 = vpow.pop %v5140
        %v5142 = vmul.f32 %v5105, 1.442695
        %v5143 = vpow.pop %v5142
        %v5144 = vmul.f32 %v5106, 1.442695
        %v5145 = vpow.pop %v5144
        %v5146 = vmul.f32 %v5107, 1.442695
        %v5147 = vpow.pop %v5146
        %v5148 = vmul.f32 %v5108, 1.442695
        %v5149 = vpow.pop %v5148
        %v5150 = vmul.f32 %v5109, 1.442695
        %v5151 = vpow.pop %v5150
        %v5152 = vmul.f32 %v5110, 1.442695
        %v5153 = vpow.pop %v5152
        %v5154 = vmul.f32 %v5111, 1.442695
        %v5155 = vpow.pop %v5154
        %v5156 = vmul.f32 %v5112, 1.442695
        %v5157 = vpow.pop %v5156
        %v5158 = vmul.f32 %v5113, 1.442695
        %v5159 = vpow.pop %v5158
        %v5160 = vmul.f32 %v5114, 1.442695
        %v5161 = vpow.pop %v5160
        %v5162 = vmul.f32 %v5115, 1.442695
        %v5163 = vpow.pop %v5162
        %v5164 = vmul.f32 %v5116, 1.442695
        %v5165 = vpow.pop %v5164
        %v5166 = vmul.f32 %v5117, 1.442695
        %v5167 = vpow.pop %v5166
        %v5168 = vmul.f32 %v5118, 1.442695
        %v5169 = vpow.pop %v5168
        %v5170 = vmul.f32 %v5119, 1.442695
        %v5171 = vpow.pop %v5170
        %v5172 = vmul.f32 %v5120, 1.442695
        %v5173 = vpow.pop %v5172
        %v5174 = vmul.f32 %v5121, 1.442695
        %v5175 = vpow.pop %v5174
        %v5176 = vmul.f32 %v5122, 1.442695
        %v5177 = vpow.pop %v5176
        %v5178 = vmul.f32 %v5123, 1.442695
        %v5179 = vpow.pop %v5178
        %v5180 = vmul.f32 %v5124, 1.442695
        %v5181 = vpow.pop %v5180
        %v5182 = vmul.f32 %v5125, 1.442695
        %v5183 = vpow.pop %v5182
        %v5184 = vmul.f32 %v5126, 1.442695
        %v5185 = vpow.pop %v5184
        %v5186 = vmul.f32 %v5127, 1.442695
        %v5187 = vpow.pop %v5186
        %v5188 = vmul.f32 %v5128, 1.442695
        %v5189 = vpow.pop %v5188
        %v5190 = vmul.f32 %v5129, 1.442695
        %v5191 = vpow.pop %v5190
        %v5192 = vmul.f32 %v5130, 1.442695
        %v5193 = vpow.pop %v5192
        %v5194 = vmul.f32 %v5131, 1.442695
        %v5195 = vpow.pop %v5194
        %v5196 = vadd.f32 %v5133, 1.0
        %v5197 = vadd.f32 %v5135, 1.0
        %v5198 = vadd.f32 %v5137, 1.0
        %v5199 = vadd.f32 %v5139, 1.0
        %v5200 = vadd.f32 %v5141, 1.0
        %v5201 = vadd.f32 %v5143, 1.0
        %v5202 = vadd.f32 %v5145, 1.0
        %v5203 = vadd.f32 %v5147, 1.0
        %v5204 = vadd.f32 %v5149, 1.0
        %v5205 = vadd.f32 %v5151, 1.0
        %v5206 = vadd.f32 %v5153, 1.0
        %v5207 = vadd.f32 %v5155, 1.0
        %v5208 = vadd.f32 %v5157, 1.0
        %v5209 = vadd.f32 %v5159, 1.0
        %v5210 = vadd.f32 %v5161, 1.0
        %v5211 = vadd.f32 %v5163, 1.0
        %v5212 = vadd.f32 %v5165, 1.0
        %v5213 = vadd.f32 %v5167, 1.0
        %v5214 = vadd.f32 %v5169, 1.0
        %v5215 = vadd.f32 %v5171, 1.0
        %v5216 = vadd.f32 %v5173, 1.0
        %v5217 = vadd.f32 %v5175, 1.0
        %v5218 = vadd.f32 %v5177, 1.0
        %v5219 = vadd.f32 %v5179, 1.0
        %v5220 = vadd.f32 %v5181, 1.0
        %v5221 = vadd.f32 %v5183, 1.0
        %v5222 = vadd.f32 %v5185, 1.0
        %v5223 = vadd.f32 %v5187, 1.0
        %v5224 = vadd.f32 %v5189, 1.0
        %v5225 = vadd.f32 %v5191, 1.0
        %v5226 = vadd.f32 %v5193, 1.0
        %v5227 = vadd.f32 %v5195, 1.0
        %v5228 = vrcp.pop %v5196
        %v5229 = vmul.f32 1.0, %v5228
        %v5230 = vrcp.pop %v5197
        %v5231 = vmul.f32 1.0, %v5230
        %v5232 = vrcp.pop %v5198
        %v5233 = vmul.f32 1.0, %v5232
        %v5234 = vrcp.pop %v5199
        %v5235 = vmul.f32 1.0, %v5234
        %v5236 = vrcp.pop %v5200
        %v5237 = vmul.f32 1.0, %v5236
        %v5238 = vrcp.pop %v5201
        %v5239 = vmul.f32 1.0, %v5238
        %v5240 = vrcp.pop %v5202
        %v5241 = vmul.f32 1.0, %v5240
        %v5242 = vrcp.pop %v5203
        %v5243 = vmul.f32 1.0, %v5242
        %v5244 = vrcp.pop %v5204
        %v5245 = vmul.f32 1.0, %v5244
        %v5246 = vrcp.pop %v5205
        %v5247 = vmul.f32 1.0, %v5246
        %v5248 = vrcp.pop %v5206
        %v5249 = vmul.f32 1.0, %v5248
        %v5250 = vrcp.pop %v5207
        %v5251 = vmul.f32 1.0, %v5250
        %v5252 = vrcp.pop %v5208
        %v5253 = vmul.f32 1.0, %v5252
        %v5254 = vrcp.pop %v5209
        %v5255 = vmul.f32 1.0, %v5254
        %v5256 = vrcp.pop %v5210
        %v5257 = vmul.f32 1.0, %v5256
        %v5258 = vrcp.pop %v5211
        %v5259 = vmul.f32 1.0, %v5258
        %v5260 = vrcp.pop %v5212
        %v5261 = vmul.f32 1.0, %v5260
        %v5262 = vrcp.pop %v5213
        %v5263 = vmul.f32 1.0, %v5262
        %v5264 = vrcp.pop %v5214
        %v5265 = vmul.f32 1.0, %v5264
        %v5266 = vrcp.pop %v5215
        %v5267 = vmul.f32 1.0, %v5266
        %v5268 = vrcp.pop %v5216
        %v5269 = vmul.f32 1.0, %v5268
        %v5270 = vrcp.pop %v5217
        %v5271 = vmul.f32 1.0, %v5270
        %v5272 = vrcp.pop %v5218
        %v5273 = vmul.f32 1.0, %v5272
        %v5274 = vrcp.pop %v5219
        %v5275 = vmul.f32 1.0, %v5274
        %v5276 = vrcp.pop %v5220
        %v5277 = vmul.f32 1.0, %v5276
        %v5278 = vrcp.pop %v5221
        %v5279 = vmul.f32 1.0, %v5278
        %v5280 = vrcp.pop %v5222
        %v5281 = vmul.f32 1.0, %v5280
        %v5282 = vrcp.pop %v5223
        %v5283 = vmul.f32 1.0, %v5282
        %v5284 = vrcp.pop %v5224
        %v5285 = vmul.f32 1.0, %v5284
        %v5286 = vrcp.pop %v5225
        %v5287 = vmul.f32 1.0, %v5286
        %v5288 = vrcp.pop %v5226
        %v5289 = vmul.f32 1.0, %v5288
        %v5290 = vrcp.pop %v5227
        %v5291 = vmul.f32 1.0, %v5290
        %v5292 = vmul.f32 %v3801, %v5229
        %v5293 = vmul.f32 %v3802, %v5231
        %v5294 = vmul.f32 %v3803, %v5233
        %v5295 = vmul.f32 %v3804, %v5235
        %v5296 = vmul.f32 %v3805, %v5237
        %v5297 = vmul.f32 %v3806, %v5239
        %v5298 = vmul.f32 %v3807, %v5241
        %v5299 = vmul.f32 %v3808, %v5243
        %v5300 = vmul.f32 %v3809, %v5245
        %v5301 = vmul.f32 %v3810, %v5247
        %v5302 = vmul.f32 %v3811, %v5249
        %v5303 = vmul.f32 %v3812, %v5251
        %v5304 = vmul.f32 %v3813, %v5253
        %v5305 = vmul.f32 %v3814, %v5255
        %v5306 = vmul.f32 %v3815, %v5257
        %v5307 = vmul.f32 %v3816, %v5259
        %v5308 = vmul.f32 %v3817, %v5261
        %v5309 = vmul.f32 %v3818, %v5263
        %v5310 = vmul.f32 %v3819, %v5265
        %v5311 = vmul.f32 %v3820, %v5267
        %v5312 = vmul.f32 %v3821, %v5269
        %v5313 = vmul.f32 %v3822, %v5271
        %v5314 = vmul.f32 %v3823, %v5273
        %v5315 = vmul.f32 %v3824, %v5275
        %v5316 = vmul.f32 %v3825, %v5277
        %v5317 = vmul.f32 %v3826, %v5279
        %v5318 = vmul.f32 %v3827, %v5281
        %v5319 = vmul.f32 %v3828, %v5283
        %v5320 = vmul.f32 %v3829, %v5285
        %v5321 = vmul.f32 %v3830, %v5287
        %v5322 = vmul.f32 %v3831, %v5289
        %v5323 = vmul.f32 %v3832, %v5291
        %v5324 = vpack.c.bf16 %v5293, %v5292
        %v5325 = vpack.c.bf16 %v5295, %v5294
        %v5326 = vpack.c.bf16 %v5297, %v5296
        %v5327 = vpack.c.bf16 %v5299, %v5298
        %v5328 = vpack.c.bf16 %v5301, %v5300
        %v5329 = vpack.c.bf16 %v5303, %v5302
        %v5330 = vpack.c.bf16 %v5305, %v5304
        %v5331 = vpack.c.bf16 %v5307, %v5306
        %v5332 = vpack.c.bf16 %v5309, %v5308
        %v5333 = vpack.c.bf16 %v5311, %v5310
        %v5334 = vpack.c.bf16 %v5313, %v5312
        %v5335 = vpack.c.bf16 %v5315, %v5314
        %v5336 = vpack.c.bf16 %v5317, %v5316
        %v5337 = vpack.c.bf16 %v5319, %v5318
        %v5338 = vpack.c.bf16 %v5321, %v5320
        %v5339 = vpack.c.bf16 %v5323, %v5322
        %v5340 = vld [vmem:[#allocation6] sm:$0xf]
        %v5341 = vld [vmem:[#allocation6 + $0x4] sm:$0xf]
        %v5342 = vld [vmem:[#allocation6 + $0x8] sm:$0xf]
        %v5343 = vld [vmem:[#allocation6 + $0xc] sm:$0xf]
        %v5344 = vld [vmem:[#allocation6 + $0x10] sm:$0xf]
        %v5345 = vld [vmem:[#allocation6 + $0x14] sm:$0xf]
        %v5346 = vld [vmem:[#allocation6 + $0x18] sm:$0xf]
        %v5347 = vld [vmem:[#allocation6 + $0x1c] sm:$0xf]
        %v5348 = vld [vmem:[#allocation6 + $0x20] sm:$0xf]
        %v5349 = vld [vmem:[#allocation6 + $0x24] sm:$0xf]
        %v5350 = vld [vmem:[#allocation6 + $0x28] sm:$0xf]
        %v5351 = vld [vmem:[#allocation6 + $0x2c] sm:$0xf]
        %v5352 = vld [vmem:[#allocation6 + $0x30] sm:$0xf]
        %v5353 = vld [vmem:[#allocation6 + $0x34] sm:$0xf]
        %v5354 = vld [vmem:[#allocation6 + $0x38] sm:$0xf]
        %v5355 = vld [vmem:[#allocation6 + $0x3c] sm:$0xf]
        %v5372 = vunpack.c.l.b16 %v5340
        %v5373 = vunpack.c.l.b16 %v5341
        %v5374 = vunpack.c.l.b16 %v5342
        %v5375 = vunpack.c.l.b16 %v5343
        %v5376 = vunpack.c.l.b16 %v5344
        %v5377 = vunpack.c.l.b16 %v5345
        %v5378 = vunpack.c.l.b16 %v5346
        %v5379 = vunpack.c.l.b16 %v5347
        %v5380 = vunpack.c.l.b16 %v5348
        %v5381 = vunpack.c.l.b16 %v5349
        %v5382 = vunpack.c.l.b16 %v5350
        %v5383 = vunpack.c.l.b16 %v5351
        %v5384 = vunpack.c.l.b16 %v5352
        %v5385 = vunpack.c.l.b16 %v5353
        %v5386 = vunpack.c.l.b16 %v5354
        %v5387 = vunpack.c.l.b16 %v5355
        %v5388 = vpack.c.b16 %v5373, %v5372
        %v5389 = vpack.c.b16 %v5375, %v5374
        %v5390 = vpack.c.b16 %v5377, %v5376
        %v5391 = vpack.c.b16 %v5379, %v5378
        %v5392 = vpack.c.b16 %v5381, %v5380
        %v5393 = vpack.c.b16 %v5383, %v5382
        %v5394 = vpack.c.b16 %v5385, %v5384
        %v5395 = vpack.c.b16 %v5387, %v5386
        %5404 = vmatprep.subr.bf16.mxu0 0
        %5405 = vmatpush1.bf16.msra.mxu0 %v5388
        %5406 = vmatprep.subr.bf16.mxu0 0
        %5407 = vmatpush1.bf16.msra.mxu0 %v5389
        %5408 = vmatprep.subr.bf16.mxu0 0
        %5409 = vmatpush1.bf16.msra.mxu0 %v5390
        %5410 = vmatprep.subr.bf16.mxu0 0
        %5411 = vmatpush1.bf16.msra.mxu0 %v5391
        %5412 = vmatprep.subr.bf16.mxu0 0
        %5413 = vmatpush1.bf16.msra.mxu0 %v5392
        %5414 = vmatprep.subr.bf16.mxu0 0
        %5415 = vmatpush1.bf16.msra.mxu0 %v5393
        %5416 = vmatprep.subr.bf16.mxu0 0
        %5417 = vmatpush1.bf16.msra.mxu0 %v5394
        %5418 = vmatprep.subr.bf16.mxu0 0
        %5419 = vmatpush1.bf16.msra.mxu0 %v5395
        %5420 = vmatprep.subr.bf16.mxu0 0
        %5421 = vmatpush1.bf16.msra.mxu0 0
        %5422 = vmatprep.subr.bf16.mxu0 0
        %5423 = vmatpush1.bf16.msra.mxu0 0
        %5424 = vmatprep.subr.bf16.mxu0 0
        %5425 = vmatpush1.bf16.msra.mxu0 0
        %5426 = vmatprep.subr.bf16.mxu0 0
        %5427 = vmatpush1.bf16.msra.mxu0 0
        %5428 = vmatprep.subr.bf16.mxu0 0
        %5429 = vmatpush1.bf16.msra.mxu0 0
        %5430 = vmatprep.subr.bf16.mxu0 0
        %5431 = vmatpush1.bf16.msra.mxu0 0
        %5432 = vmatprep.subr.bf16.mxu0 0
        %5433 = vmatpush1.bf16.msra.mxu0 0
        %5434 = vmatprep.subr.bf16.mxu0 0
        %5435 = vmatpush1.bf16.msra.mxu0 0
        %5436 = vmatprep.mubr.bf16.mxu0 0
        %5437 = vmatmul.mubr.bf16.gmra.mrb[0].mxu0 %v5324
        %v5438 = vpop.f32.mrb[0].mxu0
        %v5439 = vadd.f32 0.0, %v5438
        %v5440 = vpop.f32.mrb[0].mxu0
        %v5441 = vpop.f32.mrb[0].mxu0
        %v5442 = vadd.f32 0.0, %v5441
        %v5443 = vpop.f32.mrb[0].mxu0
        %5444 = vmatprep.mubr.bf16.mxu0 0
        %5445 = vmatmul.mubr.bf16.gmra.mrb[0].mxu0 %v5325
        %v5446 = vpop.f32.mrb[0].mxu0
        %v5447 = vadd.f32 0.0, %v5446
        %v5448 = vpop.f32.mrb[0].mxu0
        %v5449 = vpop.f32.mrb[0].mxu0
        %v5450 = vadd.f32 0.0, %v5449
        %v5451 = vpop.f32.mrb[0].mxu0
        %5452 = vmatprep.mubr.bf16.mxu0 0
        %5453 = vmatmul.mubr.bf16.gmra.mrb[0].mxu0 %v5326
        %v5454 = vpop.f32.mrb[0].mxu0
        %v5455 = vadd.f32 0.0, %v5454
        %v5456 = vpop.f32.mrb[0].mxu0
        %v5457 = vpop.f32.mrb[0].mxu0
        %v5458 = vadd.f32 0.0, %v5457
        %v5459 = vpop.f32.mrb[0].mxu0
        %5460 = vmatprep.mubr.bf16.mxu0 0
        %5461 = vmatmul.mubr.bf16.gmra.mrb[0].mxu0 %v5327
        %v5462 = vpop.f32.mrb[0].mxu0
        %v5463 = vadd.f32 0.0, %v5462
        %v5464 = vpop.f32.mrb[0].mxu0
        %v5465 = vpop.f32.mrb[0].mxu0
        %v5466 = vadd.f32 0.0, %v5465
        %v5467 = vpop.f32.mrb[0].mxu0
        %5468 = vmatprep.mubr.bf16.mxu0 0
        %5469 = vmatmul.mubr.bf16.gmra.mrb[0].mxu0 %v5328
        %v5470 = vpop.f32.mrb[0].mxu0
        %v5471 = vadd.f32 0.0, %v5470
        %v5472 = vpop.f32.mrb[0].mxu0
        %v5473 = vpop.f32.mrb[0].mxu0
        %v5474 = vadd.f32 0.0, %v5473
        %v5475 = vpop.f32.mrb[0].mxu0
        %5476 = vmatprep.mubr.bf16.mxu0 0
        %5477 = vmatmul.mubr.bf16.gmra.mrb[0].mxu0 %v5329
        %v5478 = vpop.f32.mrb[0].mxu0
        %v5479 = vadd.f32 0.0, %v5478
        %v5480 = vpop.f32.mrb[0].mxu0
        %v5481 = vpop.f32.mrb[0].mxu0
        %v5482 = vadd.f32 0.0, %v5481
        %v5483 = vpop.f32.mrb[0].mxu0
        %5484 = vmatprep.mubr.bf16.mxu0 0
        %5485 = vmatmul.mubr.bf16.gmra.mrb[0].mxu0 %v5330
        %v5486 = vpop.f32.mrb[0].mxu0
        %v5487 = vadd.f32 0.0, %v5486
        %v5488 = vpop.f32.mrb[0].mxu0
        %v5489 = vpop.f32.mrb[0].mxu0
        %v5490 = vadd.f32 0.0, %v5489
        %v5491 = vpop.f32.mrb[0].mxu0
        %5492 = vmatprep.mubr.bf16.mxu0 0
        %5493 = vmatmul.mubr.bf16.gmra.mrb[0].mxu0 %v5331
        %v5494 = vpop.f32.mrb[0].mxu0
        %v5495 = vadd.f32 0.0, %v5494
        %v5496 = vpop.f32.mrb[0].mxu0
        %v5497 = vpop.f32.mrb[0].mxu0
        %v5498 = vadd.f32 0.0, %v5497
        %v5499 = vpop.f32.mrb[0].mxu0
        %5500 = vmatprep.mubr.bf16.mxu0 0
        %5501 = vmatmul.mubr.bf16.gmra.mrb[0].mxu0 %v5332
        %v5502 = vpop.f32.mrb[0].mxu0
        %v5503 = vadd.f32 0.0, %v5502
        %v5504 = vpop.f32.mrb[0].mxu0
        %v5505 = vpop.f32.mrb[0].mxu0
        %v5506 = vadd.f32 0.0, %v5505
        %v5507 = vpop.f32.mrb[0].mxu0
        %5508 = vmatprep.mubr.bf16.mxu0 0
        %5509 = vmatmul.mubr.bf16.gmra.mrb[0].mxu0 %v5333
        %v5510 = vpop.f32.mrb[0].mxu0
        %v5511 = vadd.f32 0.0, %v5510
        %v5512 = vpop.f32.mrb[0].mxu0
        %v5513 = vpop.f32.mrb[0].mxu0
        %v5514 = vadd.f32 0.0, %v5513
        %v5515 = vpop.f32.mrb[0].mxu0
        %5516 = vmatprep.mubr.bf16.mxu0 0
        %5517 = vmatmul.mubr.bf16.gmra.mrb[0].mxu0 %v5334
        %v5518 = vpop.f32.mrb[0].mxu0
        %v5519 = vadd.f32 0.0, %v5518
        %v5520 = vpop.f32.mrb[0].mxu0
        %v5521 = vpop.f32.mrb[0].mxu0
        %v5522 = vadd.f32 0.0, %v5521
        %v5523 = vpop.f32.mrb[0].mxu0
        %5524 = vmatprep.mubr.bf16.mxu0 0
        %5525 = vmatmul.mubr.bf16.gmra.mrb[0].mxu0 %v5335
        %v5526 = vpop.f32.mrb[0].mxu0
        %v5527 = vadd.f32 0.0, %v5526
        %v5528 = vpop.f32.mrb[0].mxu0
        %v5529 = vpop.f32.mrb[0].mxu0
        %v5530 = vadd.f32 0.0, %v5529
        %v5531 = vpop.f32.mrb[0].mxu0
        %5532 = vmatprep.mubr.bf16.mxu0 0
        %5533 = vmatmul.mubr.bf16.gmra.mrb[0].mxu0 %v5336
        %v5534 = vpop.f32.mrb[0].mxu0
        %v5535 = vadd.f32 0.0, %v5534
        %v5536 = vpop.f32.mrb[0].mxu0
        %v5537 = vpop.f32.mrb[0].mxu0
        %v5538 = vadd.f32 0.0, %v5537
        %v5539 = vpop.f32.mrb[0].mxu0
        %5540 = vmatprep.mubr.bf16.mxu0 0
        %5541 = vmatmul.mubr.bf16.gmra.mrb[0].mxu0 %v5337
        %v5542 = vpop.f32.mrb[0].mxu0
        %v5543 = vadd.f32 0.0, %v5542
        %v5544 = vpop.f32.mrb[0].mxu0
        %v5545 = vpop.f32.mrb[0].mxu0
        %v5546 = vadd.f32 0.0, %v5545
        %v5547 = vpop.f32.mrb[0].mxu0
        %5548 = vmatprep.mubr.bf16.mxu0 0
        %5549 = vmatmul.mubr.bf16.gmra.mrb[0].mxu0 %v5338
        %v5550 = vpop.f32.mrb[0].mxu0
        %v5551 = vadd.f32 0.0, %v5550
        %v5552 = vpop.f32.mrb[0].mxu0
        %v5553 = vpop.f32.mrb[0].mxu0
        %v5554 = vadd.f32 0.0, %v5553
        %v5555 = vpop.f32.mrb[0].mxu0
        %5556 = vmatprep.mubr.bf16.mxu0 0
        %5557 = vmatmul.mubr.bf16.gmra.mrb[0].mxu0 %v5339
        %v5558 = vpop.f32.mrb[0].mxu0
        %v5559 = vadd.f32 0.0, %v5558
        %v5560 = vpop.f32.mrb[0].mxu0
        %v5561 = vpop.f32.mrb[0].mxu0
        %v5562 = vadd.f32 0.0, %v5561
        %v5563 = vpop.f32.mrb[0].mxu0
        %5564 = vdwg.mxu0
        %5565 = vst [vmem:[%s381] sm:$0xff] %v5439
        %5566 = vst [vmem:[%s381 + $0x8] sm:$0xff] %v5442
        %5567 = vst [vmem:[%s381 + $0x10] sm:$0xff] %v5447
        %5568 = vst [vmem:[%s381 + $0x18] sm:$0xff] %v5450
        %5569 = vst [vmem:[%s381 + $0x20] sm:$0xff] %v5455
        %5570 = vst [vmem:[%s381 + $0x28] sm:$0xff] %v5458
        %5571 = vst [vmem:[%s381 + $0x30] sm:$0xff] %v5463
        %5572 = vst [vmem:[%s381 + $0x38] sm:$0xff] %v5466
        %5573 = vst [vmem:[%s381 + $0x40] sm:$0xff] %v5471
        %5574 = vst [vmem:[%s381 + $0x48] sm:$0xff] %v5474
        %5575 = vst [vmem:[%s381 + $0x50] sm:$0xff] %v5479
        %5576 = vst [vmem:[%s381 + $0x58] sm:$0xff] %v5482
        %5577 = vst [vmem:[%s381 + $0x60] sm:$0xff] %v5487
        %5578 = vst [vmem:[%s381 + $0x68] sm:$0xff] %v5490
        %5579 = vst [vmem:[%s381 + $0x70] sm:$0xff] %v5495
        %5580 = vst [vmem:[%s381 + $0x78] sm:$0xff] %v5498
        %5581 = vst [vmem:[%s381 + $0x80] sm:$0xff] %v5503
        %5582 = vst [vmem:[%s381 + $0x88] sm:$0xff] %v5506
        %5583 = vst [vmem:[%s381 + $0x90] sm:$0xff] %v5511
        %5584 = vst [vmem:[%s381 + $0x98] sm:$0xff] %v5514
        %5585 = vst [vmem:[%s381 + $0xa0] sm:$0xff] %v5519
        %5586 = vst [vmem:[%s381 + $0xa8] sm:$0xff] %v5522
        %5587 = vst [vmem:[%s381 + $0xb0] sm:$0xff] %v5527
        %5588 = vst [vmem:[%s381 + $0xb8] sm:$0xff] %v5530
        %5589 = vst [vmem:[%s381 + $0xc0] sm:$0xff] %v5535
        %5590 = vst [vmem:[%s381 + $0xc8] sm:$0xff] %v5538
        %5591 = vst [vmem:[%s381 + $0xd0] sm:$0xff] %v5543
        %5592 = vst [vmem:[%s381 + $0xd8] sm:$0xff] %v5546
        %5593 = vst [vmem:[%s381 + $0xe0] sm:$0xff] %v5551
        %5594 = vst [vmem:[%s381 + $0xe8] sm:$0xff] %v5554
        %5595 = vst [vmem:[%s381 + $0xf0] sm:$0xff] %v5559
        %5596 = vst [vmem:[%s381 + $0xf8] sm:$0xff] %v5562
        %s5597 = sand.u32 %s228, 1
        %s5598 = scalar_lea.sflag [#allocation5], %s5597
        %s5599 = sand.u32 %s228, 1
        %s5600 = smul.addr %s5599, 256
        %s5601 = scalar_lea.vmem [#allocation11], %s5600
        // Predicated region
        $region73: #{tpu_custom_call.1} parent=55 // pred_check
          %p5602 = pneg %p238
        $region74: #{tpu_custom_call.1} parent=55 // pred_check_branch
          %5604 = sbr.rel (%p5602) target = $region76
        $region75: #{tpu_custom_call.1} parent=55 // pred_region
          %s5605 = smul.u32 32, %s26
          %s5607 = ssub.s32 4096, 4096
          %5608 = vsyncadd %s5598, %s5607
          %s5609 = smul.addr %s5605, 128
          %s5610 = scalar_lea.hbm %s9, %s5609
          %s5611 = sshll.u32 %s5601, 4
          %s5612 = int_to_ptr.vmem [resolvable:$true] %s5611
          %5617 = dma.vmem_to_hbm [thread:$0]  %s5612, 4096, %s5610, %s5598, 128, 128, 8
        $region76: #{tpu_custom_call.1} parent=55 // pred_fallthru
          _
      $region56: #{tpu_custom_call.1} parent=5 // pred_fallthru
        _
      %p5618 = scmp.le.s32.totalorder 2, %s21
      // Predicated region
      $region77: #{tpu_custom_call.1} parent=5 // pred_check
        %p5619 = pneg %p5618
      $region78: #{tpu_custom_call.1} parent=5 // pred_check_branch
        %5621 = sbr.rel (%p5619) target = $region80
      $region79: #{tpu_custom_call.1} parent=5 // pred_region
        %s5622 = ssub.s32 %s21, 2
        // Predicated region
        $region81: #{tpu_custom_call.1} parent=79 // pred_check
          %p5623 = pneg %p244
        $region82: #{tpu_custom_call.1} parent=79 // pred_check_branch
          %5625 = sbr.rel (%p5623) target = $region84
        $region83: #{tpu_custom_call.1} parent=79 // pred_region
          %s5626 = sand.u32 %s229, 1
          %s5627 = scalar_lea.sflag [#allocation5], %s5626
          %s5628 = sand.u32 %s229, 1
          %s5629 = smul.addr %s5628, 256
          %s5630 = scalar_lea.vmem [#allocation11], %s5629
          %5631 = dma.done %s5627, 4096
        $region84: #{tpu_custom_call.1} parent=79 // pred_fallthru
          _
      $region80: #{tpu_custom_call.1} parent=5 // pred_fallthru
        _
    $region6: #{tpu_custom_call.1} parent=1 // loop_footer
      %s25 = sadd.s32 1, %s21
    $region7: #{tpu_custom_call.1} parent=1 // loop_footer_branch
      %20 = sbr.rel target = $region3
    $region8: #{tpu_custom_call.1} parent=1 // loop_exit
      _
    %5632 = vsyncpa [#allocation4], 1
    %s5633 = scalar_lea.sflag [#allocation4], 1
    %5634 = vsyncpa %s5633, 1
    %5635 = vsyncpa [#allocation7], 1
    %5636 = vsyncpa [#allocation10], 1
    %5637 = vsyncpa [#allocation5], 1
    %s5638 = scalar_lea.sflag [#allocation5], 1
    %5639 = vsyncpa %s5638, 1

</llo_original>
